<compile_context>
chip_gen: v7x
topology: tpu7x:2x2x1
jax: 0.10.0
libtpu: 0.0.40
codegen_flags: <defaults>
</compile_context>

<pallas_src>
import functools

import jax
import jax.numpy as jnp
from jax import lax
from jax.experimental import pallas as pl
from jax.experimental.pallas import tpu as pltpu

_EPS_DIST = 1e-12   # pdist clamp eps (torch .clamp(min=eps))
_EPS_NORM = 1e-12   # F.normalize eps


def _sum_all(x):
    # Full 2-D sum -> (1, 1); keeps everything 2-D for TPU-friendly layout.
    return jnp.sum(jnp.sum(x, axis=1, keepdims=True), axis=0, keepdims=True)


def _huber(diff):
    # F.smooth_l1_loss element-wise term (beta = 1.0).
    ad = jnp.abs(diff)
    return jnp.where(ad < 1.0, 0.5 * diff * diff, ad - 0.5)


def _matmul_nt(a, b):
    # a @ b.T with f32 operands and f32 accumulation (full-precision Gram).
    return lax.dot_general(a, b, (((1,), (1,)), ((), ())),
                           preferred_element_type=jnp.float32)


def _matmul_nn(a, b):
    # a @ b with f32 operands and f32 accumulation.
    return lax.dot_general(a, b, (((1,), (0,)), ((), ())),
                           preferred_element_type=jnp.float32)


def _rkd_kernel(fs_ref, ft_ref, out_ref, hs_ref, rs_ref, ht_ref, rt_ref, *,
                n, w_dist, w_angle, unroll):
    """Single-step kernel: distance term once + fori_loop over anchors."""
    f32 = jnp.float32
    ri = lax.broadcasted_iota(jnp.int32, (n, n), 0)
    ci = lax.broadcasted_iota(jnp.int32, (n, n), 1)
    eye = ri == ci

    def _setup(f_ref, h_ref, r_ref):
        # f32 Gram, computed once per feature matrix (O(N^2 D) MXU work).
        f = f_ref[...].astype(f32)
        g = _matmul_nt(f, f)                                    # (N, N)
        # Squared norms in both orientations from the Gram diagonal
        # (done once; avoids extra feature-space reductions / transposes).
        diag = jnp.where(eye, g, 0.0)
        sq_col = jnp.sum(diag, axis=1, keepdims=True)           # (N, 1)
        sq_row = jnp.sum(diag, axis=0, keepdims=True)           # (1, N)
        d2 = sq_col + sq_row - 2.0 * g                          # raw squared pdist
        # ---- distance term: pdist, zero diag, normalize by mean(>0) ----
        dist = jnp.sqrt(jnp.maximum(d2, _EPS_DIST))
        dist = jnp.where(eye, 0.0, dist)
        mean = _sum_all(dist) / float(n * (n - 1))
        # ---- angle-term scratch: h = 0.5*d2 and rsqrt factors ----
        h_ref[...] = 0.5 * d2
        # r[i, j] = 1 / max(||f_i - f_j||, eps); r[i, i] = 0 so the anchor's
        # own row/column of every angle matrix vanish exactly (matches
        # F.normalize of the zero vector in the PyTorch reference and avoids
        # amplifying Gram-identity cancellation on the diagonal).
        r_ref[...] = jnp.where(
            eye, 0.0, lax.rsqrt(jnp.maximum(d2, _EPS_NORM * _EPS_NORM)))
        return dist / mean

    ds = _setup(fs_ref, hs_ref, rs_ref)
    dt = _setup(ft_ref, ht_ref, rt_ref)
    loss_dist = _sum_all(_huber(ds - dt)) / float(n * n)        # smooth_l1 mean

    # ------------------- RKD angle term (Gram identity) --------------------
    # For anchor i:  A_i[j, k] = (h[i,j] + h[i,k] - h[j,k]) * r[i,j] * r[i,k].
    # Row i of h / r gives the lane-oriented (1, N) factors directly; the
    # sublane-oriented (N, 1) copies are pulled with a one-hot matmul on the
    # otherwise-idle MXU (h and r are symmetric, so column i == row i).
    iota_col = lax.broadcasted_iota(jnp.int32, (n, 1), 0)

    def _angle(i, onehot, h_ref, r_ref):
        h_full = h_ref[...]                                     # (N, N)
        r_full = r_ref[...]                                     # (N, N)
        h_row = h_ref[pl.ds(i, 1), :]                           # (1, N)
        r_row = r_ref[pl.ds(i, 1), :]                           # (1, N)
        h_col = _matmul_nn(h_full, onehot)                      # (N, 1)
        r_col = _matmul_nn(r_full, onehot)                      # (N, 1)
        return (h_col + h_row - h_full) * (r_col * r_row)       # (N, N)

    def _body(i, acc):
        onehot = (iota_col == i).astype(f32)                    # (N, 1)
        a_s = _angle(i, onehot, hs_ref, rs_ref)
        a_t = _angle(i, onehot, ht_ref, rt_ref)
        return acc + _sum_all(_huber(a_s - a_t))

    angle_sum = lax.fori_loop(0, n, _body, jnp.zeros((1, 1), f32),
                              unroll=unroll)
    loss_angle = angle_sum / float(n * n * n)                   # smooth_l1 mean

    out_ref[...] = w_dist * loss_dist + w_angle * loss_angle


def rkd_loss(feat_s, feat_t, w_dist=25.0, w_angle=50.0, *, unroll=8,
             interpret=False):
    """RKD forward: w_dist * rkd_dist + w_angle * rkd_angle."""
    n, d_s = feat_s.shape
    n_t, d_t = feat_t.shape
    assert n == n_t, "student/teacher batch sizes must match"
    assert n >= 2, "RKD needs at least 2 samples"
    # Moderate fixed unroll (review): keeps LLO visibility without blowing up
    # live (N, N) temporaries at large N.
    unroll = max(1, min(int(unroll), n))

    kernel = functools.partial(
        _rkd_kernel, n=n, w_dist=float(w_dist), w_angle=float(w_angle),
        unroll=unroll)

    # Safe scoped limit on all of v5e/v6e/v7x (== default on v6e/v7x).
    # Resident inputs + 4x (N, N) f32 scratch + a few (N, N) temps fit
    # comfortably for moderate N; raise this for very large N (v5e/v6e only —
    # v7x physical ceiling is 64 MiB).
    vmem_limit = 32 * 1024 * 1024

    out = pl.pallas_call(
        kernel,
        out_shape=jax.ShapeDtypeStruct((1, 1), jnp.float32),
        # Single grid step: inputs are fully resident, nothing to pipeline.
        grid=(1,),
        in_specs=[pl.BlockSpec((n, d_s), lambda i: (0, 0)),
                  pl.BlockSpec((n, d_t), lambda i: (0, 0))],
        out_specs=pl.BlockSpec((1, 1), lambda i: (0, 0)),
        scratch_shapes=[pltpu.VMEM((n, n), jnp.float32),   # h_s = 0.5 * d2_s
                        pltpu.VMEM((n, n), jnp.float32),   # r_s
                        pltpu.VMEM((n, n), jnp.float32),   # h_t = 0.5 * d2_t
                        pltpu.VMEM((n, n), jnp.float32)],  # r_t
        compiler_params=pltpu.CompilerParams(
            dimension_semantics=("arbitrary",),
            vmem_limit_bytes=vmem_limit),
        interpret=interpret,
    )(feat_s, feat_t)   # native dtype — cast to f32 happens once in-kernel
    return out[0, 0]


def _rkd_reference(feat_s, feat_t, w_dist, w_angle):
    """Pure-JAX reference mirroring the PyTorch module (f32)."""
    hi = lax.Precision.HIGHEST

    def pdist(feat):
        n = feat.shape[0]
        sq = jnp.sum(feat * feat, axis=1)
        prod = jnp.dot(feat, feat.T, precision=hi)
        d2 = jnp.maximum(sq[None, :] + sq[:, None] - 2.0 * prod, 1e-12)
        return jnp.sqrt(d2) * (1.0 - jnp.eye(n, dtype=feat.dtype))

    def norm_dist(feat):
        n = feat.shape[0]
        d = pdist(feat)
        return d / (jnp.sum(d) / (n * (n - 1)))   # mean of all >0 entries

    def angle(feat):
        vd = feat[None, :, :] - feat[:, None, :]
        nrm = jnp.sqrt(jnp.sum(vd * vd, axis=2, keepdims=True))
        vd = vd / jnp.maximum(nrm, 1e-12)
        return jnp.einsum("abd,acd->abc", vd, vd, precision=hi)

    loss_d = jnp.mean(_huber(norm_dist(feat_s) - norm_dist(feat_t)))
    loss_a = jnp.mean(_huber(angle(feat_s) - angle(feat_t)))
    return w_dist * loss_d + w_angle * loss_a


if __name__ == "__main__":
    key = jax.random.PRNGKey(0)
    k_s, k_t = jax.random.split(key)
    N, D_S, D_T = 8, 32, 64
    feat_s = jax.random.normal(k_s, (N, D_S), dtype=jnp.float32)
    feat_t = jax.random.normal(k_t, (N, D_T), dtype=jnp.float32)

    # Module "parameters" (its only state): the loss weights.
    w_dist, w_angle = 25.0, 50.0

    loss = rkd_loss(feat_s, feat_t, w_dist=w_dist, w_angle=w_angle)
    jax.block_until_ready(loss)

    ref = _rkd_reference(feat_s, feat_t, w_dist, w_angle)
    assert bool(jnp.isfinite(loss)), loss
    # f32 Grams + f32 element-wise math -> tight agreement with the reference.
    assert abs(float(loss) - float(ref)) <= 1e-2 * max(1.0, abs(float(ref))), \
        (float(loss), float(ref))
    print("KERNEL_OK")
</pallas_src>

<mosaic_0001>
module attributes {stable_mosaic.version = 11 : i64} {
  func.func @_rkd_kernel(%arg0: i32, %arg1: memref<8x32xf32, #tpu.memory_space<vmem>>, %arg2: memref<8x64xf32, #tpu.memory_space<vmem>>, %arg3: memref<1x1xf32, #tpu.memory_space<vmem>>, %arg4: memref<8x8xf32, #tpu.memory_space<vmem>>, %arg5: memref<8x8xf32, #tpu.memory_space<vmem>>, %arg6: memref<8x8xf32, #tpu.memory_space<vmem>>, %arg7: memref<8x8xf32, #tpu.memory_space<vmem>>) attributes {dimension_semantics = [#tpu.dimension_semantics<arbitrary>], iteration_bounds = array<i64: 1>, scalar_prefetch = 0 : i64, scratch_operands = 4 : i64, tpu.core_type = #tpu.core_type<tc>, window_params = [{pipeline_mode = #tpu.pipeline_mode<synchronous>, transform_indices = @transform_0, window_bounds = array<i64: 8, 32>}, {pipeline_mode = #tpu.pipeline_mode<synchronous>, transform_indices = @transform_1, window_bounds = array<i64: 8, 64>}, {pipeline_mode = #tpu.pipeline_mode<synchronous>, transform_indices = @transform_2, window_bounds = array<i64: 1, 1>}]} {
    %0 = tpu.iota {dimensions = array<i32: 0>} : vector<8x8xi32>
    %1 = tpu.iota {dimensions = array<i32: 1>} : vector<8x8xi32>
    %2 = arith.cmpi eq, %0, %1 : vector<8x8xi32>
    %c0 = arith.constant 0 : index
    %c0_0 = arith.constant 0 : index
    %3 = vector.load %arg1[%c0, %c0_0] : memref<8x32xf32, #tpu.memory_space<vmem>>, vector<8x32xf32>
    %cst = arith.constant dense<0.000000e+00> : vector<8x8xf32>
    %4 = tpu.matmul %3, %3, %cst {dimension_numbers = #tpu.dot_dimension_numbers<[1], [1], [0], [0], [0, 0, 1, 0], [], []>} : vector<8x32xf32>, vector<8x32xf32>, vector<8x8xf32> -> vector<8x8xf32>
    %cst_1 = arith.constant 0.000000e+00 : f32
    %5 = vector.broadcast %cst_1 : f32 to vector<8x8xf32>
    %6 = arith.select %2, %4, %5 : vector<8x8xi1>, vector<8x8xf32>
    %cst_2 = arith.constant dense<0.000000e+00> : vector<8xf32>
    %7 = vector.multi_reduction <add>, %6, %cst_2 [1] : vector<8x8xf32> to vector<8xf32>
    %8 = vector.shape_cast %7 : vector<8xf32> to vector<8x1xf32>
    %cst_3 = arith.constant dense<0.000000e+00> : vector<8xf32>
    %9 = vector.multi_reduction <add>, %6, %cst_3 [0] : vector<8x8xf32> to vector<8xf32>
    %10 = vector.shape_cast %9 : vector<8xf32> to vector<1x8xf32>
    %11 = vector.broadcast %8 : vector<8x1xf32> to vector<8x8xf32>
    %12 = vector.broadcast %10 : vector<1x8xf32> to vector<8x8xf32>
    %13 = arith.addf %11, %12 : vector<8x8xf32>
    %cst_4 = arith.constant 2.000000e+00 : f32
    %14 = vector.broadcast %cst_4 : f32 to vector<8x8xf32>
    %15 = arith.mulf %14, %4 : vector<8x8xf32>
    %16 = arith.subf %13, %15 : vector<8x8xf32>
    %cst_5 = arith.constant 9.99999996E-13 : f32
    %17 = vector.broadcast %cst_5 : f32 to vector<8x8xf32>
    %18 = arith.maximumf %16, %17 : vector<8x8xf32>
    %19 = math.sqrt %18 : vector<8x8xf32>
    %cst_6 = arith.constant 0.000000e+00 : f32
    %20 = vector.broadcast %cst_6 : f32 to vector<8x8xf32>
    %21 = arith.select %2, %20, %19 : vector<8x8xi1>, vector<8x8xf32>
    %cst_7 = arith.constant dense<0.000000e+00> : vector<8xf32>
    %22 = vector.multi_reduction <add>, %21, %cst_7 [1] : vector<8x8xf32> to vector<8xf32>
    %23 = vector.shape_cast %22 : vector<8xf32> to vector<8x1xf32>
    %cst_8 = arith.constant dense<0.000000e+00> : vector<1xf32>
    %24 = vector.multi_reduction <add>, %23, %cst_8 [0] : vector<8x1xf32> to vector<1xf32>
    %25 = vector.shape_cast %24 : vector<1xf32> to vector<1x1xf32>
    %cst_9 = arith.constant 5.600000e+01 : f32
    %26 = vector.broadcast %cst_9 : f32 to vector<1x1xf32>
    %27 = arith.divf %25, %26 : vector<1x1xf32>
    %cst_10 = arith.constant 5.000000e-01 : f32
    %28 = vector.broadcast %cst_10 : f32 to vector<8x8xf32>
    %29 = arith.mulf %28, %16 : vector<8x8xf32>
    %c0_11 = arith.constant 0 : index
    %c0_12 = arith.constant 0 : index
    %30 = vector.load %arg4[%c0_11, %c0_12] : memref<8x8xf32, #tpu.memory_space<vmem>>, vector<8x8xf32>
    tpu.vector_store %arg4[%c0_11, %c0_12], %29 {strides = array<i32>} : memref<8x8xf32, #tpu.memory_space<vmem>>, vector<8x8xf32>,
    %cst_13 = arith.constant 1.000000e-24 : f32
    %31 = vector.broadcast %cst_13 : f32 to vector<8x8xf32>
    %32 = arith.maximumf %16, %31 : vector<8x8xf32>
    %33 = math.rsqrt %32 : vector<8x8xf32>
    %cst_14 = arith.constant 0.000000e+00 : f32
    %34 = vector.broadcast %cst_14 : f32 to vector<8x8xf32>
    %35 = arith.select %2, %34, %33 : vector<8x8xi1>, vector<8x8xf32>
    %c0_15 = arith.constant 0 : index
    %c0_16 = arith.constant 0 : index
    %36 = vector.load %arg5[%c0_15, %c0_16] : memref<8x8xf32, #tpu.memory_space<vmem>>, vector<8x8xf32>
    tpu.vector_store %arg5[%c0_15, %c0_16], %35 {strides = array<i32>} : memref<8x8xf32, #tpu.memory_space<vmem>>, vector<8x8xf32>,
    %37 = vector.broadcast %27 : vector<1x1xf32> to vector<8x8xf32>
    %38 = arith.divf %21, %37 : vector<8x8xf32>
    %c0_17 = arith.constant 0 : index
    %c0_18 = arith.constant 0 : index
    %39 = vector.load %arg2[%c0_17, %c0_18] : memref<8x64xf32, #tpu.memory_space<vmem>>, vector<8x64xf32>
    %cst_19 = arith.constant dense<0.000000e+00> : vector<8x8xf32>
    %40 = tpu.matmul %39, %39, %cst_19 {dimension_numbers = #tpu.dot_dimension_numbers<[1], [1], [0], [0], [0, 0, 1, 0], [], []>} : vector<8x64xf32>, vector<8x64xf32>, vector<8x8xf32> -> vector<8x8xf32>
    %cst_20 = arith.constant 0.000000e+00 : f32
    %41 = vector.broadcast %cst_20 : f32 to vector<8x8xf32>
    %42 = arith.select %2, %40, %41 : vector<8x8xi1>, vector<8x8xf32>
    %cst_21 = arith.constant dense<0.000000e+00> : vector<8xf32>
    %43 = vector.multi_reduction <add>, %42, %cst_21 [1] : vector<8x8xf32> to vector<8xf32>
    %44 = vector.shape_cast %43 : vector<8xf32> to vector<8x1xf32>
    %cst_22 = arith.constant dense<0.000000e+00> : vector<8xf32>
    %45 = vector.multi_reduction <add>, %42, %cst_22 [0] : vector<8x8xf32> to vector<8xf32>
    %46 = vector.shape_cast %45 : vector<8xf32> to vector<1x8xf32>
    %47 = vector.broadcast %44 : vector<8x1xf32> to vector<8x8xf32>
    %48 = vector.broadcast %46 : vector<1x8xf32> to vector<8x8xf32>
    %49 = arith.addf %47, %48 : vector<8x8xf32>
    %cst_23 = arith.constant 2.000000e+00 : f32
    %50 = vector.broadcast %cst_23 : f32 to vector<8x8xf32>
    %51 = arith.mulf %50, %40 : vector<8x8xf32>
    %52 = arith.subf %49, %51 : vector<8x8xf32>
    %cst_24 = arith.constant 9.99999996E-13 : f32
    %53 = vector.broadcast %cst_24 : f32 to vector<8x8xf32>
    %54 = arith.maximumf %52, %53 : vector<8x8xf32>
    %55 = math.sqrt %54 : vector<8x8xf32>
    %cst_25 = arith.constant 0.000000e+00 : f32
    %56 = vector.broadcast %cst_25 : f32 to vector<8x8xf32>
    %57 = arith.select %2, %56, %55 : vector<8x8xi1>, vector<8x8xf32>
    %cst_26 = arith.constant dense<0.000000e+00> : vector<8xf32>
    %58 = vector.multi_reduction <add>, %57, %cst_26 [1] : vector<8x8xf32> to vector<8xf32>
    %59 = vector.shape_cast %58 : vector<8xf32> to vector<8x1xf32>
    %cst_27 = arith.constant dense<0.000000e+00> : vector<1xf32>
    %60 = vector.multi_reduction <add>, %59, %cst_27 [0] : vector<8x1xf32> to vector<1xf32>
    %61 = vector.shape_cast %60 : vector<1xf32> to vector<1x1xf32>
    %cst_28 = arith.constant 5.600000e+01 : f32
    %62 = vector.broadcast %cst_28 : f32 to vector<1x1xf32>
    %63 = arith.divf %61, %62 : vector<1x1xf32>
    %cst_29 = arith.constant 5.000000e-01 : f32
    %64 = vector.broadcast %cst_29 : f32 to vector<8x8xf32>
    %65 = arith.mulf %64, %52 : vector<8x8xf32>
    %c0_30 = arith.constant 0 : index
    %c0_31 = arith.constant 0 : index
    %66 = vector.load %arg6[%c0_30, %c0_31] : memref<8x8xf32, #tpu.memory_space<vmem>>, vector<8x8xf32>
    tpu.vector_store %arg6[%c0_30, %c0_31], %65 {strides = array<i32>} : memref<8x8xf32, #tpu.memory_space<vmem>>, vector<8x8xf32>,
    %cst_32 = arith.constant 1.000000e-24 : f32
    %67 = vector.broadcast %cst_32 : f32 to vector<8x8xf32>
    %68 = arith.maximumf %52, %67 : vector<8x8xf32>
    %69 = math.rsqrt %68 : vector<8x8xf32>
    %cst_33 = arith.constant 0.000000e+00 : f32
    %70 = vector.broadcast %cst_33 : f32 to vector<8x8xf32>
    %71 = arith.select %2, %70, %69 : vector<8x8xi1>, vector<8x8xf32>
    %c0_34 = arith.constant 0 : index
    %c0_35 = arith.constant 0 : index
    %72 = vector.load %arg7[%c0_34, %c0_35] : memref<8x8xf32, #tpu.memory_space<vmem>>, vector<8x8xf32>
    tpu.vector_store %arg7[%c0_34, %c0_35], %71 {strides = array<i32>} : memref<8x8xf32, #tpu.memory_space<vmem>>, vector<8x8xf32>,
    %73 = vector.broadcast %63 : vector<1x1xf32> to vector<8x8xf32>
    %74 = arith.divf %57, %73 : vector<8x8xf32>
    %75 = arith.subf %38, %74 : vector<8x8xf32>
    %76 = math.absf %75 : vector<8x8xf32>
    %cst_36 = arith.constant 1.000000e+00 : f32
    %77 = vector.broadcast %cst_36 : f32 to vector<8x8xf32>
    %78 = arith.cmpf olt, %76, %77 : vector<8x8xf32>
    %cst_37 = arith.constant 5.000000e-01 : f32
    %79 = vector.broadcast %cst_37 : f32 to vector<8x8xf32>
    %80 = arith.mulf %79, %75 : vector<8x8xf32>
    %81 = arith.mulf %80, %75 : vector<8x8xf32>
    %cst_38 = arith.constant 5.000000e-01 : f32
    %82 = vector.broadcast %cst_38 : f32 to vector<8x8xf32>
    %83 = arith.subf %76, %82 : vector<8x8xf32>
    %84 = arith.select %78, %81, %83 : vector<8x8xi1>, vector<8x8xf32>
    %cst_39 = arith.constant dense<0.000000e+00> : vector<8xf32>
    %85 = vector.multi_reduction <add>, %84, %cst_39 [1] : vector<8x8xf32> to vector<8xf32>
    %86 = vector.shape_cast %85 : vector<8xf32> to vector<8x1xf32>
    %cst_40 = arith.constant dense<0.000000e+00> : vector<1xf32>
    %87 = vector.multi_reduction <add>, %86, %cst_40 [0] : vector<8x1xf32> to vector<1xf32>
    %88 = vector.shape_cast %87 : vector<1xf32> to vector<1x1xf32>
    %cst_41 = arith.constant 6.400000e+01 : f32
    %89 = vector.broadcast %cst_41 : f32 to vector<1x1xf32>
    %90 = arith.divf %88, %89 : vector<1x1xf32>
    %91 = tpu.iota {dimensions = array<i32: 0>} : vector<8x1xi32>
    %cst_42 = arith.constant 0.000000e+00 : f32
    %92 = vector.broadcast %cst_42 : f32 to vector<1x1xf32>
    %c0_i32 = arith.constant 0 : i32
    %93 = vector.broadcast %c0_i32 : i32 to vector<8x1xi32>
    %94 = arith.cmpi eq, %91, %93 : vector<8x1xi32>
    %95 = arith.extui %94 : vector<8x1xi1> to vector<8x1xi32>
    %96 = arith.sitofp %95 : vector<8x1xi32> to vector<8x1xf32>
    %c0_43 = arith.constant 0 : index
    %c0_44 = arith.constant 0 : index
    %97 = vector.load %arg4[%c0_43, %c0_44] : memref<8x8xf32, #tpu.memory_space<vmem>>, vector<8x8xf32>
    %c0_45 = arith.constant 0 : index
    %c0_46 = arith.constant 0 : index
    %98 = vector.load %arg5[%c0_45, %c0_46] : memref<8x8xf32, #tpu.memory_space<vmem>>, vector<8x8xf32>
    %99 = arith.index_cast %c0_i32 : i32 to index
    %c0_47 = arith.constant 0 : index
    %100 = vector.load %arg4[%99, %c0_47] : memref<8x8xf32, #tpu.memory_space<vmem>>, vector<1x8xf32>
    %101 = arith.index_cast %c0_i32 : i32 to index
    %c0_48 = arith.constant 0 : index
    %102 = vector.load %arg5[%101, %c0_48] : memref<8x8xf32, #tpu.memory_space<vmem>>, vector<1x8xf32>
    %cst_49 = arith.constant dense<0.000000e+00> : vector<8x1xf32>
    %103 = tpu.matmul %97, %96, %cst_49 {dimension_numbers = #tpu.dot_dimension_numbers<[1], [0], [0], [1], [0, 0, 1, 1], [], []>} : vector<8x8xf32>, vector<8x1xf32>, vector<8x1xf32> -> vector<8x1xf32>
    %cst_50 = arith.constant dense<0.000000e+00> : vector<8x1xf32>
    %104 = tpu.matmul %98, %96, %cst_50 {dimension_numbers = #tpu.dot_dimension_numbers<[1], [0], [0], [1], [0, 0, 1, 1], [], []>} : vector<8x8xf32>, vector<8x1xf32>, vector<8x1xf32> -> vector<8x1xf32>
    %105 = vector.broadcast %103 : vector<8x1xf32> to vector<8x8xf32>
    %106 = vector.broadcast %100 : vector<1x8xf32> to vector<8x8xf32>
    %107 = arith.addf %105, %106 : vector<8x8xf32>
    %108 = arith.subf %107, %97 : vector<8x8xf32>
    %109 = vector.broadcast %104 : vector<8x1xf32> to vector<8x8xf32>
    %110 = vector.broadcast %102 : vector<1x8xf32> to vector<8x8xf32>
    %111 = arith.mulf %109, %110 : vector<8x8xf32>
    %112 = arith.mulf %108, %111 : vector<8x8xf32>
    %c0_51 = arith.constant 0 : index
    %c0_52 = arith.constant 0 : index
    %113 = vector.load %arg6[%c0_51, %c0_52] : memref<8x8xf32, #tpu.memory_space<vmem>>, vector<8x8xf32>
    %c0_53 = arith.constant 0 : index
    %c0_54 = arith.constant 0 : index
    %114 = vector.load %arg7[%c0_53, %c0_54] : memref<8x8xf32, #tpu.memory_space<vmem>>, vector<8x8xf32>
    %115 = arith.index_cast %c0_i32 : i32 to index
    %c0_55 = arith.constant 0 : index
    %116 = vector.load %arg6[%115, %c0_55] : memref<8x8xf32, #tpu.memory_space<vmem>>, vector<1x8xf32>
    %117 = arith.index_cast %c0_i32 : i32 to index
    %c0_56 = arith.constant 0 : index
    %118 = vector.load %arg7[%117, %c0_56] : memref<8x8xf32, #tpu.memory_space<vmem>>, vector<1x8xf32>
    %cst_57 = arith.constant dense<0.000000e+00> : vector<8x1xf32>
    %119 = tpu.matmul %113, %96, %cst_57 {dimension_numbers = #tpu.dot_dimension_numbers<[1], [0], [0], [1], [0, 0, 1, 1], [], []>} : vector<8x8xf32>, vector<8x1xf32>, vector<8x1xf32> -> vector<8x1xf32>
    %cst_58 = arith.constant dense<0.000000e+00> : vector<8x1xf32>
    %120 = tpu.matmul %114, %96, %cst_58 {dimension_numbers = #tpu.dot_dimension_numbers<[1], [0], [0], [1], [0, 0, 1, 1], [], []>} : vector<8x8xf32>, vector<8x1xf32>, vector<8x1xf32> -> vector<8x1xf32>
    %121 = vector.broadcast %119 : vector<8x1xf32> to vector<8x8xf32>
    %122 = vector.broadcast %116 : vector<1x8xf32> to vector<8x8xf32>
    %123 = arith.addf %121, %122 : vector<8x8xf32>
    %124 = arith.subf %123, %113 : vector<8x8xf32>
    %125 = vector.broadcast %120 : vector<8x1xf32> to vector<8x8xf32>
    %126 = vector.broadcast %118 : vector<1x8xf32> to vector<8x8xf32>
    %127 = arith.mulf %125, %126 : vector<8x8xf32>
    %128 = arith.mulf %124, %127 : vector<8x8xf32>
    %129 = arith.subf %112, %128 : vector<8x8xf32>
    %130 = math.absf %129 : vector<8x8xf32>
    %cst_59 = arith.constant 1.000000e+00 : f32
    %131 = vector.broadcast %cst_59 : f32 to vector<8x8xf32>
    %132 = arith.cmpf olt, %130, %131 : vector<8x8xf32>
    %cst_60 = arith.constant 5.000000e-01 : f32
    %133 = vector.broadcast %cst_60 : f32 to vector<8x8xf32>
    %134 = arith.mulf %133, %129 : vector<8x8xf32>
    %135 = arith.mulf %134, %129 : vector<8x8xf32>
    %cst_61 = arith.constant 5.000000e-01 : f32
    %136 = vector.broadcast %cst_61 : f32 to vector<8x8xf32>
    %137 = arith.subf %130, %136 : vector<8x8xf32>
    %138 = arith.select %132, %135, %137 : vector<8x8xi1>, vector<8x8xf32>
    %cst_62 = arith.constant dense<0.000000e+00> : vector<8xf32>
    %139 = vector.multi_reduction <add>, %138, %cst_62 [1] : vector<8x8xf32> to vector<8xf32>
    %140 = vector.shape_cast %139 : vector<8xf32> to vector<8x1xf32>
    %cst_63 = arith.constant dense<0.000000e+00> : vector<1xf32>
    %141 = vector.multi_reduction <add>, %140, %cst_63 [0] : vector<8x1xf32> to vector<1xf32>
    %142 = vector.shape_cast %141 : vector<1xf32> to vector<1x1xf32>
    %143 = arith.addf %92, %142 : vector<1x1xf32>
    %c1_i32 = arith.constant 1 : i32
    %144 = vector.broadcast %c1_i32 : i32 to vector<8x1xi32>
    %145 = arith.cmpi eq, %91, %144 : vector<8x1xi32>
    %146 = arith.extui %145 : vector<8x1xi1> to vector<8x1xi32>
    %147 = arith.sitofp %146 : vector<8x1xi32> to vector<8x1xf32>
    %c0_64 = arith.constant 0 : index
    %c0_65 = arith.constant 0 : index
    %148 = vector.load %arg4[%c0_64, %c0_65] : memref<8x8xf32, #tpu.memory_space<vmem>>, vector<8x8xf32>
    %c0_66 = arith.constant 0 : index
    %c0_67 = arith.constant 0 : index
    %149 = vector.load %arg5[%c0_66, %c0_67] : memref<8x8xf32, #tpu.memory_space<vmem>>, vector<8x8xf32>
    %150 = arith.index_cast %c1_i32 : i32 to index
    %c0_68 = arith.constant 0 : index
    %151 = vector.load %arg4[%150, %c0_68] : memref<8x8xf32, #tpu.memory_space<vmem>>, vector<1x8xf32>
    %152 = arith.index_cast %c1_i32 : i32 to index
    %c0_69 = arith.constant 0 : index
    %153 = vector.load %arg5[%152, %c0_69] : memref<8x8xf32, #tpu.memory_space<vmem>>, vector<1x8xf32>
    %cst_70 = arith.constant dense<0.000000e+00> : vector<8x1xf32>
    %154 = tpu.matmul %148, %147, %cst_70 {dimension_numbers = #tpu.dot_dimension_numbers<[1], [0], [0], [1], [0, 0, 1, 1], [], []>} : vector<8x8xf32>, vector<8x1xf32>, vector<8x1xf32> -> vector<8x1xf32>
    %cst_71 = arith.constant dense<0.000000e+00> : vector<8x1xf32>
    %155 = tpu.matmul %149, %147, %cst_71 {dimension_numbers = #tpu.dot_dimension_numbers<[1], [0], [0], [1], [0, 0, 1, 1], [], []>} : vector<8x8xf32>, vector<8x1xf32>, vector<8x1xf32> -> vector<8x1xf32>
    %156 = vector.broadcast %154 : vector<8x1xf32> to vector<8x8xf32>
    %157 = vector.broadcast %151 : vector<1x8xf32> to vector<8x8xf32>
    %158 = arith.addf %156, %157 : vector<8x8xf32>
    %159 = arith.subf %158, %148 : vector<8x8xf32>
    %160 = vector.broadcast %155 : vector<8x1xf32> to vector<8x8xf32>
    %161 = vector.broadcast %153 : vector<1x8xf32> to vector<8x8xf32>
    %162 = arith.mulf %160, %161 : vector<8x8xf32>
    %163 = arith.mulf %159, %162 : vector<8x8xf32>
    %c0_72 = arith.constant 0 : index
    %c0_73 = arith.constant 0 : index
    %164 = vector.load %arg6[%c0_72, %c0_73] : memref<8x8xf32, #tpu.memory_space<vmem>>, vector<8x8xf32>
    %c0_74 = arith.constant 0 : index
    %c0_75 = arith.constant 0 : index
    %165 = vector.load %arg7[%c0_74, %c0_75] : memref<8x8xf32, #tpu.memory_space<vmem>>, vector<8x8xf32>
    %166 = arith.index_cast %c1_i32 : i32 to index
    %c0_76 = arith.constant 0 : index
    %167 = vector.load %arg6[%166, %c0_76] : memref<8x8xf32, #tpu.memory_space<vmem>>, vector<1x8xf32>
    %168 = arith.index_cast %c1_i32 : i32 to index
    %c0_77 = arith.constant 0 : index
    %169 = vector.load %arg7[%168, %c0_77] : memref<8x8xf32, #tpu.memory_space<vmem>>, vector<1x8xf32>
    %cst_78 = arith.constant dense<0.000000e+00> : vector<8x1xf32>
    %170 = tpu.matmul %164, %147, %cst_78 {dimension_numbers = #tpu.dot_dimension_numbers<[1], [0], [0], [1], [0, 0, 1, 1], [], []>} : vector<8x8xf32>, vector<8x1xf32>, vector<8x1xf32> -> vector<8x1xf32>
    %cst_79 = arith.constant dense<0.000000e+00> : vector<8x1xf32>
    %171 = tpu.matmul %165, %147, %cst_79 {dimension_numbers = #tpu.dot_dimension_numbers<[1], [0], [0], [1], [0, 0, 1, 1], [], []>} : vector<8x8xf32>, vector<8x1xf32>, vector<8x1xf32> -> vector<8x1xf32>
    %172 = vector.broadcast %170 : vector<8x1xf32> to vector<8x8xf32>
    %173 = vector.broadcast %167 : vector<1x8xf32> to vector<8x8xf32>
    %174 = arith.addf %172, %173 : vector<8x8xf32>
    %175 = arith.subf %174, %164 : vector<8x8xf32>
    %176 = vector.broadcast %171 : vector<8x1xf32> to vector<8x8xf32>
    %177 = vector.broadcast %169 : vector<1x8xf32> to vector<8x8xf32>
    %178 = arith.mulf %176, %177 : vector<8x8xf32>
    %179 = arith.mulf %175, %178 : vector<8x8xf32>
    %180 = arith.subf %163, %179 : vector<8x8xf32>
    %181 = math.absf %180 : vector<8x8xf32>
    %cst_80 = arith.constant 1.000000e+00 : f32
    %182 = vector.broadcast %cst_80 : f32 to vector<8x8xf32>
    %183 = arith.cmpf olt, %181, %182 : vector<8x8xf32>
    %cst_81 = arith.constant 5.000000e-01 : f32
    %184 = vector.broadcast %cst_81 : f32 to vector<8x8xf32>
    %185 = arith.mulf %184, %180 : vector<8x8xf32>
    %186 = arith.mulf %185, %180 : vector<8x8xf32>
    %cst_82 = arith.constant 5.000000e-01 : f32
    %187 = vector.broadcast %cst_82 : f32 to vector<8x8xf32>
    %188 = arith.subf %181, %187 : vector<8x8xf32>
    %189 = arith.select %183, %186, %188 : vector<8x8xi1>, vector<8x8xf32>
    %cst_83 = arith.constant dense<0.000000e+00> : vector<8xf32>
    %190 = vector.multi_reduction <add>, %189, %cst_83 [1] : vector<8x8xf32> to vector<8xf32>
    %191 = vector.shape_cast %190 : vector<8xf32> to vector<8x1xf32>
    %cst_84 = arith.constant dense<0.000000e+00> : vector<1xf32>
    %192 = vector.multi_reduction <add>, %191, %cst_84 [0] : vector<8x1xf32> to vector<1xf32>
    %193 = vector.shape_cast %192 : vector<1xf32> to vector<1x1xf32>
    %194 = arith.addf %143, %193 : vector<1x1xf32>
    %c2_i32 = arith.constant 2 : i32
    %195 = vector.broadcast %c2_i32 : i32 to vector<8x1xi32>
    %196 = arith.cmpi eq, %91, %195 : vector<8x1xi32>
    %197 = arith.extui %196 : vector<8x1xi1> to vector<8x1xi32>
    %198 = arith.sitofp %197 : vector<8x1xi32> to vector<8x1xf32>
    %c0_85 = arith.constant 0 : index
    %c0_86 = arith.constant 0 : index
    %199 = vector.load %arg4[%c0_85, %c0_86] : memref<8x8xf32, #tpu.memory_space<vmem>>, vector<8x8xf32>
    %c0_87 = arith.constant 0 : index
    %c0_88 = arith.constant 0 : index
    %200 = vector.load %arg5[%c0_87, %c0_88] : memref<8x8xf32, #tpu.memory_space<vmem>>, vector<8x8xf32>
    %201 = arith.index_cast %c2_i32 : i32 to index
    %c0_89 = arith.constant 0 : index
    %202 = vector.load %arg4[%201, %c0_89] : memref<8x8xf32, #tpu.memory_space<vmem>>, vector<1x8xf32>
    %203 = arith.index_cast %c2_i32 : i32 to index
    %c0_90 = arith.constant 0 : index
    %204 = vector.load %arg5[%203, %c0_90] : memref<8x8xf32, #tpu.memory_space<vmem>>, vector<1x8xf32>
    %cst_91 = arith.constant dense<0.000000e+00> : vector<8x1xf32>
    %205 = tpu.matmul %199, %198, %cst_91 {dimension_numbers = #tpu.dot_dimension_numbers<[1], [0], [0], [1], [0, 0, 1, 1], [], []>} : vector<8x8xf32>, vector<8x1xf32>, vector<8x1xf32> -> vector<8x1xf32>
    %cst_92 = arith.constant dense<0.000000e+00> : vector<8x1xf32>
    %206 = tpu.matmul %200, %198, %cst_92 {dimension_numbers = #tpu.dot_dimension_numbers<[1], [0], [0], [1], [0, 0, 1, 1], [], []>} : vector<8x8xf32>, vector<8x1xf32>, vector<8x1xf32> -> vector<8x1xf32>
    %207 = vector.broadcast %205 : vector<8x1xf32> to vector<8x8xf32>
    %208 = vector.broadcast %202 : vector<1x8xf32> to vector<8x8xf32>
    %209 = arith.addf %207, %208 : vector<8x8xf32>
    %210 = arith.subf %209, %199 : vector<8x8xf32>
    %211 = vector.broadcast %206 : vector<8x1xf32> to vector<8x8xf32>
    %212 = vector.broadcast %204 : vector<1x8xf32> to vector<8x8xf32>
    %213 = arith.mulf %211, %212 : vector<8x8xf32>
    %214 = arith.mulf %210, %213 : vector<8x8xf32>
    %c0_93 = arith.constant 0 : index
    %c0_94 = arith.constant 0 : index
    %215 = vector.load %arg6[%c0_93, %c0_94] : memref<8x8xf32, #tpu.memory_space<vmem>>, vector<8x8xf32>
    %c0_95 = arith.constant 0 : index
    %c0_96 = arith.constant 0 : index
    %216 = vector.load %arg7[%c0_95, %c0_96] : memref<8x8xf32, #tpu.memory_space<vmem>>, vector<8x8xf32>
    %217 = arith.index_cast %c2_i32 : i32 to index
    %c0_97 = arith.constant 0 : index
    %218 = vector.load %arg6[%217, %c0_97] : memref<8x8xf32, #tpu.memory_space<vmem>>, vector<1x8xf32>
    %219 = arith.index_cast %c2_i32 : i32 to index
    %c0_98 = arith.constant 0 : index
    %220 = vector.load %arg7[%219, %c0_98] : memref<8x8xf32, #tpu.memory_space<vmem>>, vector<1x8xf32>
    %cst_99 = arith.constant dense<0.000000e+00> : vector<8x1xf32>
    %221 = tpu.matmul %215, %198, %cst_99 {dimension_numbers = #tpu.dot_dimension_numbers<[1], [0], [0], [1], [0, 0, 1, 1], [], []>} : vector<8x8xf32>, vector<8x1xf32>, vector<8x1xf32> -> vector<8x1xf32>
    %cst_100 = arith.constant dense<0.000000e+00> : vector<8x1xf32>
    %222 = tpu.matmul %216, %198, %cst_100 {dimension_numbers = #tpu.dot_dimension_numbers<[1], [0], [0], [1], [0, 0, 1, 1], [], []>} : vector<8x8xf32>, vector<8x1xf32>, vector<8x1xf32> -> vector<8x1xf32>
    %223 = vector.broadcast %221 : vector<8x1xf32> to vector<8x8xf32>
    %224 = vector.broadcast %218 : vector<1x8xf32> to vector<8x8xf32>
    %225 = arith.addf %223, %224 : vector<8x8xf32>
    %226 = arith.subf %225, %215 : vector<8x8xf32>
    %227 = vector.broadcast %222 : vector<8x1xf32> to vector<8x8xf32>
    %228 = vector.broadcast %220 : vector<1x8xf32> to vector<8x8xf32>
    %229 = arith.mulf %227, %228 : vector<8x8xf32>
    %230 = arith.mulf %226, %229 : vector<8x8xf32>
    %231 = arith.subf %214, %230 : vector<8x8xf32>
    %232 = math.absf %231 : vector<8x8xf32>
    %cst_101 = arith.constant 1.000000e+00 : f32
    %233 = vector.broadcast %cst_101 : f32 to vector<8x8xf32>
    %234 = arith.cmpf olt, %232, %233 : vector<8x8xf32>
    %cst_102 = arith.constant 5.000000e-01 : f32
    %235 = vector.broadcast %cst_102 : f32 to vector<8x8xf32>
    %236 = arith.mulf %235, %231 : vector<8x8xf32>
    %237 = arith.mulf %236, %231 : vector<8x8xf32>
    %cst_103 = arith.constant 5.000000e-01 : f32
    %238 = vector.broadcast %cst_103 : f32 to vector<8x8xf32>
    %239 = arith.subf %232, %238 : vector<8x8xf32>
    %240 = arith.select %234, %237, %239 : vector<8x8xi1>, vector<8x8xf32>
    %cst_104 = arith.constant dense<0.000000e+00> : vector<8xf32>
    %241 = vector.multi_reduction <add>, %240, %cst_104 [1] : vector<8x8xf32> to vector<8xf32>
    %242 = vector.shape_cast %241 : vector<8xf32> to vector<8x1xf32>
    %cst_105 = arith.constant dense<0.000000e+00> : vector<1xf32>
    %243 = vector.multi_reduction <add>, %242, %cst_105 [0] : vector<8x1xf32> to vector<1xf32>
    %244 = vector.shape_cast %243 : vector<1xf32> to vector<1x1xf32>
    %245 = arith.addf %194, %244 : vector<1x1xf32>
    %c3_i32 = arith.constant 3 : i32
    %246 = vector.broadcast %c3_i32 : i32 to vector<8x1xi32>
    %247 = arith.cmpi eq, %91, %246 : vector<8x1xi32>
    %248 = arith.extui %247 : vector<8x1xi1> to vector<8x1xi32>
    %249 = arith.sitofp %248 : vector<8x1xi32> to vector<8x1xf32>
    %c0_106 = arith.constant 0 : index
    %c0_107 = arith.constant 0 : index
    %250 = vector.load %arg4[%c0_106, %c0_107] : memref<8x8xf32, #tpu.memory_space<vmem>>, vector<8x8xf32>
    %c0_108 = arith.constant 0 : index
    %c0_109 = arith.constant 0 : index
    %251 = vector.load %arg5[%c0_108, %c0_109] : memref<8x8xf32, #tpu.memory_space<vmem>>, vector<8x8xf32>
    %252 = arith.index_cast %c3_i32 : i32 to index
    %c0_110 = arith.constant 0 : index
    %253 = vector.load %arg4[%252, %c0_110] : memref<8x8xf32, #tpu.memory_space<vmem>>, vector<1x8xf32>
    %254 = arith.index_cast %c3_i32 : i32 to index
    %c0_111 = arith.constant 0 : index
    %255 = vector.load %arg5[%254, %c0_111] : memref<8x8xf32, #tpu.memory_space<vmem>>, vector<1x8xf32>
    %cst_112 = arith.constant dense<0.000000e+00> : vector<8x1xf32>
    %256 = tpu.matmul %250, %249, %cst_112 {dimension_numbers = #tpu.dot_dimension_numbers<[1], [0], [0], [1], [0, 0, 1, 1], [], []>} : vector<8x8xf32>, vector<8x1xf32>, vector<8x1xf32> -> vector<8x1xf32>
    %cst_113 = arith.constant dense<0.000000e+00> : vector<8x1xf32>
    %257 = tpu.matmul %251, %249, %cst_113 {dimension_numbers = #tpu.dot_dimension_numbers<[1], [0], [0], [1], [0, 0, 1, 1], [], []>} : vector<8x8xf32>, vector<8x1xf32>, vector<8x1xf32> -> vector<8x1xf32>
    %258 = vector.broadcast %256 : vector<8x1xf32> to vector<8x8xf32>
    %259 = vector.broadcast %253 : vector<1x8xf32> to vector<8x8xf32>
    %260 = arith.addf %258, %259 : vector<8x8xf32>
    %261 = arith.subf %260, %250 : vector<8x8xf32>
    %262 = vector.broadcast %257 : vector<8x1xf32> to vector<8x8xf32>
    %263 = vector.broadcast %255 : vector<1x8xf32> to vector<8x8xf32>
    %264 = arith.mulf %262, %263 : vector<8x8xf32>
    %265 = arith.mulf %261, %264 : vector<8x8xf32>
    %c0_114 = arith.constant 0 : index
    %c0_115 = arith.constant 0 : index
    %266 = vector.load %arg6[%c0_114, %c0_115] : memref<8x8xf32, #tpu.memory_space<vmem>>, vector<8x8xf32>
    %c0_116 = arith.constant 0 : index
    %c0_117 = arith.constant 0 : index
    %267 = vector.load %arg7[%c0_116, %c0_117] : memref<8x8xf32, #tpu.memory_space<vmem>>, vector<8x8xf32>
    %268 = arith.index_cast %c3_i32 : i32 to index
    %c0_118 = arith.constant 0 : index
    %269 = vector.load %arg6[%268, %c0_118] : memref<8x8xf32, #tpu.memory_space<vmem>>, vector<1x8xf32>
    %270 = arith.index_cast %c3_i32 : i32 to index
    %c0_119 = arith.constant 0 : index
    %271 = vector.load %arg7[%270, %c0_119] : memref<8x8xf32, #tpu.memory_space<vmem>>, vector<1x8xf32>
    %cst_120 = arith.constant dense<0.000000e+00> : vector<8x1xf32>
    %272 = tpu.matmul %266, %249, %cst_120 {dimension_numbers = #tpu.dot_dimension_numbers<[1], [0], [0], [1], [0, 0, 1, 1], [], []>} : vector<8x8xf32>, vector<8x1xf32>, vector<8x1xf32> -> vector<8x1xf32>
    %cst_121 = arith.constant dense<0.000000e+00> : vector<8x1xf32>
    %273 = tpu.matmul %267, %249, %cst_121 {dimension_numbers = #tpu.dot_dimension_numbers<[1], [0], [0], [1], [0, 0, 1, 1], [], []>} : vector<8x8xf32>, vector<8x1xf32>, vector<8x1xf32> -> vector<8x1xf32>
    %274 = vector.broadcast %272 : vector<8x1xf32> to vector<8x8xf32>
    %275 = vector.broadcast %269 : vector<1x8xf32> to vector<8x8xf32>
    %276 = arith.addf %274, %275 : vector<8x8xf32>
    %277 = arith.subf %276, %266 : vector<8x8xf32>
    %278 = vector.broadcast %273 : vector<8x1xf32> to vector<8x8xf32>
    %279 = vector.broadcast %271 : vector<1x8xf32> to vector<8x8xf32>
    %280 = arith.mulf %278, %279 : vector<8x8xf32>
    %281 = arith.mulf %277, %280 : vector<8x8xf32>
    %282 = arith.subf %265, %281 : vector<8x8xf32>
    %283 = math.absf %282 : vector<8x8xf32>
    %cst_122 = arith.constant 1.000000e+00 : f32
    %284 = vector.broadcast %cst_122 : f32 to vector<8x8xf32>
    %285 = arith.cmpf olt, %283, %284 : vector<8x8xf32>
    %cst_123 = arith.constant 5.000000e-01 : f32
    %286 = vector.broadcast %cst_123 : f32 to vector<8x8xf32>
    %287 = arith.mulf %286, %282 : vector<8x8xf32>
    %288 = arith.mulf %287, %282 : vector<8x8xf32>
    %cst_124 = arith.constant 5.000000e-01 : f32
    %289 = vector.broadcast %cst_124 : f32 to vector<8x8xf32>
    %290 = arith.subf %283, %289 : vector<8x8xf32>
    %291 = arith.select %285, %288, %290 : vector<8x8xi1>, vector<8x8xf32>
    %cst_125 = arith.constant dense<0.000000e+00> : vector<8xf32>
    %292 = vector.multi_reduction <add>, %291, %cst_125 [1] : vector<8x8xf32> to vector<8xf32>
    %293 = vector.shape_cast %292 : vector<8xf32> to vector<8x1xf32>
    %cst_126 = arith.constant dense<0.000000e+00> : vector<1xf32>
    %294 = vector.multi_reduction <add>, %293, %cst_126 [0] : vector<8x1xf32> to vector<1xf32>
    %295 = vector.shape_cast %294 : vector<1xf32> to vector<1x1xf32>
    %296 = arith.addf %245, %295 : vector<1x1xf32>
    %c4_i32 = arith.constant 4 : i32
    %297 = vector.broadcast %c4_i32 : i32 to vector<8x1xi32>
    %298 = arith.cmpi eq, %91, %297 : vector<8x1xi32>
    %299 = arith.extui %298 : vector<8x1xi1> to vector<8x1xi32>
    %300 = arith.sitofp %299 : vector<8x1xi32> to vector<8x1xf32>
    %c0_127 = arith.constant 0 : index
    %c0_128 = arith.constant 0 : index
    %301 = vector.load %arg4[%c0_127, %c0_128] : memref<8x8xf32, #tpu.memory_space<vmem>>, vector<8x8xf32>
    %c0_129 = arith.constant 0 : index
    %c0_130 = arith.constant 0 : index
    %302 = vector.load %arg5[%c0_129, %c0_130] : memref<8x8xf32, #tpu.memory_space<vmem>>, vector<8x8xf32>
    %303 = arith.index_cast %c4_i32 : i32 to index
    %c0_131 = arith.constant 0 : index
    %304 = vector.load %arg4[%303, %c0_131] : memref<8x8xf32, #tpu.memory_space<vmem>>, vector<1x8xf32>
    %305 = arith.index_cast %c4_i32 : i32 to index
    %c0_132 = arith.constant 0 : index
    %306 = vector.load %arg5[%305, %c0_132] : memref<8x8xf32, #tpu.memory_space<vmem>>, vector<1x8xf32>
    %cst_133 = arith.constant dense<0.000000e+00> : vector<8x1xf32>
    %307 = tpu.matmul %301, %300, %cst_133 {dimension_numbers = #tpu.dot_dimension_numbers<[1], [0], [0], [1], [0, 0, 1, 1], [], []>} : vector<8x8xf32>, vector<8x1xf32>, vector<8x1xf32> -> vector<8x1xf32>
    %cst_134 = arith.constant dense<0.000000e+00> : vector<8x1xf32>
    %308 = tpu.matmul %302, %300, %cst_134 {dimension_numbers = #tpu.dot_dimension_numbers<[1], [0], [0], [1], [0, 0, 1, 1], [], []>} : vector<8x8xf32>, vector<8x1xf32>, vector<8x1xf32> -> vector<8x1xf32>
    %309 = vector.broadcast %307 : vector<8x1xf32> to vector<8x8xf32>
    %310 = vector.broadcast %304 : vector<1x8xf32> to vector<8x8xf32>
    %311 = arith.addf %309, %310 : vector<8x8xf32>
    %312 = arith.subf %311, %301 : vector<8x8xf32>
    %313 = vector.broadcast %308 : vector<8x1xf32> to vector<8x8xf32>
    %314 = vector.broadcast %306 : vector<1x8xf32> to vector<8x8xf32>
    %315 = arith.mulf %313, %314 : vector<8x8xf32>
    %316 = arith.mulf %312, %315 : vector<8x8xf32>
    %c0_135 = arith.constant 0 : index
    %c0_136 = arith.constant 0 : index
    %317 = vector.load %arg6[%c0_135, %c0_136] : memref<8x8xf32, #tpu.memory_space<vmem>>, vector<8x8xf32>
    %c0_137 = arith.constant 0 : index
    %c0_138 = arith.constant 0 : index
    %318 = vector.load %arg7[%c0_137, %c0_138] : memref<8x8xf32, #tpu.memory_space<vmem>>, vector<8x8xf32>
    %319 = arith.index_cast %c4_i32 : i32 to index
    %c0_139 = arith.constant 0 : index
    %320 = vector.load %arg6[%319, %c0_139] : memref<8x8xf32, #tpu.memory_space<vmem>>, vector<1x8xf32>
    %321 = arith.index_cast %c4_i32 : i32 to index
    %c0_140 = arith.constant 0 : index
    %322 = vector.load %arg7[%321, %c0_140] : memref<8x8xf32, #tpu.memory_space<vmem>>, vector<1x8xf32>
    %cst_141 = arith.constant dense<0.000000e+00> : vector<8x1xf32>
    %323 = tpu.matmul %317, %300, %cst_141 {dimension_numbers = #tpu.dot_dimension_numbers<[1], [0], [0], [1], [0, 0, 1, 1], [], []>} : vector<8x8xf32>, vector<8x1xf32>, vector<8x1xf32> -> vector<8x1xf32>
    %cst_142 = arith.constant dense<0.000000e+00> : vector<8x1xf32>
    %324 = tpu.matmul %318, %300, %cst_142 {dimension_numbers = #tpu.dot_dimension_numbers<[1], [0], [0], [1], [0, 0, 1, 1], [], []>} : vector<8x8xf32>, vector<8x1xf32>, vector<8x1xf32> -> vector<8x1xf32>
    %325 = vector.broadcast %323 : vector<8x1xf32> to vector<8x8xf32>
    %326 = vector.broadcast %320 : vector<1x8xf32> to vector<8x8xf32>
    %327 = arith.addf %325, %326 : vector<8x8xf32>
    %328 = arith.subf %327, %317 : vector<8x8xf32>
    %329 = vector.broadcast %324 : vector<8x1xf32> to vector<8x8xf32>
    %330 = vector.broadcast %322 : vector<1x8xf32> to vector<8x8xf32>
    %331 = arith.mulf %329, %330 : vector<8x8xf32>
    %332 = arith.mulf %328, %331 : vector<8x8xf32>
    %333 = arith.subf %316, %332 : vector<8x8xf32>
    %334 = math.absf %333 : vector<8x8xf32>
    %cst_143 = arith.constant 1.000000e+00 : f32
    %335 = vector.broadcast %cst_143 : f32 to vector<8x8xf32>
    %336 = arith.cmpf olt, %334, %335 : vector<8x8xf32>
    %cst_144 = arith.constant 5.000000e-01 : f32
    %337 = vector.broadcast %cst_144 : f32 to vector<8x8xf32>
    %338 = arith.mulf %337, %333 : vector<8x8xf32>
    %339 = arith.mulf %338, %333 : vector<8x8xf32>
    %cst_145 = arith.constant 5.000000e-01 : f32
    %340 = vector.broadcast %cst_145 : f32 to vector<8x8xf32>
    %341 = arith.subf %334, %340 : vector<8x8xf32>
    %342 = arith.select %336, %339, %341 : vector<8x8xi1>, vector<8x8xf32>
    %cst_146 = arith.constant dense<0.000000e+00> : vector<8xf32>
    %343 = vector.multi_reduction <add>, %342, %cst_146 [1] : vector<8x8xf32> to vector<8xf32>
    %344 = vector.shape_cast %343 : vector<8xf32> to vector<8x1xf32>
    %cst_147 = arith.constant dense<0.000000e+00> : vector<1xf32>
    %345 = vector.multi_reduction <add>, %344, %cst_147 [0] : vector<8x1xf32> to vector<1xf32>
    %346 = vector.shape_cast %345 : vector<1xf32> to vector<1x1xf32>
    %347 = arith.addf %296, %346 : vector<1x1xf32>
    %c5_i32 = arith.constant 5 : i32
    %348 = vector.broadcast %c5_i32 : i32 to vector<8x1xi32>
    %349 = arith.cmpi eq, %91, %348 : vector<8x1xi32>
    %350 = arith.extui %349 : vector<8x1xi1> to vector<8x1xi32>
    %351 = arith.sitofp %350 : vector<8x1xi32> to vector<8x1xf32>
    %c0_148 = arith.constant 0 : index
    %c0_149 = arith.constant 0 : index
    %352 = vector.load %arg4[%c0_148, %c0_149] : memref<8x8xf32, #tpu.memory_space<vmem>>, vector<8x8xf32>
    %c0_150 = arith.constant 0 : index
    %c0_151 = arith.constant 0 : index
    %353 = vector.load %arg5[%c0_150, %c0_151] : memref<8x8xf32, #tpu.memory_space<vmem>>, vector<8x8xf32>
    %354 = arith.index_cast %c5_i32 : i32 to index
    %c0_152 = arith.constant 0 : index
    %355 = vector.load %arg4[%354, %c0_152] : memref<8x8xf32, #tpu.memory_space<vmem>>, vector<1x8xf32>
    %356 = arith.index_cast %c5_i32 : i32 to index
    %c0_153 = arith.constant 0 : index
    %357 = vector.load %arg5[%356, %c0_153] : memref<8x8xf32, #tpu.memory_space<vmem>>, vector<1x8xf32>
    %cst_154 = arith.constant dense<0.000000e+00> : vector<8x1xf32>
    %358 = tpu.matmul %352, %351, %cst_154 {dimension_numbers = #tpu.dot_dimension_numbers<[1], [0], [0], [1], [0, 0, 1, 1], [], []>} : vector<8x8xf32>, vector<8x1xf32>, vector<8x1xf32> -> vector<8x1xf32>
    %cst_155 = arith.constant dense<0.000000e+00> : vector<8x1xf32>
    %359 = tpu.matmul %353, %351, %cst_155 {dimension_numbers = #tpu.dot_dimension_numbers<[1], [0], [0], [1], [0, 0, 1, 1], [], []>} : vector<8x8xf32>, vector<8x1xf32>, vector<8x1xf32> -> vector<8x1xf32>
    %360 = vector.broadcast %358 : vector<8x1xf32> to vector<8x8xf32>
    %361 = vector.broadcast %355 : vector<1x8xf32> to vector<8x8xf32>
    %362 = arith.addf %360, %361 : vector<8x8xf32>
    %363 = arith.subf %362, %352 : vector<8x8xf32>
    %364 = vector.broadcast %359 : vector<8x1xf32> to vector<8x8xf32>
    %365 = vector.broadcast %357 : vector<1x8xf32> to vector<8x8xf32>
    %366 = arith.mulf %364, %365 : vector<8x8xf32>
    %367 = arith.mulf %363, %366 : vector<8x8xf32>
    %c0_156 = arith.constant 0 : index
    %c0_157 = arith.constant 0 : index
    %368 = vector.load %arg6[%c0_156, %c0_157] : memref<8x8xf32, #tpu.memory_space<vmem>>, vector<8x8xf32>
    %c0_158 = arith.constant 0 : index
    %c0_159 = arith.constant 0 : index
    %369 = vector.load %arg7[%c0_158, %c0_159] : memref<8x8xf32, #tpu.memory_space<vmem>>, vector<8x8xf32>
    %370 = arith.index_cast %c5_i32 : i32 to index
    %c0_160 = arith.constant 0 : index
    %371 = vector.load %arg6[%370, %c0_160] : memref<8x8xf32, #tpu.memory_space<vmem>>, vector<1x8xf32>
    %372 = arith.index_cast %c5_i32 : i32 to index
    %c0_161 = arith.constant 0 : index
    %373 = vector.load %arg7[%372, %c0_161] : memref<8x8xf32, #tpu.memory_space<vmem>>, vector<1x8xf32>
    %cst_162 = arith.constant dense<0.000000e+00> : vector<8x1xf32>
    %374 = tpu.matmul %368, %351, %cst_162 {dimension_numbers = #tpu.dot_dimension_numbers<[1], [0], [0], [1], [0, 0, 1, 1], [], []>} : vector<8x8xf32>, vector<8x1xf32>, vector<8x1xf32> -> vector<8x1xf32>
    %cst_163 = arith.constant dense<0.000000e+00> : vector<8x1xf32>
    %375 = tpu.matmul %369, %351, %cst_163 {dimension_numbers = #tpu.dot_dimension_numbers<[1], [0], [0], [1], [0, 0, 1, 1], [], []>} : vector<8x8xf32>, vector<8x1xf32>, vector<8x1xf32> -> vector<8x1xf32>
    %376 = vector.broadcast %374 : vector<8x1xf32> to vector<8x8xf32>
    %377 = vector.broadcast %371 : vector<1x8xf32> to vector<8x8xf32>
    %378 = arith.addf %376, %377 : vector<8x8xf32>
    %379 = arith.subf %378, %368 : vector<8x8xf32>
    %380 = vector.broadcast %375 : vector<8x1xf32> to vector<8x8xf32>
    %381 = vector.broadcast %373 : vector<1x8xf32> to vector<8x8xf32>
    %382 = arith.mulf %380, %381 : vector<8x8xf32>
    %383 = arith.mulf %379, %382 : vector<8x8xf32>
    %384 = arith.subf %367, %383 : vector<8x8xf32>
    %385 = math.absf %384 : vector<8x8xf32>
    %cst_164 = arith.constant 1.000000e+00 : f32
    %386 = vector.broadcast %cst_164 : f32 to vector<8x8xf32>
    %387 = arith.cmpf olt, %385, %386 : vector<8x8xf32>
    %cst_165 = arith.constant 5.000000e-01 : f32
    %388 = vector.broadcast %cst_165 : f32 to vector<8x8xf32>
    %389 = arith.mulf %388, %384 : vector<8x8xf32>
    %390 = arith.mulf %389, %384 : vector<8x8xf32>
    %cst_166 = arith.constant 5.000000e-01 : f32
    %391 = vector.broadcast %cst_166 : f32 to vector<8x8xf32>
    %392 = arith.subf %385, %391 : vector<8x8xf32>
    %393 = arith.select %387, %390, %392 : vector<8x8xi1>, vector<8x8xf32>
    %cst_167 = arith.constant dense<0.000000e+00> : vector<8xf32>
    %394 = vector.multi_reduction <add>, %393, %cst_167 [1] : vector<8x8xf32> to vector<8xf32>
    %395 = vector.shape_cast %394 : vector<8xf32> to vector<8x1xf32>
    %cst_168 = arith.constant dense<0.000000e+00> : vector<1xf32>
    %396 = vector.multi_reduction <add>, %395, %cst_168 [0] : vector<8x1xf32> to vector<1xf32>
    %397 = vector.shape_cast %396 : vector<1xf32> to vector<1x1xf32>
    %398 = arith.addf %347, %397 : vector<1x1xf32>
    %c6_i32 = arith.constant 6 : i32
    %399 = vector.broadcast %c6_i32 : i32 to vector<8x1xi32>
    %400 = arith.cmpi eq, %91, %399 : vector<8x1xi32>
    %401 = arith.extui %400 : vector<8x1xi1> to vector<8x1xi32>
    %402 = arith.sitofp %401 : vector<8x1xi32> to vector<8x1xf32>
    %c0_169 = arith.constant 0 : index
    %c0_170 = arith.constant 0 : index
    %403 = vector.load %arg4[%c0_169, %c0_170] : memref<8x8xf32, #tpu.memory_space<vmem>>, vector<8x8xf32>
    %c0_171 = arith.constant 0 : index
    %c0_172 = arith.constant 0 : index
    %404 = vector.load %arg5[%c0_171, %c0_172] : memref<8x8xf32, #tpu.memory_space<vmem>>, vector<8x8xf32>
    %405 = arith.index_cast %c6_i32 : i32 to index
    %c0_173 = arith.constant 0 : index
    %406 = vector.load %arg4[%405, %c0_173] : memref<8x8xf32, #tpu.memory_space<vmem>>, vector<1x8xf32>
    %407 = arith.index_cast %c6_i32 : i32 to index
    %c0_174 = arith.constant 0 : index
    %408 = vector.load %arg5[%407, %c0_174] : memref<8x8xf32, #tpu.memory_space<vmem>>, vector<1x8xf32>
    %cst_175 = arith.constant dense<0.000000e+00> : vector<8x1xf32>
    %409 = tpu.matmul %403, %402, %cst_175 {dimension_numbers = #tpu.dot_dimension_numbers<[1], [0], [0], [1], [0, 0, 1, 1], [], []>} : vector<8x8xf32>, vector<8x1xf32>, vector<8x1xf32> -> vector<8x1xf32>
    %cst_176 = arith.constant dense<0.000000e+00> : vector<8x1xf32>
    %410 = tpu.matmul %404, %402, %cst_176 {dimension_numbers = #tpu.dot_dimension_numbers<[1], [0], [0], [1], [0, 0, 1, 1], [], []>} : vector<8x8xf32>, vector<8x1xf32>, vector<8x1xf32> -> vector<8x1xf32>
    %411 = vector.broadcast %409 : vector<8x1xf32> to vector<8x8xf32>
    %412 = vector.broadcast %406 : vector<1x8xf32> to vector<8x8xf32>
    %413 = arith.addf %411, %412 : vector<8x8xf32>
    %414 = arith.subf %413, %403 : vector<8x8xf32>
    %415 = vector.broadcast %410 : vector<8x1xf32> to vector<8x8xf32>
    %416 = vector.broadcast %408 : vector<1x8xf32> to vector<8x8xf32>
    %417 = arith.mulf %415, %416 : vector<8x8xf32>
    %418 = arith.mulf %414, %417 : vector<8x8xf32>
    %c0_177 = arith.constant 0 : index
    %c0_178 = arith.constant 0 : index
    %419 = vector.load %arg6[%c0_177, %c0_178] : memref<8x8xf32, #tpu.memory_space<vmem>>, vector<8x8xf32>
    %c0_179 = arith.constant 0 : index
    %c0_180 = arith.constant 0 : index
    %420 = vector.load %arg7[%c0_179, %c0_180] : memref<8x8xf32, #tpu.memory_space<vmem>>, vector<8x8xf32>
    %421 = arith.index_cast %c6_i32 : i32 to index
    %c0_181 = arith.constant 0 : index
    %422 = vector.load %arg6[%421, %c0_181] : memref<8x8xf32, #tpu.memory_space<vmem>>, vector<1x8xf32>
    %423 = arith.index_cast %c6_i32 : i32 to index
    %c0_182 = arith.constant 0 : index
    %424 = vector.load %arg7[%423, %c0_182] : memref<8x8xf32, #tpu.memory_space<vmem>>, vector<1x8xf32>
    %cst_183 = arith.constant dense<0.000000e+00> : vector<8x1xf32>
    %425 = tpu.matmul %419, %402, %cst_183 {dimension_numbers = #tpu.dot_dimension_numbers<[1], [0], [0], [1], [0, 0, 1, 1], [], []>} : vector<8x8xf32>, vector<8x1xf32>, vector<8x1xf32> -> vector<8x1xf32>
    %cst_184 = arith.constant dense<0.000000e+00> : vector<8x1xf32>
    %426 = tpu.matmul %420, %402, %cst_184 {dimension_numbers = #tpu.dot_dimension_numbers<[1], [0], [0], [1], [0, 0, 1, 1], [], []>} : vector<8x8xf32>, vector<8x1xf32>, vector<8x1xf32> -> vector<8x1xf32>
    %427 = vector.broadcast %425 : vector<8x1xf32> to vector<8x8xf32>
    %428 = vector.broadcast %422 : vector<1x8xf32> to vector<8x8xf32>
    %429 = arith.addf %427, %428 : vector<8x8xf32>
    %430 = arith.subf %429, %419 : vector<8x8xf32>
    %431 = vector.broadcast %426 : vector<8x1xf32> to vector<8x8xf32>
    %432 = vector.broadcast %424 : vector<1x8xf32> to vector<8x8xf32>
    %433 = arith.mulf %431, %432 : vector<8x8xf32>
    %434 = arith.mulf %430, %433 : vector<8x8xf32>
    %435 = arith.subf %418, %434 : vector<8x8xf32>
    %436 = math.absf %435 : vector<8x8xf32>
    %cst_185 = arith.constant 1.000000e+00 : f32
    %437 = vector.broadcast %cst_185 : f32 to vector<8x8xf32>
    %438 = arith.cmpf olt, %436, %437 : vector<8x8xf32>
    %cst_186 = arith.constant 5.000000e-01 : f32
    %439 = vector.broadcast %cst_186 : f32 to vector<8x8xf32>
    %440 = arith.mulf %439, %435 : vector<8x8xf32>
    %441 = arith.mulf %440, %435 : vector<8x8xf32>
    %cst_187 = arith.constant 5.000000e-01 : f32
    %442 = vector.broadcast %cst_187 : f32 to vector<8x8xf32>
    %443 = arith.subf %436, %442 : vector<8x8xf32>
    %444 = arith.select %438, %441, %443 : vector<8x8xi1>, vector<8x8xf32>
    %cst_188 = arith.constant dense<0.000000e+00> : vector<8xf32>
    %445 = vector.multi_reduction <add>, %444, %cst_188 [1] : vector<8x8xf32> to vector<8xf32>
    %446 = vector.shape_cast %445 : vector<8xf32> to vector<8x1xf32>
    %cst_189 = arith.constant dense<0.000000e+00> : vector<1xf32>
    %447 = vector.multi_reduction <add>, %446, %cst_189 [0] : vector<8x1xf32> to vector<1xf32>
    %448 = vector.shape_cast %447 : vector<1xf32> to vector<1x1xf32>
    %449 = arith.addf %398, %448 : vector<1x1xf32>
    %c7_i32 = arith.constant 7 : i32
    %450 = vector.broadcast %c7_i32 : i32 to vector<8x1xi32>
    %451 = arith.cmpi eq, %91, %450 : vector<8x1xi32>
    %452 = arith.extui %451 : vector<8x1xi1> to vector<8x1xi32>
    %453 = arith.sitofp %452 : vector<8x1xi32> to vector<8x1xf32>
    %c0_190 = arith.constant 0 : index
    %c0_191 = arith.constant 0 : index
    %454 = vector.load %arg4[%c0_190, %c0_191] : memref<8x8xf32, #tpu.memory_space<vmem>>, vector<8x8xf32>
    %c0_192 = arith.constant 0 : index
    %c0_193 = arith.constant 0 : index
    %455 = vector.load %arg5[%c0_192, %c0_193] : memref<8x8xf32, #tpu.memory_space<vmem>>, vector<8x8xf32>
    %456 = arith.index_cast %c7_i32 : i32 to index
    %c0_194 = arith.constant 0 : index
    %457 = vector.load %arg4[%456, %c0_194] : memref<8x8xf32, #tpu.memory_space<vmem>>, vector<1x8xf32>
    %458 = arith.index_cast %c7_i32 : i32 to index
    %c0_195 = arith.constant 0 : index
    %459 = vector.load %arg5[%458, %c0_195] : memref<8x8xf32, #tpu.memory_space<vmem>>, vector<1x8xf32>
    %cst_196 = arith.constant dense<0.000000e+00> : vector<8x1xf32>
    %460 = tpu.matmul %454, %453, %cst_196 {dimension_numbers = #tpu.dot_dimension_numbers<[1], [0], [0], [1], [0, 0, 1, 1], [], []>} : vector<8x8xf32>, vector<8x1xf32>, vector<8x1xf32> -> vector<8x1xf32>
    %cst_197 = arith.constant dense<0.000000e+00> : vector<8x1xf32>
    %461 = tpu.matmul %455, %453, %cst_197 {dimension_numbers = #tpu.dot_dimension_numbers<[1], [0], [0], [1], [0, 0, 1, 1], [], []>} : vector<8x8xf32>, vector<8x1xf32>, vector<8x1xf32> -> vector<8x1xf32>
    %462 = vector.broadcast %460 : vector<8x1xf32> to vector<8x8xf32>
    %463 = vector.broadcast %457 : vector<1x8xf32> to vector<8x8xf32>
    %464 = arith.addf %462, %463 : vector<8x8xf32>
    %465 = arith.subf %464, %454 : vector<8x8xf32>
    %466 = vector.broadcast %461 : vector<8x1xf32> to vector<8x8xf32>
    %467 = vector.broadcast %459 : vector<1x8xf32> to vector<8x8xf32>
    %468 = arith.mulf %466, %467 : vector<8x8xf32>
    %469 = arith.mulf %465, %468 : vector<8x8xf32>
    %c0_198 = arith.constant 0 : index
    %c0_199 = arith.constant 0 : index
    %470 = vector.load %arg6[%c0_198, %c0_199] : memref<8x8xf32, #tpu.memory_space<vmem>>, vector<8x8xf32>
    %c0_200 = arith.constant 0 : index
    %c0_201 = arith.constant 0 : index
    %471 = vector.load %arg7[%c0_200, %c0_201] : memref<8x8xf32, #tpu.memory_space<vmem>>, vector<8x8xf32>
    %472 = arith.index_cast %c7_i32 : i32 to index
    %c0_202 = arith.constant 0 : index
    %473 = vector.load %arg6[%472, %c0_202] : memref<8x8xf32, #tpu.memory_space<vmem>>, vector<1x8xf32>
    %474 = arith.index_cast %c7_i32 : i32 to index
    %c0_203 = arith.constant 0 : index
    %475 = vector.load %arg7[%474, %c0_203] : memref<8x8xf32, #tpu.memory_space<vmem>>, vector<1x8xf32>
    %cst_204 = arith.constant dense<0.000000e+00> : vector<8x1xf32>
    %476 = tpu.matmul %470, %453, %cst_204 {dimension_numbers = #tpu.dot_dimension_numbers<[1], [0], [0], [1], [0, 0, 1, 1], [], []>} : vector<8x8xf32>, vector<8x1xf32>, vector<8x1xf32> -> vector<8x1xf32>
    %cst_205 = arith.constant dense<0.000000e+00> : vector<8x1xf32>
    %477 = tpu.matmul %471, %453, %cst_205 {dimension_numbers = #tpu.dot_dimension_numbers<[1], [0], [0], [1], [0, 0, 1, 1], [], []>} : vector<8x8xf32>, vector<8x1xf32>, vector<8x1xf32> -> vector<8x1xf32>
    %478 = vector.broadcast %476 : vector<8x1xf32> to vector<8x8xf32>
    %479 = vector.broadcast %473 : vector<1x8xf32> to vector<8x8xf32>
    %480 = arith.addf %478, %479 : vector<8x8xf32>
    %481 = arith.subf %480, %470 : vector<8x8xf32>
    %482 = vector.broadcast %477 : vector<8x1xf32> to vector<8x8xf32>
    %483 = vector.broadcast %475 : vector<1x8xf32> to vector<8x8xf32>
    %484 = arith.mulf %482, %483 : vector<8x8xf32>
    %485 = arith.mulf %481, %484 : vector<8x8xf32>
    %486 = arith.subf %469, %485 : vector<8x8xf32>
    %487 = math.absf %486 : vector<8x8xf32>
    %cst_206 = arith.constant 1.000000e+00 : f32
    %488 = vector.broadcast %cst_206 : f32 to vector<8x8xf32>
    %489 = arith.cmpf olt, %487, %488 : vector<8x8xf32>
    %cst_207 = arith.constant 5.000000e-01 : f32
    %490 = vector.broadcast %cst_207 : f32 to vector<8x8xf32>
    %491 = arith.mulf %490, %486 : vector<8x8xf32>
    %492 = arith.mulf %491, %486 : vector<8x8xf32>
    %cst_208 = arith.constant 5.000000e-01 : f32
    %493 = vector.broadcast %cst_208 : f32 to vector<8x8xf32>
    %494 = arith.subf %487, %493 : vector<8x8xf32>
    %495 = arith.select %489, %492, %494 : vector<8x8xi1>, vector<8x8xf32>
    %cst_209 = arith.constant dense<0.000000e+00> : vector<8xf32>
    %496 = vector.multi_reduction <add>, %495, %cst_209 [1] : vector<8x8xf32> to vector<8xf32>
    %497 = vector.shape_cast %496 : vector<8xf32> to vector<8x1xf32>
    %cst_210 = arith.constant dense<0.000000e+00> : vector<1xf32>
    %498 = vector.multi_reduction <add>, %497, %cst_210 [0] : vector<8x1xf32> to vector<1xf32>
    %499 = vector.shape_cast %498 : vector<1xf32> to vector<1x1xf32>
    %500 = arith.addf %449, %499 : vector<1x1xf32>
    %c8_i32 = arith.constant 8 : i32
    %cst_211 = arith.constant 5.120000e+02 : f32
    %501 = vector.broadcast %cst_211 : f32 to vector<1x1xf32>
    %502 = arith.divf %500, %501 : vector<1x1xf32>
    %cst_212 = arith.constant 2.500000e+01 : f32
    %503 = vector.broadcast %cst_212 : f32 to vector<1x1xf32>
    %504 = arith.mulf %503, %90 : vector<1x1xf32>
    %cst_213 = arith.constant 5.000000e+01 : f32
    %505 = vector.broadcast %cst_213 : f32 to vector<1x1xf32>
    %506 = arith.mulf %505, %502 : vector<1x1xf32>
    %507 = arith.addf %504, %506 : vector<1x1xf32>
    %c0_214 = arith.constant 0 : index
    %c0_215 = arith.constant 0 : index
    %508 = vector.load %arg3[%c0_214, %c0_215] : memref<1x1xf32, #tpu.memory_space<vmem>>, vector<1x1xf32>
    tpu.vector_store %arg3[%c0_214, %c0_215], %507 {strides = array<i32>} : memref<1x1xf32, #tpu.memory_space<vmem>>, vector<1x1xf32>,
    return
  }
  func.func @transform_0(%arg0: i32) -> (i32, i32) {
    %c0_i32 = arith.constant 0 : i32
    %c0_i32_0 = arith.constant 0 : i32
    %c0_i32_1 = arith.constant 0 : i32
    return %c0_i32, %c0_i32_0 : i32, i32
  }
  func.func @transform_1(%arg0: i32) -> (i32, i32) {
    %c0_i32 = arith.constant 0 : i32
    %c0_i32_0 = arith.constant 0 : i32
    %c0_i32_1 = arith.constant 0 : i32
    return %c0_i32, %c0_i32_0 : i32, i32
  }
  func.func @transform_2(%arg0: i32) -> (i32, i32) {
    %c0_i32 = arith.constant 0 : i32
    %c0_i32_0 = arith.constant 0 : i32
    %c0_i32_1 = arith.constant 0 : i32
    return %c0_i32, %c0_i32_0 : i32, i32
  }
}

</mosaic_0001>

<llo_original>
// kernel: tpu_custom_call.1
$region0: #{tpu_custom_call.1}
  #allocation0 [shape = 'u32[]', space=smem, size = 0x4, offset = 0x4, fixed_abs, tag = 'smem constant byte address 0x4 - core index']
  #allocation1 [shape = 'u32[144,128]{1,0:T(1,128)}', space=vmem, size = 0x12000, scoped, tag = 'internal scratch']
  #allocation2 [shape = 'f32[8,8]{1,0:T(8,128)}', space=vmem, size = 0x1000, scoped, tag = 'scratch operand']
  #allocation3 [shape = 'f32[8,8]{1,0:T(8,128)}', space=vmem, size = 0x1000, scoped, tag = 'scratch operand']
  #allocation4 [shape = 'f32[8,8]{1,0:T(8,128)}', space=vmem, size = 0x1000, scoped, tag = 'scratch operand']
  #allocation5 [shape = 'f32[8,8]{1,0:T(8,128)}', space=vmem, size = 0x1000, scoped, tag = 'scratch operand']
  %s0 = inlined_call_operand.hbm [shape: f32[8,32], index: 0, kind: input, shape index: {}]
  %s1 = inlined_call_operand.hbm [shape: f32[8,64], index: 1, kind: input, shape index: {}]
  %s2 = inlined_call_operand.hbm [shape: f32[1,1], index: 2, kind: output, shape index: {}]
  %s3 = sld [smem:[#allocation0]]
  $region26: #{tpu_custom_call.1} parent=0
    _
  %s5 = ssub.s32 1, %s3
  %s6 = scalar_select 0, %s5, %s3
  $region1: #{tpu_custom_call.1} parent=0
    #allocation6 [shape = 'u8[4096]{0}', space=vmem, size = 0x1000, scoped, tag = 'input window, operand 0, single buffered']
    #allocation7 [shape = 's32[1]{0}', space=sflag, size = 0x4, scoped, tag = 'scoped memory for tpu_custom_call.1']
    #allocation8 [shape = 's32[1]{0}', space=sflag, size = 0x4, scoped, tag = 'scoped memory for tpu_custom_call.1']
    #allocation9 [shape = 'u8[4096]{0}', space=vmem, size = 0x1000, scoped, tag = 'input window, operand 1, single buffered']
    #allocation10 [shape = 's32[1]{0}', space=sflag, size = 0x4, scoped, tag = 'scoped memory for tpu_custom_call.1']
    #allocation11 [shape = 'u8[512]{0}', space=vmem, size = 0x400, scoped, tag = 'output window, operand 0, single buffered']
    %7 = vsyncpa [#allocation7], 0
    %8 = vsyncpa [#allocation10], 0
    %9 = vsyncpa [#allocation8], 0
    // Predicated region
    $region2: #{tpu_custom_call.1} parent=1 // pred_check
      _
    $region3: #{tpu_custom_call.1} parent=1 // pred_check_branch
      %11 = sbr.rel (0) target = $region5
    $region4: #{tpu_custom_call.1} parent=1 // pred_region
      %s13 = ssub.s32 128, 128
      %14 = vsyncadd [#allocation7], %s13
      %s16 = sshll.u32 [#allocation6], 4
      %s17 = int_to_ptr.vmem [resolvable:$true] %s16
      %19 = dma.hbm_to_vmem [thread:$0]  %s0, 128, %s17, [#allocation7]
    $region5: #{tpu_custom_call.1} parent=1 // pred_fallthru
      _
    // Predicated region
    $region6: #{tpu_custom_call.1} parent=1 // pred_check
      _
    $region7: #{tpu_custom_call.1} parent=1 // pred_check_branch
      %21 = sbr.rel (0) target = $region9
    $region8: #{tpu_custom_call.1} parent=1 // pred_region
      %s23 = ssub.s32 128, 128
      %24 = vsyncadd [#allocation10], %s23
      %s26 = sshll.u32 [#allocation9], 4
      %s27 = int_to_ptr.vmem [resolvable:$true] %s26
      %29 = dma.hbm_to_vmem [thread:$0]  %s1, 128, %s27, [#allocation10]
    $region9: #{tpu_custom_call.1} parent=1 // pred_fallthru
      _
    // Predicated region
    $region10: #{tpu_custom_call.1} parent=1 // pred_check
      _
    $region11: #{tpu_custom_call.1} parent=1 // pred_check_branch
      %31 = sbr.rel (0) target = $region13
    $region12: #{tpu_custom_call.1} parent=1 // pred_region
      %32 = dma.done [#allocation7], 128
    $region13: #{tpu_custom_call.1} parent=1 // pred_fallthru
      _
    // Predicated region
    $region14: #{tpu_custom_call.1} parent=1 // pred_check
      _
    $region15: #{tpu_custom_call.1} parent=1 // pred_check_branch
      %34 = sbr.rel (0) target = $region17
    $region16: #{tpu_custom_call.1} parent=1 // pred_region
      %35 = dma.done [#allocation10], 128
    $region17: #{tpu_custom_call.1} parent=1 // pred_fallthru
      _
    %v36 = vlaneseq
    %v37 = vshrl.u32 %v36, 7
    %v38 = vlaneseq
    %v39 = vand.u32 %v38, 127
    %vm40 = vcmp.eq.s32.totalorder %v37, %v39
    %v41 = vld [vmem:[#allocation6] sm:$0xff]
    %vm42 = vcmask 261120
    %v44 = vsel %vm42, %v41, 0
    %46 = vmatprep.subr.mxu0 0.0
    %47 = vmatpush1.xpose.msra.mxu0 %v44
    %48 = vmatprep.subr.mxu0 0.0
    %49 = vmatpush1.xpose.msra.mxu0 0.0
    %50 = vmatprep.subr.mxu0 0.0
    %51 = vmatpush1.xpose.msra.mxu0 0.0
    %52 = vmatprep.subr.mxu0 0.0
    %53 = vmatpush1.xpose.msra.mxu0 0.0
    %54 = vmatprep.subr.mxu0 0.0
    %55 = vmatpush1.xpose.msra.mxu0 0.0
    %56 = vmatprep.subr.mxu0 0.0
    %57 = vmatpush1.xpose.msra.mxu0 0.0
    %58 = vmatprep.subr.mxu0 0.0
    %59 = vmatpush1.xpose.msra.mxu0 0.0
    %60 = vmatprep.subr.mxu0 0.0
    %61 = vmatpush1.xpose.msra.mxu0 0.0
    %62 = vmatprep.subr.mxu0 0.0
    %63 = vmatpush1.xpose.msra.mxu0 0.0
    %64 = vmatprep.subr.mxu0 0.0
    %65 = vmatpush1.xpose.msra.mxu0 0.0
    %66 = vmatprep.subr.mxu0 0.0
    %67 = vmatpush1.xpose.msra.mxu0 0.0
    %68 = vmatprep.subr.mxu0 0.0
    %69 = vmatpush1.xpose.msra.mxu0 0.0
    %70 = vmatprep.subr.mxu0 0.0
    %71 = vmatpush1.xpose.msra.mxu0 0.0
    %72 = vmatprep.subr.mxu0 0.0
    %73 = vmatpush1.xpose.msra.mxu0 0.0
    %74 = vmatprep.subr.mxu0 0.0
    %75 = vmatpush1.xpose.msra.mxu0 0.0
    %76 = vmatprep.subr.mxu0 0.0
    %77 = vmatpush1.xpose.msra.mxu0 0.0
    %78 = vmatprep.subr.mxu0 0.0
    %79 = vmatpush1.xpose.msra.mxu0 0.0
    %80 = vmatprep.subr.mxu0 0.0
    %81 = vmatpush1.xpose.msra.mxu0 0.0
    %82 = vmatprep.subr.mxu0 0.0
    %83 = vmatpush1.xpose.msra.mxu0 0.0
    %84 = vmatprep.subr.mxu0 0.0
    %85 = vmatpush1.xpose.msra.mxu0 0.0
    %86 = vmatprep.subr.mxu0 0.0
    %87 = vmatpush1.xpose.msra.mxu0 0.0
    %88 = vmatprep.subr.mxu0 0.0
    %89 = vmatpush1.xpose.msra.mxu0 0.0
    %90 = vmatprep.subr.mxu0 0.0
    %91 = vmatpush1.xpose.msra.mxu0 0.0
    %92 = vmatprep.subr.mxu0 0.0
    %93 = vmatpush1.xpose.msra.mxu0 0.0
    %94 = vmatprep.subr.mxu0 0.0
    %95 = vmatpush1.xpose.msra.mxu0 0.0
    %96 = vmatprep.subr.mxu0 0.0
    %97 = vmatpush1.xpose.msra.mxu0 0.0
    %98 = vmatprep.subr.mxu0 0.0
    %99 = vmatpush1.xpose.msra.mxu0 0.0
    %100 = vmatprep.subr.mxu0 0.0
    %101 = vmatpush1.xpose.msra.mxu0 0.0
    %102 = vmatprep.subr.mxu0 0.0
    %103 = vmatpush1.xpose.msra.mxu0 0.0
    %104 = vmatprep.subr.mxu0 0.0
    %105 = vmatpush1.xpose.msra.mxu0 0.0
    %106 = vmatprep.subr.mxu0 0.0
    %107 = vmatpush1.xpose.msra.mxu0 0.0
    %108 = vmatprep.subr.mxu0 0.0
    %109 = vmatpush1.xpose.msra.mxu0 0.0
    %110 = vmatprep.mubr.f32.mxu0 0.0
    %111 = vmatmul.mubr.f32.gmra.mrb[0].mxu0 %v44
    %v112 = vpop.f32.mrb[0].mxu0
    %v113 = vadd.f32 0.0, %v112
    %v114 = vpop.f32.mrb[0].mxu0
    %115 = vdwg.mxu0
    %v116 = vsel %vm40, %v113, 0.0
    %vm117 = vcmask 64512
    %v118 = vsel %vm117, %v116, 0.0
    %119 = vadd.xlane.f32.xlu0 %v118
    %v120 = vpop.xlane.xlu0 %119
    %v121 = vrot.slane %v118, 4
    %v122 = vadd.f32 %v118, %v121
    %v123 = vrot.slane %v122, 2
    %v124 = vadd.f32 %v122, %v123
    %v125 = vrot.slane %v124, 1
    %v126 = vadd.f32 %v124, %v125
    %v127 = vadd.f32 %v120, %v126
    %v128 = vmul.f32 %v113, 2.0
    %v129 = vsub.f32 %v127, %v128
    %v130 = vmax.f32 %v129, 1e-12
    %v131 = vrsqrt.pop %v130
    %v132 = vmul.f32 %v130, %v131
    %vm133 = vcmp.eq.f32.partialorder %v130, inf
    %v134 = vsel %vm133, %v130, %v132
    %vm135 = vcmp.eq.f32.partialorder %v130, 0.0
    %v136 = vand.u32 %v130, 2147483648
    %v137 = vsel %vm135, %v136, %v134
    %v138 = vsel %vm40, 0.0, %v137
    %v139 = vsel %vm117, %v138, 0.0
    %140 = vadd.xlane.f32.xlu0 %v139
    %v141 = vpop.xlane.xlu0 %140
    %v142 = vrot.slane %v141, 4
    %v143 = vadd.f32 %v141, %v142
    %v144 = vrot.slane %v143, 2
    %v145 = vadd.f32 %v143, %v144
    %v146 = vrot.slane %v145, 1
    %v147 = vadd.f32 %v145, %v146
    %v148 = vrcp.pop 56.0
    %v149 = vmul.f32 %v147, %v148
    %v150 = vmul.f32 %v129, 0.5
    %151 = vst.msk [vmem:[#allocation2] sm:$0xff] %vm117, %v150
    %v152 = vmax.f32 %v129, 1e-24
    %v153 = vrsqrt.pop %v152
    %v154 = vsel %vm40, 0.0, %v153
    %155 = vst.msk [vmem:[#allocation3] sm:$0xff] %vm117, %v154
    %v156 = vrcp.pop %v149
    %v157 = vmul.f32 %v138, %v156
    %v158 = vld [vmem:[#allocation9] sm:$0xff]
    %vm159 = vcmask 523264
    %v161 = vsel %vm159, %v158, 0
    %163 = vmatprep.subr.mxu0 0.0
    %164 = vmatpush1.xpose.msra.mxu0 %v161
    %165 = vmatprep.subr.mxu0 0.0
    %166 = vmatpush1.xpose.msra.mxu0 0.0
    %167 = vmatprep.subr.mxu0 0.0
    %168 = vmatpush1.xpose.msra.mxu0 0.0
    %169 = vmatprep.subr.mxu0 0.0
    %170 = vmatpush1.xpose.msra.mxu0 0.0
    %171 = vmatprep.subr.mxu0 0.0
    %172 = vmatpush1.xpose.msra.mxu0 0.0
    %173 = vmatprep.subr.mxu0 0.0
    %174 = vmatpush1.xpose.msra.mxu0 0.0
    %175 = vmatprep.subr.mxu0 0.0
    %176 = vmatpush1.xpose.msra.mxu0 0.0
    %177 = vmatprep.subr.mxu0 0.0
    %178 = vmatpush1.xpose.msra.mxu0 0.0
    %179 = vmatprep.subr.mxu0 0.0
    %180 = vmatpush1.xpose.msra.mxu0 0.0
    %181 = vmatprep.subr.mxu0 0.0
    %182 = vmatpush1.xpose.msra.mxu0 0.0
    %183 = vmatprep.subr.mxu0 0.0
    %184 = vmatpush1.xpose.msra.mxu0 0.0
    %185 = vmatprep.subr.mxu0 0.0
    %186 = vmatpush1.xpose.msra.mxu0 0.0
    %187 = vmatprep.subr.mxu0 0.0
    %188 = vmatpush1.xpose.msra.mxu0 0.0
    %189 = vmatprep.subr.mxu0 0.0
    %190 = vmatpush1.xpose.msra.mxu0 0.0
    %191 = vmatprep.subr.mxu0 0.0
    %192 = vmatpush1.xpose.msra.mxu0 0.0
    %193 = vmatprep.subr.mxu0 0.0
    %194 = vmatpush1.xpose.msra.mxu0 0.0
    %195 = vmatprep.subr.mxu0 0.0
    %196 = vmatpush1.xpose.msra.mxu0 0.0
    %197 = vmatprep.subr.mxu0 0.0
    %198 = vmatpush1.xpose.msra.mxu0 0.0
    %199 = vmatprep.subr.mxu0 0.0
    %200 = vmatpush1.xpose.msra.mxu0 0.0
    %201 = vmatprep.subr.mxu0 0.0
    %202 = vmatpush1.xpose.msra.mxu0 0.0
    %203 = vmatprep.subr.mxu0 0.0
    %204 = vmatpush1.xpose.msra.mxu0 0.0
    %205 = vmatprep.subr.mxu0 0.0
    %206 = vmatpush1.xpose.msra.mxu0 0.0
    %207 = vmatprep.subr.mxu0 0.0
    %208 = vmatpush1.xpose.msra.mxu0 0.0
    %209 = vmatprep.subr.mxu0 0.0
    %210 = vmatpush1.xpose.msra.mxu0 0.0
    %211 = vmatprep.subr.mxu0 0.0
    %212 = vmatpush1.xpose.msra.mxu0 0.0
    %213 = vmatprep.subr.mxu0 0.0
    %214 = vmatpush1.xpose.msra.mxu0 0.0
    %215 = vmatprep.subr.mxu0 0.0
    %216 = vmatpush1.xpose.msra.mxu0 0.0
    %217 = vmatprep.subr.mxu0 0.0
    %218 = vmatpush1.xpose.msra.mxu0 0.0
    %219 = vmatprep.subr.mxu0 0.0
    %220 = vmatpush1.xpose.msra.mxu0 0.0
    %221 = vmatprep.subr.mxu0 0.0
    %222 = vmatpush1.xpose.msra.mxu0 0.0
    %223 = vmatprep.subr.mxu0 0.0
    %224 = vmatpush1.xpose.msra.mxu0 0.0
    %225 = vmatprep.subr.mxu0 0.0
    %226 = vmatpush1.xpose.msra.mxu0 0.0
    %227 = vmatprep.mubr.f32.mxu0 0.0
    %228 = vmatmul.mubr.f32.gmra.mrb[0].mxu0 %v161
    %v229 = vpop.f32.mrb[0].mxu0
    %v230 = vadd.f32 0.0, %v229
    %v231 = vpop.f32.mrb[0].mxu0
    %232 = vdwg.mxu0
    %v233 = vsel %vm40, %v230, 0.0
    %v234 = vsel %vm117, %v233, 0.0
    %235 = vadd.xlane.f32.xlu0 %v234
    %v236 = vpop.xlane.xlu0 %235
    %v237 = vrot.slane %v234, 4
    %v238 = vadd.f32 %v234, %v237
    %v239 = vrot.slane %v238, 2
    %v240 = vadd.f32 %v238, %v239
    %v241 = vrot.slane %v240, 1
    %v242 = vadd.f32 %v240, %v241
    %v243 = vadd.f32 %v236, %v242
    %v244 = vmul.f32 %v230, 2.0
    %v245 = vsub.f32 %v243, %v244
    %v246 = vmax.f32 %v245, 1e-12
    %v247 = vrsqrt.pop %v246
    %v248 = vmul.f32 %v246, %v247
    %vm249 = vcmp.eq.f32.partialorder %v246, inf
    %v250 = vsel %vm249, %v246, %v248
    %vm251 = vcmp.eq.f32.partialorder %v246, 0.0
    %v252 = vand.u32 %v246, 2147483648
    %v253 = vsel %vm251, %v252, %v250
    %v254 = vsel %vm40, 0.0, %v253
    %v255 = vsel %vm117, %v254, 0.0
    %256 = vadd.xlane.f32.xlu0 %v255
    %v257 = vpop.xlane.xlu0 %256
    %v258 = vrot.slane %v257, 4
    %v259 = vadd.f32 %v257, %v258
    %v260 = vrot.slane %v259, 2
    %v261 = vadd.f32 %v259, %v260
    %v262 = vrot.slane %v261, 1
    %v263 = vadd.f32 %v261, %v262
    %v264 = vmul.f32 %v263, %v148
    %v265 = vmul.f32 %v245, 0.5
    %266 = vst.msk [vmem:[#allocation4] sm:$0xff] %vm117, %v265
    %v267 = vmax.f32 %v245, 1e-24
    %v268 = vrsqrt.pop %v267
    %v269 = vsel %vm40, 0.0, %v268
    %270 = vst.msk [vmem:[#allocation5] sm:$0xff] %vm117, %v269
    %v271 = vrcp.pop %v264
    %v272 = vmul.f32 %v254, %v271
    %v273 = vsub.f32 %v157, %v272
    %v274 = vand.u32 2147483647, %v273
    %vm275 = vcmp.lt.f32.partialorder %v274, 1.0
    %v276 = vmul.f32 %v273, 0.5
    %v277 = vmul.f32 %v276, %v273
    %v278 = vsub.f32 %v274, 0.5
    %v279 = vsel %vm275, %v277, %v278
    %v280 = vsel %vm117, %v279, 0.0
    %281 = vadd.xlane.f32.xlu0 %v280
    %v282 = vpop.xlane.xlu0 %281
    %v283 = vrot.slane %v282, 4
    %v284 = vadd.f32 %v282, %v283
    %v285 = vrot.slane %v284, 2
    %v286 = vadd.f32 %v284, %v285
    %v287 = vrot.slane %v286, 1
    %v288 = vadd.f32 %v286, %v287
    %v289 = vrcp.pop 64.0
    %v290 = vmul.f32 %v288, %v289
    %vm291 = vcmp.eq.s32.totalorder %v37, 0
    %v292 = vsel %vm291, 1, 0
    %v293 = vcvt.s32.f32 %v292
    %v294 = vld [vmem:[#allocation2] sm:$0xff]
    %v295 = vld [vmem:[#allocation3] sm:$0xff]
    %v296 = vld [vmem:[#allocation2] sm:$0x1]
    %v297 = vld [vmem:[#allocation3] sm:$0x1]
    %v299 = vsel %vm117, %v294, 0
    %301 = vmatprep.subr.mxu0 0.0
    %302 = vmatpush1.msra.mxu0 %v293
    %303 = vmatprep.subr.mxu0 0.0
    %304 = vmatpush1.msra.mxu0 0.0
    %305 = vmatprep.subr.mxu0 0.0
    %306 = vmatpush1.msra.mxu0 0.0
    %307 = vmatprep.subr.mxu0 0.0
    %308 = vmatpush1.msra.mxu0 0.0
    %309 = vmatprep.subr.mxu0 0.0
    %310 = vmatpush1.msra.mxu0 0.0
    %311 = vmatprep.subr.mxu0 0.0
    %312 = vmatpush1.msra.mxu0 0.0
    %313 = vmatprep.subr.mxu0 0.0
    %314 = vmatpush1.msra.mxu0 0.0
    %315 = vmatprep.subr.mxu0 0.0
    %316 = vmatpush1.msra.mxu0 0.0
    %317 = vmatprep.subr.mxu0 0.0
    %318 = vmatpush1.msra.mxu0 0.0
    %319 = vmatprep.subr.mxu0 0.0
    %320 = vmatpush1.msra.mxu0 0.0
    %321 = vmatprep.subr.mxu0 0.0
    %322 = vmatpush1.msra.mxu0 0.0
    %323 = vmatprep.subr.mxu0 0.0
    %324 = vmatpush1.msra.mxu0 0.0
    %325 = vmatprep.subr.mxu0 0.0
    %326 = vmatpush1.msra.mxu0 0.0
    %327 = vmatprep.subr.mxu0 0.0
    %328 = vmatpush1.msra.mxu0 0.0
    %329 = vmatprep.subr.mxu0 0.0
    %330 = vmatpush1.msra.mxu0 0.0
    %331 = vmatprep.subr.mxu0 0.0
    %332 = vmatpush1.msra.mxu0 0.0
    %333 = vmatprep.subr.mxu0 0.0
    %334 = vmatpush1.msra.mxu0 0.0
    %335 = vmatprep.subr.mxu0 0.0
    %336 = vmatpush1.msra.mxu0 0.0
    %337 = vmatprep.subr.mxu0 0.0
    %338 = vmatpush1.msra.mxu0 0.0
    %339 = vmatprep.subr.mxu0 0.0
    %340 = vmatpush1.msra.mxu0 0.0
    %341 = vmatprep.subr.mxu0 0.0
    %342 = vmatpush1.msra.mxu0 0.0
    %343 = vmatprep.subr.mxu0 0.0
    %344 = vmatpush1.msra.mxu0 0.0
    %345 = vmatprep.subr.mxu0 0.0
    %346 = vmatpush1.msra.mxu0 0.0
    %347 = vmatprep.subr.mxu0 0.0
    %348 = vmatpush1.msra.mxu0 0.0
    %349 = vmatprep.subr.mxu0 0.0
    %350 = vmatpush1.msra.mxu0 0.0
    %351 = vmatprep.subr.mxu0 0.0
    %352 = vmatpush1.msra.mxu0 0.0
    %353 = vmatprep.subr.mxu0 0.0
    %354 = vmatpush1.msra.mxu0 0.0
    %355 = vmatprep.subr.mxu0 0.0
    %356 = vmatpush1.msra.mxu0 0.0
    %357 = vmatprep.subr.mxu0 0.0
    %358 = vmatpush1.msra.mxu0 0.0
    %359 = vmatprep.subr.mxu0 0.0
    %360 = vmatpush1.msra.mxu0 0.0
    %361 = vmatprep.subr.mxu0 0.0
    %362 = vmatpush1.msra.mxu0 0.0
    %363 = vmatprep.subr.mxu0 0.0
    %364 = vmatpush1.msra.mxu0 0.0
    %365 = vmatprep.mubr.f32.mxu0 0.0
    %366 = vmatmul.mubr.f32.gmra.mrb[0].mxu0 %v299
    %v367 = vpop.f32.mrb[0].mxu0
    %v368 = vadd.f32 0.0, %v367
    %v369 = vpop.f32.mrb[0].mxu0
    %370 = vdwg.mxu0
    %v372 = vsel %vm117, %v295, 0
    %374 = vmatprep.subr.mxu0 0.0
    %375 = vmatpush1.msra.mxu0 %v293
    %376 = vmatprep.subr.mxu0 0.0
    %377 = vmatpush1.msra.mxu0 0.0
    %378 = vmatprep.subr.mxu0 0.0
    %379 = vmatpush1.msra.mxu0 0.0
    %380 = vmatprep.subr.mxu0 0.0
    %381 = vmatpush1.msra.mxu0 0.0
    %382 = vmatprep.subr.mxu0 0.0
    %383 = vmatpush1.msra.mxu0 0.0
    %384 = vmatprep.subr.mxu0 0.0
    %385 = vmatpush1.msra.mxu0 0.0
    %386 = vmatprep.subr.mxu0 0.0
    %387 = vmatpush1.msra.mxu0 0.0
    %388 = vmatprep.subr.mxu0 0.0
    %389 = vmatpush1.msra.mxu0 0.0
    %390 = vmatprep.subr.mxu0 0.0
    %391 = vmatpush1.msra.mxu0 0.0
    %392 = vmatprep.subr.mxu0 0.0
    %393 = vmatpush1.msra.mxu0 0.0
    %394 = vmatprep.subr.mxu0 0.0
    %395 = vmatpush1.msra.mxu0 0.0
    %396 = vmatprep.subr.mxu0 0.0
    %397 = vmatpush1.msra.mxu0 0.0
    %398 = vmatprep.subr.mxu0 0.0
    %399 = vmatpush1.msra.mxu0 0.0
    %400 = vmatprep.subr.mxu0 0.0
    %401 = vmatpush1.msra.mxu0 0.0
    %402 = vmatprep.subr.mxu0 0.0
    %403 = vmatpush1.msra.mxu0 0.0
    %404 = vmatprep.subr.mxu0 0.0
    %405 = vmatpush1.msra.mxu0 0.0
    %406 = vmatprep.subr.mxu0 0.0
    %407 = vmatpush1.msra.mxu0 0.0
    %408 = vmatprep.subr.mxu0 0.0
    %409 = vmatpush1.msra.mxu0 0.0
    %410 = vmatprep.subr.mxu0 0.0
    %411 = vmatpush1.msra.mxu0 0.0
    %412 = vmatprep.subr.mxu0 0.0
    %413 = vmatpush1.msra.mxu0 0.0
    %414 = vmatprep.subr.mxu0 0.0
    %415 = vmatpush1.msra.mxu0 0.0
    %416 = vmatprep.subr.mxu0 0.0
    %417 = vmatpush1.msra.mxu0 0.0
    %418 = vmatprep.subr.mxu0 0.0
    %419 = vmatpush1.msra.mxu0 0.0
    %420 = vmatprep.subr.mxu0 0.0
    %421 = vmatpush1.msra.mxu0 0.0
    %422 = vmatprep.subr.mxu0 0.0
    %423 = vmatpush1.msra.mxu0 0.0
    %424 = vmatprep.subr.mxu0 0.0
    %425 = vmatpush1.msra.mxu0 0.0
    %426 = vmatprep.subr.mxu0 0.0
    %427 = vmatpush1.msra.mxu0 0.0
    %428 = vmatprep.subr.mxu0 0.0
    %429 = vmatpush1.msra.mxu0 0.0
    %430 = vmatprep.subr.mxu0 0.0
    %431 = vmatpush1.msra.mxu0 0.0
    %432 = vmatprep.subr.mxu0 0.0
    %433 = vmatpush1.msra.mxu0 0.0
    %434 = vmatprep.subr.mxu0 0.0
    %435 = vmatpush1.msra.mxu0 0.0
    %436 = vmatprep.subr.mxu0 0.0
    %437 = vmatpush1.msra.mxu0 0.0
    %438 = vmatprep.mubr.f32.mxu0 0.0
    %439 = vmatmul.mubr.f32.gmra.mrb[0].mxu0 %v372
    %v440 = vpop.f32.mrb[0].mxu0
    %v441 = vadd.f32 0.0, %v440
    %v442 = vpop.f32.mrb[0].mxu0
    %443 = vdwg.mxu0
    %445 = vset.pattern.permute.xlu0 0
    %446 = vperm.xlu0 %445, %v368
    %v447 = vpop.permute.xlu0 %446
    %v449 = vlaneseq
    %v450 = vshrl.u32 %v449, 7
    %v451 = vsub.s32 0, %v450
    %v452 = vrot.slane %v296, %v451
    %v453 = vadd.f32 %v447, %v452
    %v454 = vsub.f32 %v453, %v294
    %456 = vset.pattern.permute.xlu0 0
    %457 = vperm.xlu0 %456, %v441
    %v458 = vpop.permute.xlu0 %457
    %v460 = vlaneseq
    %v461 = vshrl.u32 %v460, 7
    %v462 = vsub.s32 0, %v461
    %v463 = vrot.slane %v297, %v462
    %v464 = vmul.f32 %v458, %v463
    %v465 = vmul.f32 %v454, %v464
    %v466 = vld [vmem:[#allocation4] sm:$0xff]
    %v467 = vld [vmem:[#allocation5] sm:$0xff]
    %v468 = vld [vmem:[#allocation4] sm:$0x1]
    %v469 = vld [vmem:[#allocation5] sm:$0x1]
    %v471 = vsel %vm117, %v466, 0
    %473 = vmatprep.subr.mxu0 0.0
    %474 = vmatpush1.msra.mxu0 %v293
    %475 = vmatprep.subr.mxu0 0.0
    %476 = vmatpush1.msra.mxu0 0.0
    %477 = vmatprep.subr.mxu0 0.0
    %478 = vmatpush1.msra.mxu0 0.0
    %479 = vmatprep.subr.mxu0 0.0
    %480 = vmatpush1.msra.mxu0 0.0
    %481 = vmatprep.subr.mxu0 0.0
    %482 = vmatpush1.msra.mxu0 0.0
    %483 = vmatprep.subr.mxu0 0.0
    %484 = vmatpush1.msra.mxu0 0.0
    %485 = vmatprep.subr.mxu0 0.0
    %486 = vmatpush1.msra.mxu0 0.0
    %487 = vmatprep.subr.mxu0 0.0
    %488 = vmatpush1.msra.mxu0 0.0
    %489 = vmatprep.subr.mxu0 0.0
    %490 = vmatpush1.msra.mxu0 0.0
    %491 = vmatprep.subr.mxu0 0.0
    %492 = vmatpush1.msra.mxu0 0.0
    %493 = vmatprep.subr.mxu0 0.0
    %494 = vmatpush1.msra.mxu0 0.0
    %495 = vmatprep.subr.mxu0 0.0
    %496 = vmatpush1.msra.mxu0 0.0
    %497 = vmatprep.subr.mxu0 0.0
    %498 = vmatpush1.msra.mxu0 0.0
    %499 = vmatprep.subr.mxu0 0.0
    %500 = vmatpush1.msra.mxu0 0.0
    %501 = vmatprep.subr.mxu0 0.0
    %502 = vmatpush1.msra.mxu0 0.0
    %503 = vmatprep.subr.mxu0 0.0
    %504 = vmatpush1.msra.mxu0 0.0
    %505 = vmatprep.subr.mxu0 0.0
    %506 = vmatpush1.msra.mxu0 0.0
    %507 = vmatprep.subr.mxu0 0.0
    %508 = vmatpush1.msra.mxu0 0.0
    %509 = vmatprep.subr.mxu0 0.0
    %510 = vmatpush1.msra.mxu0 0.0
    %511 = vmatprep.subr.mxu0 0.0
    %512 = vmatpush1.msra.mxu0 0.0
    %513 = vmatprep.subr.mxu0 0.0
    %514 = vmatpush1.msra.mxu0 0.0
    %515 = vmatprep.subr.mxu0 0.0
    %516 = vmatpush1.msra.mxu0 0.0
    %517 = vmatprep.subr.mxu0 0.0
    %518 = vmatpush1.msra.mxu0 0.0
    %519 = vmatprep.subr.mxu0 0.0
    %520 = vmatpush1.msra.mxu0 0.0
    %521 = vmatprep.subr.mxu0 0.0
    %522 = vmatpush1.msra.mxu0 0.0
    %523 = vmatprep.subr.mxu0 0.0
    %524 = vmatpush1.msra.mxu0 0.0
    %525 = vmatprep.subr.mxu0 0.0
    %526 = vmatpush1.msra.mxu0 0.0
    %527 = vmatprep.subr.mxu0 0.0
    %528 = vmatpush1.msra.mxu0 0.0
    %529 = vmatprep.subr.mxu0 0.0
    %530 = vmatpush1.msra.mxu0 0.0
    %531 = vmatprep.subr.mxu0 0.0
    %532 = vmatpush1.msra.mxu0 0.0
    %533 = vmatprep.subr.mxu0 0.0
    %534 = vmatpush1.msra.mxu0 0.0
    %535 = vmatprep.subr.mxu0 0.0
    %536 = vmatpush1.msra.mxu0 0.0
    %537 = vmatprep.mubr.f32.mxu0 0.0
    %538 = vmatmul.mubr.f32.gmra.mrb[0].mxu0 %v471
    %v539 = vpop.f32.mrb[0].mxu0
    %v540 = vadd.f32 0.0, %v539
    %v541 = vpop.f32.mrb[0].mxu0
    %542 = vdwg.mxu0
    %v544 = vsel %vm117, %v467, 0
    %546 = vmatprep.subr.mxu0 0.0
    %547 = vmatpush1.msra.mxu0 %v293
    %548 = vmatprep.subr.mxu0 0.0
    %549 = vmatpush1.msra.mxu0 0.0
    %550 = vmatprep.subr.mxu0 0.0
    %551 = vmatpush1.msra.mxu0 0.0
    %552 = vmatprep.subr.mxu0 0.0
    %553 = vmatpush1.msra.mxu0 0.0
    %554 = vmatprep.subr.mxu0 0.0
    %555 = vmatpush1.msra.mxu0 0.0
    %556 = vmatprep.subr.mxu0 0.0
    %557 = vmatpush1.msra.mxu0 0.0
    %558 = vmatprep.subr.mxu0 0.0
    %559 = vmatpush1.msra.mxu0 0.0
    %560 = vmatprep.subr.mxu0 0.0
    %561 = vmatpush1.msra.mxu0 0.0
    %562 = vmatprep.subr.mxu0 0.0
    %563 = vmatpush1.msra.mxu0 0.0
    %564 = vmatprep.subr.mxu0 0.0
    %565 = vmatpush1.msra.mxu0 0.0
    %566 = vmatprep.subr.mxu0 0.0
    %567 = vmatpush1.msra.mxu0 0.0
    %568 = vmatprep.subr.mxu0 0.0
    %569 = vmatpush1.msra.mxu0 0.0
    %570 = vmatprep.subr.mxu0 0.0
    %571 = vmatpush1.msra.mxu0 0.0
    %572 = vmatprep.subr.mxu0 0.0
    %573 = vmatpush1.msra.mxu0 0.0
    %574 = vmatprep.subr.mxu0 0.0
    %575 = vmatpush1.msra.mxu0 0.0
    %576 = vmatprep.subr.mxu0 0.0
    %577 = vmatpush1.msra.mxu0 0.0
    %578 = vmatprep.subr.mxu0 0.0
    %579 = vmatpush1.msra.mxu0 0.0
    %580 = vmatprep.subr.mxu0 0.0
    %581 = vmatpush1.msra.mxu0 0.0
    %582 = vmatprep.subr.mxu0 0.0
    %583 = vmatpush1.msra.mxu0 0.0
    %584 = vmatprep.subr.mxu0 0.0
    %585 = vmatpush1.msra.mxu0 0.0
    %586 = vmatprep.subr.mxu0 0.0
    %587 = vmatpush1.msra.mxu0 0.0
    %588 = vmatprep.subr.mxu0 0.0
    %589 = vmatpush1.msra.mxu0 0.0
    %590 = vmatprep.subr.mxu0 0.0
    %591 = vmatpush1.msra.mxu0 0.0
    %592 = vmatprep.subr.mxu0 0.0
    %593 = vmatpush1.msra.mxu0 0.0
    %594 = vmatprep.subr.mxu0 0.0
    %595 = vmatpush1.msra.mxu0 0.0
    %596 = vmatprep.subr.mxu0 0.0
    %597 = vmatpush1.msra.mxu0 0.0
    %598 = vmatprep.subr.mxu0 0.0
    %599 = vmatpush1.msra.mxu0 0.0
    %600 = vmatprep.subr.mxu0 0.0
    %601 = vmatpush1.msra.mxu0 0.0
    %602 = vmatprep.subr.mxu0 0.0
    %603 = vmatpush1.msra.mxu0 0.0
    %604 = vmatprep.subr.mxu0 0.0
    %605 = vmatpush1.msra.mxu0 0.0
    %606 = vmatprep.subr.mxu0 0.0
    %607 = vmatpush1.msra.mxu0 0.0
    %608 = vmatprep.subr.mxu0 0.0
    %609 = vmatpush1.msra.mxu0 0.0
    %610 = vmatprep.mubr.f32.mxu0 0.0
    %611 = vmatmul.mubr.f32.gmra.mrb[0].mxu0 %v544
    %v612 = vpop.f32.mrb[0].mxu0
    %v613 = vadd.f32 0.0, %v612
    %v614 = vpop.f32.mrb[0].mxu0
    %615 = vdwg.mxu0
    %617 = vset.pattern.permute.xlu0 0
    %618 = vperm.xlu0 %617, %v540
    %v619 = vpop.permute.xlu0 %618
    %v621 = vlaneseq
    %v622 = vshrl.u32 %v621, 7
    %v623 = vsub.s32 0, %v622
    %v624 = vrot.slane %v468, %v623
    %v625 = vadd.f32 %v619, %v624
    %v626 = vsub.f32 %v625, %v466
    %628 = vset.pattern.permute.xlu0 0
    %629 = vperm.xlu0 %628, %v613
    %v630 = vpop.permute.xlu0 %629
    %v632 = vlaneseq
    %v633 = vshrl.u32 %v632, 7
    %v634 = vsub.s32 0, %v633
    %v635 = vrot.slane %v469, %v634
    %v636 = vmul.f32 %v630, %v635
    %v637 = vmul.f32 %v626, %v636
    %v638 = vsub.f32 %v465, %v637
    %v639 = vand.u32 2147483647, %v638
    %vm640 = vcmp.lt.f32.partialorder %v639, 1.0
    %v641 = vmul.f32 %v638, 0.5
    %v642 = vmul.f32 %v641, %v638
    %v643 = vsub.f32 %v639, 0.5
    %v644 = vsel %vm640, %v642, %v643
    %v645 = vsel %vm117, %v644, 0.0
    %646 = vadd.xlane.f32.xlu0 %v645
    %v647 = vpop.xlane.xlu0 %646
    %v648 = vrot.slane %v647, 4
    %v649 = vadd.f32 %v647, %v648
    %v650 = vrot.slane %v649, 2
    %v651 = vadd.f32 %v649, %v650
    %v652 = vrot.slane %v651, 1
    %v653 = vadd.f32 %v651, %v652
    %v654 = vadd.f32 %v653, 0.0
    %vm655 = vcmp.eq.s32.totalorder %v37, 1
    %v656 = vsel %vm655, 1, 0
    %v657 = vcvt.s32.f32 %v656
    %v658 = vld [vmem:[#allocation2 + $0x1] sm:$0x1]
    %v659 = vld [vmem:[#allocation3 + $0x1] sm:$0x1]
    %660 = vmatprep.subr.mxu0 0.0
    %661 = vmatpush1.msra.mxu0 %v657
    %662 = vmatprep.subr.mxu0 0.0
    %663 = vmatpush1.msra.mxu0 0.0
    %664 = vmatprep.subr.mxu0 0.0
    %665 = vmatpush1.msra.mxu0 0.0
    %666 = vmatprep.subr.mxu0 0.0
    %667 = vmatpush1.msra.mxu0 0.0
    %668 = vmatprep.subr.mxu0 0.0
    %669 = vmatpush1.msra.mxu0 0.0
    %670 = vmatprep.subr.mxu0 0.0
    %671 = vmatpush1.msra.mxu0 0.0
    %672 = vmatprep.subr.mxu0 0.0
    %673 = vmatpush1.msra.mxu0 0.0
    %674 = vmatprep.subr.mxu0 0.0
    %675 = vmatpush1.msra.mxu0 0.0
    %676 = vmatprep.subr.mxu0 0.0
    %677 = vmatpush1.msra.mxu0 0.0
    %678 = vmatprep.subr.mxu0 0.0
    %679 = vmatpush1.msra.mxu0 0.0
    %680 = vmatprep.subr.mxu0 0.0
    %681 = vmatpush1.msra.mxu0 0.0
    %682 = vmatprep.subr.mxu0 0.0
    %683 = vmatpush1.msra.mxu0 0.0
    %684 = vmatprep.subr.mxu0 0.0
    %685 = vmatpush1.msra.mxu0 0.0
    %686 = vmatprep.subr.mxu0 0.0
    %687 = vmatpush1.msra.mxu0 0.0
    %688 = vmatprep.subr.mxu0 0.0
    %689 = vmatpush1.msra.mxu0 0.0
    %690 = vmatprep.subr.mxu0 0.0
    %691 = vmatpush1.msra.mxu0 0.0
    %692 = vmatprep.subr.mxu0 0.0
    %693 = vmatpush1.msra.mxu0 0.0
    %694 = vmatprep.subr.mxu0 0.0
    %695 = vmatpush1.msra.mxu0 0.0
    %696 = vmatprep.subr.mxu0 0.0
    %697 = vmatpush1.msra.mxu0 0.0
    %698 = vmatprep.subr.mxu0 0.0
    %699 = vmatpush1.msra.mxu0 0.0
    %700 = vmatprep.subr.mxu0 0.0
    %701 = vmatpush1.msra.mxu0 0.0
    %702 = vmatprep.subr.mxu0 0.0
    %703 = vmatpush1.msra.mxu0 0.0
    %704 = vmatprep.subr.mxu0 0.0
    %705 = vmatpush1.msra.mxu0 0.0
    %706 = vmatprep.subr.mxu0 0.0
    %707 = vmatpush1.msra.mxu0 0.0
    %708 = vmatprep.subr.mxu0 0.0
    %709 = vmatpush1.msra.mxu0 0.0
    %710 = vmatprep.subr.mxu0 0.0
    %711 = vmatpush1.msra.mxu0 0.0
    %712 = vmatprep.subr.mxu0 0.0
    %713 = vmatpush1.msra.mxu0 0.0
    %714 = vmatprep.subr.mxu0 0.0
    %715 = vmatpush1.msra.mxu0 0.0
    %716 = vmatprep.subr.mxu0 0.0
    %717 = vmatpush1.msra.mxu0 0.0
    %718 = vmatprep.subr.mxu0 0.0
    %719 = vmatpush1.msra.mxu0 0.0
    %720 = vmatprep.subr.mxu0 0.0
    %721 = vmatpush1.msra.mxu0 0.0
    %722 = vmatprep.subr.mxu0 0.0
    %723 = vmatpush1.msra.mxu0 0.0
    %724 = vmatprep.mubr.f32.mxu0 0.0
    %725 = vmatmul.mubr.f32.gmra.mrb[0].mxu0 %v299
    %v726 = vpop.f32.mrb[0].mxu0
    %v727 = vadd.f32 0.0, %v726
    %v728 = vpop.f32.mrb[0].mxu0
    %729 = vdwg.mxu0
    %730 = vmatprep.subr.mxu0 0.0
    %731 = vmatpush1.msra.mxu0 %v657
    %732 = vmatprep.subr.mxu0 0.0
    %733 = vmatpush1.msra.mxu0 0.0
    %734 = vmatprep.subr.mxu0 0.0
    %735 = vmatpush1.msra.mxu0 0.0
    %736 = vmatprep.subr.mxu0 0.0
    %737 = vmatpush1.msra.mxu0 0.0
    %738 = vmatprep.subr.mxu0 0.0
    %739 = vmatpush1.msra.mxu0 0.0
    %740 = vmatprep.subr.mxu0 0.0
    %741 = vmatpush1.msra.mxu0 0.0
    %742 = vmatprep.subr.mxu0 0.0
    %743 = vmatpush1.msra.mxu0 0.0
    %744 = vmatprep.subr.mxu0 0.0
    %745 = vmatpush1.msra.mxu0 0.0
    %746 = vmatprep.subr.mxu0 0.0
    %747 = vmatpush1.msra.mxu0 0.0
    %748 = vmatprep.subr.mxu0 0.0
    %749 = vmatpush1.msra.mxu0 0.0
    %750 = vmatprep.subr.mxu0 0.0
    %751 = vmatpush1.msra.mxu0 0.0
    %752 = vmatprep.subr.mxu0 0.0
    %753 = vmatpush1.msra.mxu0 0.0
    %754 = vmatprep.subr.mxu0 0.0
    %755 = vmatpush1.msra.mxu0 0.0
    %756 = vmatprep.subr.mxu0 0.0
    %757 = vmatpush1.msra.mxu0 0.0
    %758 = vmatprep.subr.mxu0 0.0
    %759 = vmatpush1.msra.mxu0 0.0
    %760 = vmatprep.subr.mxu0 0.0
    %761 = vmatpush1.msra.mxu0 0.0
    %762 = vmatprep.subr.mxu0 0.0
    %763 = vmatpush1.msra.mxu0 0.0
    %764 = vmatprep.subr.mxu0 0.0
    %765 = vmatpush1.msra.mxu0 0.0
    %766 = vmatprep.subr.mxu0 0.0
    %767 = vmatpush1.msra.mxu0 0.0
    %768 = vmatprep.subr.mxu0 0.0
    %769 = vmatpush1.msra.mxu0 0.0
    %770 = vmatprep.subr.mxu0 0.0
    %771 = vmatpush1.msra.mxu0 0.0
    %772 = vmatprep.subr.mxu0 0.0
    %773 = vmatpush1.msra.mxu0 0.0
    %774 = vmatprep.subr.mxu0 0.0
    %775 = vmatpush1.msra.mxu0 0.0
    %776 = vmatprep.subr.mxu0 0.0
    %777 = vmatpush1.msra.mxu0 0.0
    %778 = vmatprep.subr.mxu0 0.0
    %779 = vmatpush1.msra.mxu0 0.0
    %780 = vmatprep.subr.mxu0 0.0
    %781 = vmatpush1.msra.mxu0 0.0
    %782 = vmatprep.subr.mxu0 0.0
    %783 = vmatpush1.msra.mxu0 0.0
    %784 = vmatprep.subr.mxu0 0.0
    %785 = vmatpush1.msra.mxu0 0.0
    %786 = vmatprep.subr.mxu0 0.0
    %787 = vmatpush1.msra.mxu0 0.0
    %788 = vmatprep.subr.mxu0 0.0
    %789 = vmatpush1.msra.mxu0 0.0
    %790 = vmatprep.subr.mxu0 0.0
    %791 = vmatpush1.msra.mxu0 0.0
    %792 = vmatprep.subr.mxu0 0.0
    %793 = vmatpush1.msra.mxu0 0.0
    %794 = vmatprep.mubr.f32.mxu0 0.0
    %795 = vmatmul.mubr.f32.gmra.mrb[0].mxu0 %v372
    %v796 = vpop.f32.mrb[0].mxu0
    %v797 = vadd.f32 0.0, %v796
    %v798 = vpop.f32.mrb[0].mxu0
    %799 = vdwg.mxu0
    %801 = vset.pattern.permute.xlu0 0
    %802 = vperm.xlu0 %801, %v727
    %v803 = vpop.permute.xlu0 %802
    %v805 = vlaneseq
    %v806 = vshrl.u32 %v805, 7
    %v807 = vsub.s32 0, %v806
    %v808 = vrot.slane %v658, %v807
    %v809 = vadd.f32 %v803, %v808
    %v810 = vsub.f32 %v809, %v294
    %812 = vset.pattern.permute.xlu0 0
    %813 = vperm.xlu0 %812, %v797
    %v814 = vpop.permute.xlu0 %813
    %v816 = vlaneseq
    %v817 = vshrl.u32 %v816, 7
    %v818 = vsub.s32 0, %v817
    %v819 = vrot.slane %v659, %v818
    %v820 = vmul.f32 %v814, %v819
    %v821 = vmul.f32 %v810, %v820
    %v822 = vld [vmem:[#allocation4 + $0x1] sm:$0x1]
    %v823 = vld [vmem:[#allocation5 + $0x1] sm:$0x1]
    %824 = vmatprep.subr.mxu0 0.0
    %825 = vmatpush1.msra.mxu0 %v657
    %826 = vmatprep.subr.mxu0 0.0
    %827 = vmatpush1.msra.mxu0 0.0
    %828 = vmatprep.subr.mxu0 0.0
    %829 = vmatpush1.msra.mxu0 0.0
    %830 = vmatprep.subr.mxu0 0.0
    %831 = vmatpush1.msra.mxu0 0.0
    %832 = vmatprep.subr.mxu0 0.0
    %833 = vmatpush1.msra.mxu0 0.0
    %834 = vmatprep.subr.mxu0 0.0
    %835 = vmatpush1.msra.mxu0 0.0
    %836 = vmatprep.subr.mxu0 0.0
    %837 = vmatpush1.msra.mxu0 0.0
    %838 = vmatprep.subr.mxu0 0.0
    %839 = vmatpush1.msra.mxu0 0.0
    %840 = vmatprep.subr.mxu0 0.0
    %841 = vmatpush1.msra.mxu0 0.0
    %842 = vmatprep.subr.mxu0 0.0
    %843 = vmatpush1.msra.mxu0 0.0
    %844 = vmatprep.subr.mxu0 0.0
    %845 = vmatpush1.msra.mxu0 0.0
    %846 = vmatprep.subr.mxu0 0.0
    %847 = vmatpush1.msra.mxu0 0.0
    %848 = vmatprep.subr.mxu0 0.0
    %849 = vmatpush1.msra.mxu0 0.0
    %850 = vmatprep.subr.mxu0 0.0
    %851 = vmatpush1.msra.mxu0 0.0
    %852 = vmatprep.subr.mxu0 0.0
    %853 = vmatpush1.msra.mxu0 0.0
    %854 = vmatprep.subr.mxu0 0.0
    %855 = vmatpush1.msra.mxu0 0.0
    %856 = vmatprep.subr.mxu0 0.0
    %857 = vmatpush1.msra.mxu0 0.0
    %858 = vmatprep.subr.mxu0 0.0
    %859 = vmatpush1.msra.mxu0 0.0
    %860 = vmatprep.subr.mxu0 0.0
    %861 = vmatpush1.msra.mxu0 0.0
    %862 = vmatprep.subr.mxu0 0.0
    %863 = vmatpush1.msra.mxu0 0.0
    %864 = vmatprep.subr.mxu0 0.0
    %865 = vmatpush1.msra.mxu0 0.0
    %866 = vmatprep.subr.mxu0 0.0
    %867 = vmatpush1.msra.mxu0 0.0
    %868 = vmatprep.subr.mxu0 0.0
    %869 = vmatpush1.msra.mxu0 0.0
    %870 = vmatprep.subr.mxu0 0.0
    %871 = vmatpush1.msra.mxu0 0.0
    %872 = vmatprep.subr.mxu0 0.0
    %873 = vmatpush1.msra.mxu0 0.0
    %874 = vmatprep.subr.mxu0 0.0
    %875 = vmatpush1.msra.mxu0 0.0
    %876 = vmatprep.subr.mxu0 0.0
    %877 = vmatpush1.msra.mxu0 0.0
    %878 = vmatprep.subr.mxu0 0.0
    %879 = vmatpush1.msra.mxu0 0.0
    %880 = vmatprep.subr.mxu0 0.0
    %881 = vmatpush1.msra.mxu0 0.0
    %882 = vmatprep.subr.mxu0 0.0
    %883 = vmatpush1.msra.mxu0 0.0
    %884 = vmatprep.subr.mxu0 0.0
    %885 = vmatpush1.msra.mxu0 0.0
    %886 = vmatprep.subr.mxu0 0.0
    %887 = vmatpush1.msra.mxu0 0.0
    %888 = vmatprep.mubr.f32.mxu0 0.0
    %889 = vmatmul.mubr.f32.gmra.mrb[0].mxu0 %v471
    %v890 = vpop.f32.mrb[0].mxu0
    %v891 = vadd.f32 0.0, %v890
    %v892 = vpop.f32.mrb[0].mxu0
    %893 = vdwg.mxu0
    %894 = vmatprep.subr.mxu0 0.0
    %895 = vmatpush1.msra.mxu0 %v657
    %896 = vmatprep.subr.mxu0 0.0
    %897 = vmatpush1.msra.mxu0 0.0
    %898 = vmatprep.subr.mxu0 0.0
    %899 = vmatpush1.msra.mxu0 0.0
    %900 = vmatprep.subr.mxu0 0.0
    %901 = vmatpush1.msra.mxu0 0.0
    %902 = vmatprep.subr.mxu0 0.0
    %903 = vmatpush1.msra.mxu0 0.0
    %904 = vmatprep.subr.mxu0 0.0
    %905 = vmatpush1.msra.mxu0 0.0
    %906 = vmatprep.subr.mxu0 0.0
    %907 = vmatpush1.msra.mxu0 0.0
    %908 = vmatprep.subr.mxu0 0.0
    %909 = vmatpush1.msra.mxu0 0.0
    %910 = vmatprep.subr.mxu0 0.0
    %911 = vmatpush1.msra.mxu0 0.0
    %912 = vmatprep.subr.mxu0 0.0
    %913 = vmatpush1.msra.mxu0 0.0
    %914 = vmatprep.subr.mxu0 0.0
    %915 = vmatpush1.msra.mxu0 0.0
    %916 = vmatprep.subr.mxu0 0.0
    %917 = vmatpush1.msra.mxu0 0.0
    %918 = vmatprep.subr.mxu0 0.0
    %919 = vmatpush1.msra.mxu0 0.0
    %920 = vmatprep.subr.mxu0 0.0
    %921 = vmatpush1.msra.mxu0 0.0
    %922 = vmatprep.subr.mxu0 0.0
    %923 = vmatpush1.msra.mxu0 0.0
    %924 = vmatprep.subr.mxu0 0.0
    %925 = vmatpush1.msra.mxu0 0.0
    %926 = vmatprep.subr.mxu0 0.0
    %927 = vmatpush1.msra.mxu0 0.0
    %928 = vmatprep.subr.mxu0 0.0
    %929 = vmatpush1.msra.mxu0 0.0
    %930 = vmatprep.subr.mxu0 0.0
    %931 = vmatpush1.msra.mxu0 0.0
    %932 = vmatprep.subr.mxu0 0.0
    %933 = vmatpush1.msra.mxu0 0.0
    %934 = vmatprep.subr.mxu0 0.0
    %935 = vmatpush1.msra.mxu0 0.0
    %936 = vmatprep.subr.mxu0 0.0
    %937 = vmatpush1.msra.mxu0 0.0
    %938 = vmatprep.subr.mxu0 0.0
    %939 = vmatpush1.msra.mxu0 0.0
    %940 = vmatprep.subr.mxu0 0.0
    %941 = vmatpush1.msra.mxu0 0.0
    %942 = vmatprep.subr.mxu0 0.0
    %943 = vmatpush1.msra.mxu0 0.0
    %944 = vmatprep.subr.mxu0 0.0
    %945 = vmatpush1.msra.mxu0 0.0
    %946 = vmatprep.subr.mxu0 0.0
    %947 = vmatpush1.msra.mxu0 0.0
    %948 = vmatprep.subr.mxu0 0.0
    %949 = vmatpush1.msra.mxu0 0.0
    %950 = vmatprep.subr.mxu0 0.0
    %951 = vmatpush1.msra.mxu0 0.0
    %952 = vmatprep.subr.mxu0 0.0
    %953 = vmatpush1.msra.mxu0 0.0
    %954 = vmatprep.subr.mxu0 0.0
    %955 = vmatpush1.msra.mxu0 0.0
    %956 = vmatprep.subr.mxu0 0.0
    %957 = vmatpush1.msra.mxu0 0.0
    %958 = vmatprep.mubr.f32.mxu0 0.0
    %959 = vmatmul.mubr.f32.gmra.mrb[0].mxu0 %v544
    %v960 = vpop.f32.mrb[0].mxu0
    %v961 = vadd.f32 0.0, %v960
    %v962 = vpop.f32.mrb[0].mxu0
    %963 = vdwg.mxu0
    %965 = vset.pattern.permute.xlu0 0
    %966 = vperm.xlu0 %965, %v891
    %v967 = vpop.permute.xlu0 %966
    %v969 = vlaneseq
    %v970 = vshrl.u32 %v969, 7
    %v971 = vsub.s32 0, %v970
    %v972 = vrot.slane %v822, %v971
    %v973 = vadd.f32 %v967, %v972
    %v974 = vsub.f32 %v973, %v466
    %976 = vset.pattern.permute.xlu0 0
    %977 = vperm.xlu0 %976, %v961
    %v978 = vpop.permute.xlu0 %977
    %v980 = vlaneseq
    %v981 = vshrl.u32 %v980, 7
    %v982 = vsub.s32 0, %v981
    %v983 = vrot.slane %v823, %v982
    %v984 = vmul.f32 %v978, %v983
    %v985 = vmul.f32 %v974, %v984
    %v986 = vsub.f32 %v821, %v985
    %v987 = vand.u32 2147483647, %v986
    %vm988 = vcmp.lt.f32.partialorder %v987, 1.0
    %v989 = vmul.f32 %v986, 0.5
    %v990 = vmul.f32 %v989, %v986
    %v991 = vsub.f32 %v987, 0.5
    %v992 = vsel %vm988, %v990, %v991
    %v993 = vsel %vm117, %v992, 0.0
    %994 = vadd.xlane.f32.xlu0 %v993
    %v995 = vpop.xlane.xlu0 %994
    %v996 = vrot.slane %v995, 4
    %v997 = vadd.f32 %v995, %v996
    %v998 = vrot.slane %v997, 2
    %v999 = vadd.f32 %v997, %v998
    %v1000 = vrot.slane %v999, 1
    %v1001 = vadd.f32 %v999, %v1000
    %v1002 = vadd.f32 %v654, %v1001
    %vm1003 = vcmp.eq.s32.totalorder %v37, 2
    %v1004 = vsel %vm1003, 1, 0
    %v1005 = vcvt.s32.f32 %v1004
    %v1006 = vld [vmem:[#allocation2 + $0x2] sm:$0x1]
    %v1007 = vld [vmem:[#allocation3 + $0x2] sm:$0x1]
    %1008 = vmatprep.subr.mxu0 0.0
    %1009 = vmatpush1.msra.mxu0 %v1005
    %1010 = vmatprep.subr.mxu0 0.0
    %1011 = vmatpush1.msra.mxu0 0.0
    %1012 = vmatprep.subr.mxu0 0.0
    %1013 = vmatpush1.msra.mxu0 0.0
    %1014 = vmatprep.subr.mxu0 0.0
    %1015 = vmatpush1.msra.mxu0 0.0
    %1016 = vmatprep.subr.mxu0 0.0
    %1017 = vmatpush1.msra.mxu0 0.0
    %1018 = vmatprep.subr.mxu0 0.0
    %1019 = vmatpush1.msra.mxu0 0.0
    %1020 = vmatprep.subr.mxu0 0.0
    %1021 = vmatpush1.msra.mxu0 0.0
    %1022 = vmatprep.subr.mxu0 0.0
    %1023 = vmatpush1.msra.mxu0 0.0
    %1024 = vmatprep.subr.mxu0 0.0
    %1025 = vmatpush1.msra.mxu0 0.0
    %1026 = vmatprep.subr.mxu0 0.0
    %1027 = vmatpush1.msra.mxu0 0.0
    %1028 = vmatprep.subr.mxu0 0.0
    %1029 = vmatpush1.msra.mxu0 0.0
    %1030 = vmatprep.subr.mxu0 0.0
    %1031 = vmatpush1.msra.mxu0 0.0
    %1032 = vmatprep.subr.mxu0 0.0
    %1033 = vmatpush1.msra.mxu0 0.0
    %1034 = vmatprep.subr.mxu0 0.0
    %1035 = vmatpush1.msra.mxu0 0.0
    %1036 = vmatprep.subr.mxu0 0.0
    %1037 = vmatpush1.msra.mxu0 0.0
    %1038 = vmatprep.subr.mxu0 0.0
    %1039 = vmatpush1.msra.mxu0 0.0
    %1040 = vmatprep.subr.mxu0 0.0
    %1041 = vmatpush1.msra.mxu0 0.0
    %1042 = vmatprep.subr.mxu0 0.0
    %1043 = vmatpush1.msra.mxu0 0.0
    %1044 = vmatprep.subr.mxu0 0.0
    %1045 = vmatpush1.msra.mxu0 0.0
    %1046 = vmatprep.subr.mxu0 0.0
    %1047 = vmatpush1.msra.mxu0 0.0
    %1048 = vmatprep.subr.mxu0 0.0
    %1049 = vmatpush1.msra.mxu0 0.0
    %1050 = vmatprep.subr.mxu0 0.0
    %1051 = vmatpush1.msra.mxu0 0.0
    %1052 = vmatprep.subr.mxu0 0.0
    %1053 = vmatpush1.msra.mxu0 0.0
    %1054 = vmatprep.subr.mxu0 0.0
    %1055 = vmatpush1.msra.mxu0 0.0
    %1056 = vmatprep.subr.mxu0 0.0
    %1057 = vmatpush1.msra.mxu0 0.0
    %1058 = vmatprep.subr.mxu0 0.0
    %1059 = vmatpush1.msra.mxu0 0.0
    %1060 = vmatprep.subr.mxu0 0.0
    %1061 = vmatpush1.msra.mxu0 0.0
    %1062 = vmatprep.subr.mxu0 0.0
    %1063 = vmatpush1.msra.mxu0 0.0
    %1064 = vmatprep.subr.mxu0 0.0
    %1065 = vmatpush1.msra.mxu0 0.0
    %1066 = vmatprep.subr.mxu0 0.0
    %1067 = vmatpush1.msra.mxu0 0.0
    %1068 = vmatprep.subr.mxu0 0.0
    %1069 = vmatpush1.msra.mxu0 0.0
    %1070 = vmatprep.subr.mxu0 0.0
    %1071 = vmatpush1.msra.mxu0 0.0
    %1072 = vmatprep.mubr.f32.mxu0 0.0
    %1073 = vmatmul.mubr.f32.gmra.mrb[0].mxu0 %v299
    %v1074 = vpop.f32.mrb[0].mxu0
    %v1075 = vadd.f32 0.0, %v1074
    %v1076 = vpop.f32.mrb[0].mxu0
    %1077 = vdwg.mxu0
    %1078 = vmatprep.subr.mxu0 0.0
    %1079 = vmatpush1.msra.mxu0 %v1005
    %1080 = vmatprep.subr.mxu0 0.0
    %1081 = vmatpush1.msra.mxu0 0.0
    %1082 = vmatprep.subr.mxu0 0.0
    %1083 = vmatpush1.msra.mxu0 0.0
    %1084 = vmatprep.subr.mxu0 0.0
    %1085 = vmatpush1.msra.mxu0 0.0
    %1086 = vmatprep.subr.mxu0 0.0
    %1087 = vmatpush1.msra.mxu0 0.0
    %1088 = vmatprep.subr.mxu0 0.0
    %1089 = vmatpush1.msra.mxu0 0.0
    %1090 = vmatprep.subr.mxu0 0.0
    %1091 = vmatpush1.msra.mxu0 0.0
    %1092 = vmatprep.subr.mxu0 0.0
    %1093 = vmatpush1.msra.mxu0 0.0
    %1094 = vmatprep.subr.mxu0 0.0
    %1095 = vmatpush1.msra.mxu0 0.0
    %1096 = vmatprep.subr.mxu0 0.0
    %1097 = vmatpush1.msra.mxu0 0.0
    %1098 = vmatprep.subr.mxu0 0.0
    %1099 = vmatpush1.msra.mxu0 0.0
    %1100 = vmatprep.subr.mxu0 0.0
    %1101 = vmatpush1.msra.mxu0 0.0
    %1102 = vmatprep.subr.mxu0 0.0
    %1103 = vmatpush1.msra.mxu0 0.0
    %1104 = vmatprep.subr.mxu0 0.0
    %1105 = vmatpush1.msra.mxu0 0.0
    %1106 = vmatprep.subr.mxu0 0.0
    %1107 = vmatpush1.msra.mxu0 0.0
    %1108 = vmatprep.subr.mxu0 0.0
    %1109 = vmatpush1.msra.mxu0 0.0
    %1110 = vmatprep.subr.mxu0 0.0
    %1111 = vmatpush1.msra.mxu0 0.0
    %1112 = vmatprep.subr.mxu0 0.0
    %1113 = vmatpush1.msra.mxu0 0.0
    %1114 = vmatprep.subr.mxu0 0.0
    %1115 = vmatpush1.msra.mxu0 0.0
    %1116 = vmatprep.subr.mxu0 0.0
    %1117 = vmatpush1.msra.mxu0 0.0
    %1118 = vmatprep.subr.mxu0 0.0
    %1119 = vmatpush1.msra.mxu0 0.0
    %1120 = vmatprep.subr.mxu0 0.0
    %1121 = vmatpush1.msra.mxu0 0.0
    %1122 = vmatprep.subr.mxu0 0.0
    %1123 = vmatpush1.msra.mxu0 0.0
    %1124 = vmatprep.subr.mxu0 0.0
    %1125 = vmatpush1.msra.mxu0 0.0
    %1126 = vmatprep.subr.mxu0 0.0
    %1127 = vmatpush1.msra.mxu0 0.0
    %1128 = vmatprep.subr.mxu0 0.0
    %1129 = vmatpush1.msra.mxu0 0.0
    %1130 = vmatprep.subr.mxu0 0.0
    %1131 = vmatpush1.msra.mxu0 0.0
    %1132 = vmatprep.subr.mxu0 0.0
    %1133 = vmatpush1.msra.mxu0 0.0
    %1134 = vmatprep.subr.mxu0 0.0
    %1135 = vmatpush1.msra.mxu0 0.0
    %1136 = vmatprep.subr.mxu0 0.0
    %1137 = vmatpush1.msra.mxu0 0.0
    %1138 = vmatprep.subr.mxu0 0.0
    %1139 = vmatpush1.msra.mxu0 0.0
    %1140 = vmatprep.subr.mxu0 0.0
    %1141 = vmatpush1.msra.mxu0 0.0
    %1142 = vmatprep.mubr.f32.mxu0 0.0
    %1143 = vmatmul.mubr.f32.gmra.mrb[0].mxu0 %v372
    %v1144 = vpop.f32.mrb[0].mxu0
    %v1145 = vadd.f32 0.0, %v1144
    %v1146 = vpop.f32.mrb[0].mxu0
    %1147 = vdwg.mxu0
    %1149 = vset.pattern.permute.xlu0 0
    %1150 = vperm.xlu0 %1149, %v1075
    %v1151 = vpop.permute.xlu0 %1150
    %v1153 = vlaneseq
    %v1154 = vshrl.u32 %v1153, 7
    %v1155 = vsub.s32 0, %v1154
    %v1156 = vrot.slane %v1006, %v1155
    %v1157 = vadd.f32 %v1151, %v1156
    %v1158 = vsub.f32 %v1157, %v294
    %1160 = vset.pattern.permute.xlu0 0
    %1161 = vperm.xlu0 %1160, %v1145
    %v1162 = vpop.permute.xlu0 %1161
    %v1164 = vlaneseq
    %v1165 = vshrl.u32 %v1164, 7
    %v1166 = vsub.s32 0, %v1165
    %v1167 = vrot.slane %v1007, %v1166
    %v1168 = vmul.f32 %v1162, %v1167
    %v1169 = vmul.f32 %v1158, %v1168
    %v1170 = vld [vmem:[#allocation4 + $0x2] sm:$0x1]
    %v1171 = vld [vmem:[#allocation5 + $0x2] sm:$0x1]
    %1172 = vmatprep.subr.mxu0 0.0
    %1173 = vmatpush1.msra.mxu0 %v1005
    %1174 = vmatprep.subr.mxu0 0.0
    %1175 = vmatpush1.msra.mxu0 0.0
    %1176 = vmatprep.subr.mxu0 0.0
    %1177 = vmatpush1.msra.mxu0 0.0
    %1178 = vmatprep.subr.mxu0 0.0
    %1179 = vmatpush1.msra.mxu0 0.0
    %1180 = vmatprep.subr.mxu0 0.0
    %1181 = vmatpush1.msra.mxu0 0.0
    %1182 = vmatprep.subr.mxu0 0.0
    %1183 = vmatpush1.msra.mxu0 0.0
    %1184 = vmatprep.subr.mxu0 0.0
    %1185 = vmatpush1.msra.mxu0 0.0
    %1186 = vmatprep.subr.mxu0 0.0
    %1187 = vmatpush1.msra.mxu0 0.0
    %1188 = vmatprep.subr.mxu0 0.0
    %1189 = vmatpush1.msra.mxu0 0.0
    %1190 = vmatprep.subr.mxu0 0.0
    %1191 = vmatpush1.msra.mxu0 0.0
    %1192 = vmatprep.subr.mxu0 0.0
    %1193 = vmatpush1.msra.mxu0 0.0
    %1194 = vmatprep.subr.mxu0 0.0
    %1195 = vmatpush1.msra.mxu0 0.0
    %1196 = vmatprep.subr.mxu0 0.0
    %1197 = vmatpush1.msra.mxu0 0.0
    %1198 = vmatprep.subr.mxu0 0.0
    %1199 = vmatpush1.msra.mxu0 0.0
    %1200 = vmatprep.subr.mxu0 0.0
    %1201 = vmatpush1.msra.mxu0 0.0
    %1202 = vmatprep.subr.mxu0 0.0
    %1203 = vmatpush1.msra.mxu0 0.0
    %1204 = vmatprep.subr.mxu0 0.0
    %1205 = vmatpush1.msra.mxu0 0.0
    %1206 = vmatprep.subr.mxu0 0.0
    %1207 = vmatpush1.msra.mxu0 0.0
    %1208 = vmatprep.subr.mxu0 0.0
    %1209 = vmatpush1.msra.mxu0 0.0
    %1210 = vmatprep.subr.mxu0 0.0
    %1211 = vmatpush1.msra.mxu0 0.0
    %1212 = vmatprep.subr.mxu0 0.0
    %1213 = vmatpush1.msra.mxu0 0.0
    %1214 = vmatprep.subr.mxu0 0.0
    %1215 = vmatpush1.msra.mxu0 0.0
    %1216 = vmatprep.subr.mxu0 0.0
    %1217 = vmatpush1.msra.mxu0 0.0
    %1218 = vmatprep.subr.mxu0 0.0
    %1219 = vmatpush1.msra.mxu0 0.0
    %1220 = vmatprep.subr.mxu0 0.0
    %1221 = vmatpush1.msra.mxu0 0.0
    %1222 = vmatprep.subr.mxu0 0.0
    %1223 = vmatpush1.msra.mxu0 0.0
    %1224 = vmatprep.subr.mxu0 0.0
    %1225 = vmatpush1.msra.mxu0 0.0
    %1226 = vmatprep.subr.mxu0 0.0
    %1227 = vmatpush1.msra.mxu0 0.0
    %1228 = vmatprep.subr.mxu0 0.0
    %1229 = vmatpush1.msra.mxu0 0.0
    %1230 = vmatprep.subr.mxu0 0.0
    %1231 = vmatpush1.msra.mxu0 0.0
    %1232 = vmatprep.subr.mxu0 0.0
    %1233 = vmatpush1.msra.mxu0 0.0
    %1234 = vmatprep.subr.mxu0 0.0
    %1235 = vmatpush1.msra.mxu0 0.0
    %1236 = vmatprep.mubr.f32.mxu0 0.0
    %1237 = vmatmul.mubr.f32.gmra.mrb[0].mxu0 %v471
    %v1238 = vpop.f32.mrb[0].mxu0
    %v1239 = vadd.f32 0.0, %v1238
    %v1240 = vpop.f32.mrb[0].mxu0
    %1241 = vdwg.mxu0
    %1242 = vmatprep.subr.mxu0 0.0
    %1243 = vmatpush1.msra.mxu0 %v1005
    %1244 = vmatprep.subr.mxu0 0.0
    %1245 = vmatpush1.msra.mxu0 0.0
    %1246 = vmatprep.subr.mxu0 0.0
    %1247 = vmatpush1.msra.mxu0 0.0
    %1248 = vmatprep.subr.mxu0 0.0
    %1249 = vmatpush1.msra.mxu0 0.0
    %1250 = vmatprep.subr.mxu0 0.0
    %1251 = vmatpush1.msra.mxu0 0.0
    %1252 = vmatprep.subr.mxu0 0.0
    %1253 = vmatpush1.msra.mxu0 0.0
    %1254 = vmatprep.subr.mxu0 0.0
    %1255 = vmatpush1.msra.mxu0 0.0
    %1256 = vmatprep.subr.mxu0 0.0
    %1257 = vmatpush1.msra.mxu0 0.0
    %1258 = vmatprep.subr.mxu0 0.0
    %1259 = vmatpush1.msra.mxu0 0.0
    %1260 = vmatprep.subr.mxu0 0.0
    %1261 = vmatpush1.msra.mxu0 0.0
    %1262 = vmatprep.subr.mxu0 0.0
    %1263 = vmatpush1.msra.mxu0 0.0
    %1264 = vmatprep.subr.mxu0 0.0
    %1265 = vmatpush1.msra.mxu0 0.0
    %1266 = vmatprep.subr.mxu0 0.0
    %1267 = vmatpush1.msra.mxu0 0.0
    %1268 = vmatprep.subr.mxu0 0.0
    %1269 = vmatpush1.msra.mxu0 0.0
    %1270 = vmatprep.subr.mxu0 0.0
    %1271 = vmatpush1.msra.mxu0 0.0
    %1272 = vmatprep.subr.mxu0 0.0
    %1273 = vmatpush1.msra.mxu0 0.0
    %1274 = vmatprep.subr.mxu0 0.0
    %1275 = vmatpush1.msra.mxu0 0.0
    %1276 = vmatprep.subr.mxu0 0.0
    %1277 = vmatpush1.msra.mxu0 0.0
    %1278 = vmatprep.subr.mxu0 0.0
    %1279 = vmatpush1.msra.mxu0 0.0
    %1280 = vmatprep.subr.mxu0 0.0
    %1281 = vmatpush1.msra.mxu0 0.0
    %1282 = vmatprep.subr.mxu0 0.0
    %1283 = vmatpush1.msra.mxu0 0.0
    %1284 = vmatprep.subr.mxu0 0.0
    %1285 = vmatpush1.msra.mxu0 0.0
    %1286 = vmatprep.subr.mxu0 0.0
    %1287 = vmatpush1.msra.mxu0 0.0
    %1288 = vmatprep.subr.mxu0 0.0
    %1289 = vmatpush1.msra.mxu0 0.0
    %1290 = vmatprep.subr.mxu0 0.0
    %1291 = vmatpush1.msra.mxu0 0.0
    %1292 = vmatprep.subr.mxu0 0.0
    %1293 = vmatpush1.msra.mxu0 0.0
    %1294 = vmatprep.subr.mxu0 0.0
    %1295 = vmatpush1.msra.mxu0 0.0
    %1296 = vmatprep.subr.mxu0 0.0
    %1297 = vmatpush1.msra.mxu0 0.0
    %1298 = vmatprep.subr.mxu0 0.0
    %1299 = vmatpush1.msra.mxu0 0.0
    %1300 = vmatprep.subr.mxu0 0.0
    %1301 = vmatpush1.msra.mxu0 0.0
    %1302 = vmatprep.subr.mxu0 0.0
    %1303 = vmatpush1.msra.mxu0 0.0
    %1304 = vmatprep.subr.mxu0 0.0
    %1305 = vmatpush1.msra.mxu0 0.0
    %1306 = vmatprep.mubr.f32.mxu0 0.0
    %1307 = vmatmul.mubr.f32.gmra.mrb[0].mxu0 %v544
    %v1308 = vpop.f32.mrb[0].mxu0
    %v1309 = vadd.f32 0.0, %v1308
    %v1310 = vpop.f32.mrb[0].mxu0
    %1311 = vdwg.mxu0
    %1313 = vset.pattern.permute.xlu0 0
    %1314 = vperm.xlu0 %1313, %v1239
    %v1315 = vpop.permute.xlu0 %1314
    %v1317 = vlaneseq
    %v1318 = vshrl.u32 %v1317, 7
    %v1319 = vsub.s32 0, %v1318
    %v1320 = vrot.slane %v1170, %v1319
    %v1321 = vadd.f32 %v1315, %v1320
    %v1322 = vsub.f32 %v1321, %v466
    %1324 = vset.pattern.permute.xlu0 0
    %1325 = vperm.xlu0 %1324, %v1309
    %v1326 = vpop.permute.xlu0 %1325
    %v1328 = vlaneseq
    %v1329 = vshrl.u32 %v1328, 7
    %v1330 = vsub.s32 0, %v1329
    %v1331 = vrot.slane %v1171, %v1330
    %v1332 = vmul.f32 %v1326, %v1331
    %v1333 = vmul.f32 %v1322, %v1332
    %v1334 = vsub.f32 %v1169, %v1333
    %v1335 = vand.u32 2147483647, %v1334
    %vm1336 = vcmp.lt.f32.partialorder %v1335, 1.0
    %v1337 = vmul.f32 %v1334, 0.5
    %v1338 = vmul.f32 %v1337, %v1334
    %v1339 = vsub.f32 %v1335, 0.5
    %v1340 = vsel %vm1336, %v1338, %v1339
    %v1341 = vsel %vm117, %v1340, 0.0
    %1342 = vadd.xlane.f32.xlu0 %v1341
    %v1343 = vpop.xlane.xlu0 %1342
    %v1344 = vrot.slane %v1343, 4
    %v1345 = vadd.f32 %v1343, %v1344
    %v1346 = vrot.slane %v1345, 2
    %v1347 = vadd.f32 %v1345, %v1346
    %v1348 = vrot.slane %v1347, 1
    %v1349 = vadd.f32 %v1347, %v1348
    %v1350 = vadd.f32 %v1002, %v1349
    %vm1351 = vcmp.eq.s32.totalorder %v37, 3
    %v1352 = vsel %vm1351, 1, 0
    %v1353 = vcvt.s32.f32 %v1352
    %v1354 = vld [vmem:[#allocation2 + $0x3] sm:$0x1]
    %v1355 = vld [vmem:[#allocation3 + $0x3] sm:$0x1]
    %1356 = vmatprep.subr.mxu0 0.0
    %1357 = vmatpush1.msra.mxu0 %v1353
    %1358 = vmatprep.subr.mxu0 0.0
    %1359 = vmatpush1.msra.mxu0 0.0
    %1360 = vmatprep.subr.mxu0 0.0
    %1361 = vmatpush1.msra.mxu0 0.0
    %1362 = vmatprep.subr.mxu0 0.0
    %1363 = vmatpush1.msra.mxu0 0.0
    %1364 = vmatprep.subr.mxu0 0.0
    %1365 = vmatpush1.msra.mxu0 0.0
    %1366 = vmatprep.subr.mxu0 0.0
    %1367 = vmatpush1.msra.mxu0 0.0
    %1368 = vmatprep.subr.mxu0 0.0
    %1369 = vmatpush1.msra.mxu0 0.0
    %1370 = vmatprep.subr.mxu0 0.0
    %1371 = vmatpush1.msra.mxu0 0.0
    %1372 = vmatprep.subr.mxu0 0.0
    %1373 = vmatpush1.msra.mxu0 0.0
    %1374 = vmatprep.subr.mxu0 0.0
    %1375 = vmatpush1.msra.mxu0 0.0
    %1376 = vmatprep.subr.mxu0 0.0
    %1377 = vmatpush1.msra.mxu0 0.0
    %1378 = vmatprep.subr.mxu0 0.0
    %1379 = vmatpush1.msra.mxu0 0.0
    %1380 = vmatprep.subr.mxu0 0.0
    %1381 = vmatpush1.msra.mxu0 0.0
    %1382 = vmatprep.subr.mxu0 0.0
    %1383 = vmatpush1.msra.mxu0 0.0
    %1384 = vmatprep.subr.mxu0 0.0
    %1385 = vmatpush1.msra.mxu0 0.0
    %1386 = vmatprep.subr.mxu0 0.0
    %1387 = vmatpush1.msra.mxu0 0.0
    %1388 = vmatprep.subr.mxu0 0.0
    %1389 = vmatpush1.msra.mxu0 0.0
    %1390 = vmatprep.subr.mxu0 0.0
    %1391 = vmatpush1.msra.mxu0 0.0
    %1392 = vmatprep.subr.mxu0 0.0
    %1393 = vmatpush1.msra.mxu0 0.0
    %1394 = vmatprep.subr.mxu0 0.0
    %1395 = vmatpush1.msra.mxu0 0.0
    %1396 = vmatprep.subr.mxu0 0.0
    %1397 = vmatpush1.msra.mxu0 0.0
    %1398 = vmatprep.subr.mxu0 0.0
    %1399 = vmatpush1.msra.mxu0 0.0
    %1400 = vmatprep.subr.mxu0 0.0
    %1401 = vmatpush1.msra.mxu0 0.0
    %1402 = vmatprep.subr.mxu0 0.0
    %1403 = vmatpush1.msra.mxu0 0.0
    %1404 = vmatprep.subr.mxu0 0.0
    %1405 = vmatpush1.msra.mxu0 0.0
    %1406 = vmatprep.subr.mxu0 0.0
    %1407 = vmatpush1.msra.mxu0 0.0
    %1408 = vmatprep.subr.mxu0 0.0
    %1409 = vmatpush1.msra.mxu0 0.0
    %1410 = vmatprep.subr.mxu0 0.0
    %1411 = vmatpush1.msra.mxu0 0.0
    %1412 = vmatprep.subr.mxu0 0.0
    %1413 = vmatpush1.msra.mxu0 0.0
    %1414 = vmatprep.subr.mxu0 0.0
    %1415 = vmatpush1.msra.mxu0 0.0
    %1416 = vmatprep.subr.mxu0 0.0
    %1417 = vmatpush1.msra.mxu0 0.0
    %1418 = vmatprep.subr.mxu0 0.0
    %1419 = vmatpush1.msra.mxu0 0.0
    %1420 = vmatprep.mubr.f32.mxu0 0.0
    %1421 = vmatmul.mubr.f32.gmra.mrb[0].mxu0 %v299
    %v1422 = vpop.f32.mrb[0].mxu0
    %v1423 = vadd.f32 0.0, %v1422
    %v1424 = vpop.f32.mrb[0].mxu0
    %1425 = vdwg.mxu0
    %1426 = vmatprep.subr.mxu0 0.0
    %1427 = vmatpush1.msra.mxu0 %v1353
    %1428 = vmatprep.subr.mxu0 0.0
    %1429 = vmatpush1.msra.mxu0 0.0
    %1430 = vmatprep.subr.mxu0 0.0
    %1431 = vmatpush1.msra.mxu0 0.0
    %1432 = vmatprep.subr.mxu0 0.0
    %1433 = vmatpush1.msra.mxu0 0.0
    %1434 = vmatprep.subr.mxu0 0.0
    %1435 = vmatpush1.msra.mxu0 0.0
    %1436 = vmatprep.subr.mxu0 0.0
    %1437 = vmatpush1.msra.mxu0 0.0
    %1438 = vmatprep.subr.mxu0 0.0
    %1439 = vmatpush1.msra.mxu0 0.0
    %1440 = vmatprep.subr.mxu0 0.0
    %1441 = vmatpush1.msra.mxu0 0.0
    %1442 = vmatprep.subr.mxu0 0.0
    %1443 = vmatpush1.msra.mxu0 0.0
    %1444 = vmatprep.subr.mxu0 0.0
    %1445 = vmatpush1.msra.mxu0 0.0
    %1446 = vmatprep.subr.mxu0 0.0
    %1447 = vmatpush1.msra.mxu0 0.0
    %1448 = vmatprep.subr.mxu0 0.0
    %1449 = vmatpush1.msra.mxu0 0.0
    %1450 = vmatprep.subr.mxu0 0.0
    %1451 = vmatpush1.msra.mxu0 0.0
    %1452 = vmatprep.subr.mxu0 0.0
    %1453 = vmatpush1.msra.mxu0 0.0
    %1454 = vmatprep.subr.mxu0 0.0
    %1455 = vmatpush1.msra.mxu0 0.0
    %1456 = vmatprep.subr.mxu0 0.0
    %1457 = vmatpush1.msra.mxu0 0.0
    %1458 = vmatprep.subr.mxu0 0.0
    %1459 = vmatpush1.msra.mxu0 0.0
    %1460 = vmatprep.subr.mxu0 0.0
    %1461 = vmatpush1.msra.mxu0 0.0
    %1462 = vmatprep.subr.mxu0 0.0
    %1463 = vmatpush1.msra.mxu0 0.0
    %1464 = vmatprep.subr.mxu0 0.0
    %1465 = vmatpush1.msra.mxu0 0.0
    %1466 = vmatprep.subr.mxu0 0.0
    %1467 = vmatpush1.msra.mxu0 0.0
    %1468 = vmatprep.subr.mxu0 0.0
    %1469 = vmatpush1.msra.mxu0 0.0
    %1470 = vmatprep.subr.mxu0 0.0
    %1471 = vmatpush1.msra.mxu0 0.0
    %1472 = vmatprep.subr.mxu0 0.0
    %1473 = vmatpush1.msra.mxu0 0.0
    %1474 = vmatprep.subr.mxu0 0.0
    %1475 = vmatpush1.msra.mxu0 0.0
    %1476 = vmatprep.subr.mxu0 0.0
    %1477 = vmatpush1.msra.mxu0 0.0
    %1478 = vmatprep.subr.mxu0 0.0
    %1479 = vmatpush1.msra.mxu0 0.0
    %1480 = vmatprep.subr.mxu0 0.0
    %1481 = vmatpush1.msra.mxu0 0.0
    %1482 = vmatprep.subr.mxu0 0.0
    %1483 = vmatpush1.msra.mxu0 0.0
    %1484 = vmatprep.subr.mxu0 0.0
    %1485 = vmatpush1.msra.mxu0 0.0
    %1486 = vmatprep.subr.mxu0 0.0
    %1487 = vmatpush1.msra.mxu0 0.0
    %1488 = vmatprep.subr.mxu0 0.0
    %1489 = vmatpush1.msra.mxu0 0.0
    %1490 = vmatprep.mubr.f32.mxu0 0.0
    %1491 = vmatmul.mubr.f32.gmra.mrb[0].mxu0 %v372
    %v1492 = vpop.f32.mrb[0].mxu0
    %v1493 = vadd.f32 0.0, %v1492
    %v1494 = vpop.f32.mrb[0].mxu0
    %1495 = vdwg.mxu0
    %1497 = vset.pattern.permute.xlu0 0
    %1498 = vperm.xlu0 %1497, %v1423
    %v1499 = vpop.permute.xlu0 %1498
    %v1501 = vlaneseq
    %v1502 = vshrl.u32 %v1501, 7
    %v1503 = vsub.s32 0, %v1502
    %v1504 = vrot.slane %v1354, %v1503
    %v1505 = vadd.f32 %v1499, %v1504
    %v1506 = vsub.f32 %v1505, %v294
    %1508 = vset.pattern.permute.xlu0 0
    %1509 = vperm.xlu0 %1508, %v1493
    %v1510 = vpop.permute.xlu0 %1509
    %v1512 = vlaneseq
    %v1513 = vshrl.u32 %v1512, 7
    %v1514 = vsub.s32 0, %v1513
    %v1515 = vrot.slane %v1355, %v1514
    %v1516 = vmul.f32 %v1510, %v1515
    %v1517 = vmul.f32 %v1506, %v1516
    %v1518 = vld [vmem:[#allocation4 + $0x3] sm:$0x1]
    %v1519 = vld [vmem:[#allocation5 + $0x3] sm:$0x1]
    %1520 = vmatprep.subr.mxu0 0.0
    %1521 = vmatpush1.msra.mxu0 %v1353
    %1522 = vmatprep.subr.mxu0 0.0
    %1523 = vmatpush1.msra.mxu0 0.0
    %1524 = vmatprep.subr.mxu0 0.0
    %1525 = vmatpush1.msra.mxu0 0.0
    %1526 = vmatprep.subr.mxu0 0.0
    %1527 = vmatpush1.msra.mxu0 0.0
    %1528 = vmatprep.subr.mxu0 0.0
    %1529 = vmatpush1.msra.mxu0 0.0
    %1530 = vmatprep.subr.mxu0 0.0
    %1531 = vmatpush1.msra.mxu0 0.0
    %1532 = vmatprep.subr.mxu0 0.0
    %1533 = vmatpush1.msra.mxu0 0.0
    %1534 = vmatprep.subr.mxu0 0.0
    %1535 = vmatpush1.msra.mxu0 0.0
    %1536 = vmatprep.subr.mxu0 0.0
    %1537 = vmatpush1.msra.mxu0 0.0
    %1538 = vmatprep.subr.mxu0 0.0
    %1539 = vmatpush1.msra.mxu0 0.0
    %1540 = vmatprep.subr.mxu0 0.0
    %1541 = vmatpush1.msra.mxu0 0.0
    %1542 = vmatprep.subr.mxu0 0.0
    %1543 = vmatpush1.msra.mxu0 0.0
    %1544 = vmatprep.subr.mxu0 0.0
    %1545 = vmatpush1.msra.mxu0 0.0
    %1546 = vmatprep.subr.mxu0 0.0
    %1547 = vmatpush1.msra.mxu0 0.0
    %1548 = vmatprep.subr.mxu0 0.0
    %1549 = vmatpush1.msra.mxu0 0.0
    %1550 = vmatprep.subr.mxu0 0.0
    %1551 = vmatpush1.msra.mxu0 0.0
    %1552 = vmatprep.subr.mxu0 0.0
    %1553 = vmatpush1.msra.mxu0 0.0
    %1554 = vmatprep.subr.mxu0 0.0
    %1555 = vmatpush1.msra.mxu0 0.0
    %1556 = vmatprep.subr.mxu0 0.0
    %1557 = vmatpush1.msra.mxu0 0.0
    %1558 = vmatprep.subr.mxu0 0.0
    %1559 = vmatpush1.msra.mxu0 0.0
    %1560 = vmatprep.subr.mxu0 0.0
    %1561 = vmatpush1.msra.mxu0 0.0
    %1562 = vmatprep.subr.mxu0 0.0
    %1563 = vmatpush1.msra.mxu0 0.0
    %1564 = vmatprep.subr.mxu0 0.0
    %1565 = vmatpush1.msra.mxu0 0.0
    %1566 = vmatprep.subr.mxu0 0.0
    %1567 = vmatpush1.msra.mxu0 0.0
    %1568 = vmatprep.subr.mxu0 0.0
    %1569 = vmatpush1.msra.mxu0 0.0
    %1570 = vmatprep.subr.mxu0 0.0
    %1571 = vmatpush1.msra.mxu0 0.0
    %1572 = vmatprep.subr.mxu0 0.0
    %1573 = vmatpush1.msra.mxu0 0.0
    %1574 = vmatprep.subr.mxu0 0.0
    %1575 = vmatpush1.msra.mxu0 0.0
    %1576 = vmatprep.subr.mxu0 0.0
    %1577 = vmatpush1.msra.mxu0 0.0
    %1578 = vmatprep.subr.mxu0 0.0
    %1579 = vmatpush1.msra.mxu0 0.0
    %1580 = vmatprep.subr.mxu0 0.0
    %1581 = vmatpush1.msra.mxu0 0.0
    %1582 = vmatprep.subr.mxu0 0.0
    %1583 = vmatpush1.msra.mxu0 0.0
    %1584 = vmatprep.mubr.f32.mxu0 0.0
    %1585 = vmatmul.mubr.f32.gmra.mrb[0].mxu0 %v471
    %v1586 = vpop.f32.mrb[0].mxu0
    %v1587 = vadd.f32 0.0, %v1586
    %v1588 = vpop.f32.mrb[0].mxu0
    %1589 = vdwg.mxu0
    %1590 = vmatprep.subr.mxu0 0.0
    %1591 = vmatpush1.msra.mxu0 %v1353
    %1592 = vmatprep.subr.mxu0 0.0
    %1593 = vmatpush1.msra.mxu0 0.0
    %1594 = vmatprep.subr.mxu0 0.0
    %1595 = vmatpush1.msra.mxu0 0.0
    %1596 = vmatprep.subr.mxu0 0.0
    %1597 = vmatpush1.msra.mxu0 0.0
    %1598 = vmatprep.subr.mxu0 0.0
    %1599 = vmatpush1.msra.mxu0 0.0
    %1600 = vmatprep.subr.mxu0 0.0
    %1601 = vmatpush1.msra.mxu0 0.0
    %1602 = vmatprep.subr.mxu0 0.0
    %1603 = vmatpush1.msra.mxu0 0.0
    %1604 = vmatprep.subr.mxu0 0.0
    %1605 = vmatpush1.msra.mxu0 0.0
    %1606 = vmatprep.subr.mxu0 0.0
    %1607 = vmatpush1.msra.mxu0 0.0
    %1608 = vmatprep.subr.mxu0 0.0
    %1609 = vmatpush1.msra.mxu0 0.0
    %1610 = vmatprep.subr.mxu0 0.0
    %1611 = vmatpush1.msra.mxu0 0.0
    %1612 = vmatprep.subr.mxu0 0.0
    %1613 = vmatpush1.msra.mxu0 0.0
    %1614 = vmatprep.subr.mxu0 0.0
    %1615 = vmatpush1.msra.mxu0 0.0
    %1616 = vmatprep.subr.mxu0 0.0
    %1617 = vmatpush1.msra.mxu0 0.0
    %1618 = vmatprep.subr.mxu0 0.0
    %1619 = vmatpush1.msra.mxu0 0.0
    %1620 = vmatprep.subr.mxu0 0.0
    %1621 = vmatpush1.msra.mxu0 0.0
    %1622 = vmatprep.subr.mxu0 0.0
    %1623 = vmatpush1.msra.mxu0 0.0
    %1624 = vmatprep.subr.mxu0 0.0
    %1625 = vmatpush1.msra.mxu0 0.0
    %1626 = vmatprep.subr.mxu0 0.0
    %1627 = vmatpush1.msra.mxu0 0.0
    %1628 = vmatprep.subr.mxu0 0.0
    %1629 = vmatpush1.msra.mxu0 0.0
    %1630 = vmatprep.subr.mxu0 0.0
    %1631 = vmatpush1.msra.mxu0 0.0
    %1632 = vmatprep.subr.mxu0 0.0
    %1633 = vmatpush1.msra.mxu0 0.0
    %1634 = vmatprep.subr.mxu0 0.0
    %1635 = vmatpush1.msra.mxu0 0.0
    %1636 = vmatprep.subr.mxu0 0.0
    %1637 = vmatpush1.msra.mxu0 0.0
    %1638 = vmatprep.subr.mxu0 0.0
    %1639 = vmatpush1.msra.mxu0 0.0
    %1640 = vmatprep.subr.mxu0 0.0
    %1641 = vmatpush1.msra.mxu0 0.0
    %1642 = vmatprep.subr.mxu0 0.0
    %1643 = vmatpush1.msra.mxu0 0.0
    %1644 = vmatprep.subr.mxu0 0.0
    %1645 = vmatpush1.msra.mxu0 0.0
    %1646 = vmatprep.subr.mxu0 0.0
    %1647 = vmatpush1.msra.mxu0 0.0
    %1648 = vmatprep.subr.mxu0 0.0
    %1649 = vmatpush1.msra.mxu0 0.0
    %1650 = vmatprep.subr.mxu0 0.0
    %1651 = vmatpush1.msra.mxu0 0.0
    %1652 = vmatprep.subr.mxu0 0.0
    %1653 = vmatpush1.msra.mxu0 0.0
    %1654 = vmatprep.mubr.f32.mxu0 0.0
    %1655 = vmatmul.mubr.f32.gmra.mrb[0].mxu0 %v544
    %v1656 = vpop.f32.mrb[0].mxu0
    %v1657 = vadd.f32 0.0, %v1656
    %v1658 = vpop.f32.mrb[0].mxu0
    %1659 = vdwg.mxu0
    %1661 = vset.pattern.permute.xlu0 0
    %1662 = vperm.xlu0 %1661, %v1587
    %v1663 = vpop.permute.xlu0 %1662
    %v1665 = vlaneseq
    %v1666 = vshrl.u32 %v1665, 7
    %v1667 = vsub.s32 0, %v1666
    %v1668 = vrot.slane %v1518, %v1667
    %v1669 = vadd.f32 %v1663, %v1668
    %v1670 = vsub.f32 %v1669, %v466
    %1672 = vset.pattern.permute.xlu0 0
    %1673 = vperm.xlu0 %1672, %v1657
    %v1674 = vpop.permute.xlu0 %1673
    %v1676 = vlaneseq
    %v1677 = vshrl.u32 %v1676, 7
    %v1678 = vsub.s32 0, %v1677
    %v1679 = vrot.slane %v1519, %v1678
    %v1680 = vmul.f32 %v1674, %v1679
    %v1681 = vmul.f32 %v1670, %v1680
    %v1682 = vsub.f32 %v1517, %v1681
    %v1683 = vand.u32 2147483647, %v1682
    %vm1684 = vcmp.lt.f32.partialorder %v1683, 1.0
    %v1685 = vmul.f32 %v1682, 0.5
    %v1686 = vmul.f32 %v1685, %v1682
    %v1687 = vsub.f32 %v1683, 0.5
    %v1688 = vsel %vm1684, %v1686, %v1687
    %v1689 = vsel %vm117, %v1688, 0.0
    %1690 = vadd.xlane.f32.xlu0 %v1689
    %v1691 = vpop.xlane.xlu0 %1690
    %v1692 = vrot.slane %v1691, 4
    %v1693 = vadd.f32 %v1691, %v1692
    %v1694 = vrot.slane %v1693, 2
    %v1695 = vadd.f32 %v1693, %v1694
    %v1696 = vrot.slane %v1695, 1
    %v1697 = vadd.f32 %v1695, %v1696
    %v1698 = vadd.f32 %v1350, %v1697
    %vm1699 = vcmp.eq.s32.totalorder %v37, 4
    %v1700 = vsel %vm1699, 1, 0
    %v1701 = vcvt.s32.f32 %v1700
    %v1702 = vld [vmem:[#allocation2 + $0x4] sm:$0x1]
    %v1703 = vld [vmem:[#allocation3 + $0x4] sm:$0x1]
    %1704 = vmatprep.subr.mxu0 0.0
    %1705 = vmatpush1.msra.mxu0 %v1701
    %1706 = vmatprep.subr.mxu0 0.0
    %1707 = vmatpush1.msra.mxu0 0.0
    %1708 = vmatprep.subr.mxu0 0.0
    %1709 = vmatpush1.msra.mxu0 0.0
    %1710 = vmatprep.subr.mxu0 0.0
    %1711 = vmatpush1.msra.mxu0 0.0
    %1712 = vmatprep.subr.mxu0 0.0
    %1713 = vmatpush1.msra.mxu0 0.0
    %1714 = vmatprep.subr.mxu0 0.0
    %1715 = vmatpush1.msra.mxu0 0.0
    %1716 = vmatprep.subr.mxu0 0.0
    %1717 = vmatpush1.msra.mxu0 0.0
    %1718 = vmatprep.subr.mxu0 0.0
    %1719 = vmatpush1.msra.mxu0 0.0
    %1720 = vmatprep.subr.mxu0 0.0
    %1721 = vmatpush1.msra.mxu0 0.0
    %1722 = vmatprep.subr.mxu0 0.0
    %1723 = vmatpush1.msra.mxu0 0.0
    %1724 = vmatprep.subr.mxu0 0.0
    %1725 = vmatpush1.msra.mxu0 0.0
    %1726 = vmatprep.subr.mxu0 0.0
    %1727 = vmatpush1.msra.mxu0 0.0
    %1728 = vmatprep.subr.mxu0 0.0
    %1729 = vmatpush1.msra.mxu0 0.0
    %1730 = vmatprep.subr.mxu0 0.0
    %1731 = vmatpush1.msra.mxu0 0.0
    %1732 = vmatprep.subr.mxu0 0.0
    %1733 = vmatpush1.msra.mxu0 0.0
    %1734 = vmatprep.subr.mxu0 0.0
    %1735 = vmatpush1.msra.mxu0 0.0
    %1736 = vmatprep.subr.mxu0 0.0
    %1737 = vmatpush1.msra.mxu0 0.0
    %1738 = vmatprep.subr.mxu0 0.0
    %1739 = vmatpush1.msra.mxu0 0.0
    %1740 = vmatprep.subr.mxu0 0.0
    %1741 = vmatpush1.msra.mxu0 0.0
    %1742 = vmatprep.subr.mxu0 0.0
    %1743 = vmatpush1.msra.mxu0 0.0
    %1744 = vmatprep.subr.mxu0 0.0
    %1745 = vmatpush1.msra.mxu0 0.0
    %1746 = vmatprep.subr.mxu0 0.0
    %1747 = vmatpush1.msra.mxu0 0.0
    %1748 = vmatprep.subr.mxu0 0.0
    %1749 = vmatpush1.msra.mxu0 0.0
    %1750 = vmatprep.subr.mxu0 0.0
    %1751 = vmatpush1.msra.mxu0 0.0
    %1752 = vmatprep.subr.mxu0 0.0
    %1753 = vmatpush1.msra.mxu0 0.0
    %1754 = vmatprep.subr.mxu0 0.0
    %1755 = vmatpush1.msra.mxu0 0.0
    %1756 = vmatprep.subr.mxu0 0.0
    %1757 = vmatpush1.msra.mxu0 0.0
    %1758 = vmatprep.subr.mxu0 0.0
    %1759 = vmatpush1.msra.mxu0 0.0
    %1760 = vmatprep.subr.mxu0 0.0
    %1761 = vmatpush1.msra.mxu0 0.0
    %1762 = vmatprep.subr.mxu0 0.0
    %1763 = vmatpush1.msra.mxu0 0.0
    %1764 = vmatprep.subr.mxu0 0.0
    %1765 = vmatpush1.msra.mxu0 0.0
    %1766 = vmatprep.subr.mxu0 0.0
    %1767 = vmatpush1.msra.mxu0 0.0
    %1768 = vmatprep.mubr.f32.mxu0 0.0
    %1769 = vmatmul.mubr.f32.gmra.mrb[0].mxu0 %v299
    %v1770 = vpop.f32.mrb[0].mxu0
    %v1771 = vadd.f32 0.0, %v1770
    %v1772 = vpop.f32.mrb[0].mxu0
    %1773 = vdwg.mxu0
    %1774 = vmatprep.subr.mxu0 0.0
    %1775 = vmatpush1.msra.mxu0 %v1701
    %1776 = vmatprep.subr.mxu0 0.0
    %1777 = vmatpush1.msra.mxu0 0.0
    %1778 = vmatprep.subr.mxu0 0.0
    %1779 = vmatpush1.msra.mxu0 0.0
    %1780 = vmatprep.subr.mxu0 0.0
    %1781 = vmatpush1.msra.mxu0 0.0
    %1782 = vmatprep.subr.mxu0 0.0
    %1783 = vmatpush1.msra.mxu0 0.0
    %1784 = vmatprep.subr.mxu0 0.0
    %1785 = vmatpush1.msra.mxu0 0.0
    %1786 = vmatprep.subr.mxu0 0.0
    %1787 = vmatpush1.msra.mxu0 0.0
    %1788 = vmatprep.subr.mxu0 0.0
    %1789 = vmatpush1.msra.mxu0 0.0
    %1790 = vmatprep.subr.mxu0 0.0
    %1791 = vmatpush1.msra.mxu0 0.0
    %1792 = vmatprep.subr.mxu0 0.0
    %1793 = vmatpush1.msra.mxu0 0.0
    %1794 = vmatprep.subr.mxu0 0.0
    %1795 = vmatpush1.msra.mxu0 0.0
    %1796 = vmatprep.subr.mxu0 0.0
    %1797 = vmatpush1.msra.mxu0 0.0
    %1798 = vmatprep.subr.mxu0 0.0
    %1799 = vmatpush1.msra.mxu0 0.0
    %1800 = vmatprep.subr.mxu0 0.0
    %1801 = vmatpush1.msra.mxu0 0.0
    %1802 = vmatprep.subr.mxu0 0.0
    %1803 = vmatpush1.msra.mxu0 0.0
    %1804 = vmatprep.subr.mxu0 0.0
    %1805 = vmatpush1.msra.mxu0 0.0
    %1806 = vmatprep.subr.mxu0 0.0
    %1807 = vmatpush1.msra.mxu0 0.0
    %1808 = vmatprep.subr.mxu0 0.0
    %1809 = vmatpush1.msra.mxu0 0.0
    %1810 = vmatprep.subr.mxu0 0.0
    %1811 = vmatpush1.msra.mxu0 0.0
    %1812 = vmatprep.subr.mxu0 0.0
    %1813 = vmatpush1.msra.mxu0 0.0
    %1814 = vmatprep.subr.mxu0 0.0
    %1815 = vmatpush1.msra.mxu0 0.0
    %1816 = vmatprep.subr.mxu0 0.0
    %1817 = vmatpush1.msra.mxu0 0.0
    %1818 = vmatprep.subr.mxu0 0.0
    %1819 = vmatpush1.msra.mxu0 0.0
    %1820 = vmatprep.subr.mxu0 0.0
    %1821 = vmatpush1.msra.mxu0 0.0
    %1822 = vmatprep.subr.mxu0 0.0
    %1823 = vmatpush1.msra.mxu0 0.0
    %1824 = vmatprep.subr.mxu0 0.0
    %1825 = vmatpush1.msra.mxu0 0.0
    %1826 = vmatprep.subr.mxu0 0.0
    %1827 = vmatpush1.msra.mxu0 0.0
    %1828 = vmatprep.subr.mxu0 0.0
    %1829 = vmatpush1.msra.mxu0 0.0
    %1830 = vmatprep.subr.mxu0 0.0
    %1831 = vmatpush1.msra.mxu0 0.0
    %1832 = vmatprep.subr.mxu0 0.0
    %1833 = vmatpush1.msra.mxu0 0.0
    %1834 = vmatprep.subr.mxu0 0.0
    %1835 = vmatpush1.msra.mxu0 0.0
    %1836 = vmatprep.subr.mxu0 0.0
    %1837 = vmatpush1.msra.mxu0 0.0
    %1838 = vmatprep.mubr.f32.mxu0 0.0
    %1839 = vmatmul.mubr.f32.gmra.mrb[0].mxu0 %v372
    %v1840 = vpop.f32.mrb[0].mxu0
    %v1841 = vadd.f32 0.0, %v1840
    %v1842 = vpop.f32.mrb[0].mxu0
    %1843 = vdwg.mxu0
    %1845 = vset.pattern.permute.xlu0 0
    %1846 = vperm.xlu0 %1845, %v1771
    %v1847 = vpop.permute.xlu0 %1846
    %v1849 = vlaneseq
    %v1850 = vshrl.u32 %v1849, 7
    %v1851 = vsub.s32 0, %v1850
    %v1852 = vrot.slane %v1702, %v1851
    %v1853 = vadd.f32 %v1847, %v1852
    %v1854 = vsub.f32 %v1853, %v294
    %1856 = vset.pattern.permute.xlu0 0
    %1857 = vperm.xlu0 %1856, %v1841
    %v1858 = vpop.permute.xlu0 %1857
    %v1860 = vlaneseq
    %v1861 = vshrl.u32 %v1860, 7
    %v1862 = vsub.s32 0, %v1861
    %v1863 = vrot.slane %v1703, %v1862
    %v1864 = vmul.f32 %v1858, %v1863
    %v1865 = vmul.f32 %v1854, %v1864
    %v1866 = vld [vmem:[#allocation4 + $0x4] sm:$0x1]
    %v1867 = vld [vmem:[#allocation5 + $0x4] sm:$0x1]
    %1868 = vmatprep.subr.mxu0 0.0
    %1869 = vmatpush1.msra.mxu0 %v1701
    %1870 = vmatprep.subr.mxu0 0.0
    %1871 = vmatpush1.msra.mxu0 0.0
    %1872 = vmatprep.subr.mxu0 0.0
    %1873 = vmatpush1.msra.mxu0 0.0
    %1874 = vmatprep.subr.mxu0 0.0
    %1875 = vmatpush1.msra.mxu0 0.0
    %1876 = vmatprep.subr.mxu0 0.0
    %1877 = vmatpush1.msra.mxu0 0.0
    %1878 = vmatprep.subr.mxu0 0.0
    %1879 = vmatpush1.msra.mxu0 0.0
    %1880 = vmatprep.subr.mxu0 0.0
    %1881 = vmatpush1.msra.mxu0 0.0
    %1882 = vmatprep.subr.mxu0 0.0
    %1883 = vmatpush1.msra.mxu0 0.0
    %1884 = vmatprep.subr.mxu0 0.0
    %1885 = vmatpush1.msra.mxu0 0.0
    %1886 = vmatprep.subr.mxu0 0.0
    %1887 = vmatpush1.msra.mxu0 0.0
    %1888 = vmatprep.subr.mxu0 0.0
    %1889 = vmatpush1.msra.mxu0 0.0
    %1890 = vmatprep.subr.mxu0 0.0
    %1891 = vmatpush1.msra.mxu0 0.0
    %1892 = vmatprep.subr.mxu0 0.0
    %1893 = vmatpush1.msra.mxu0 0.0
    %1894 = vmatprep.subr.mxu0 0.0
    %1895 = vmatpush1.msra.mxu0 0.0
    %1896 = vmatprep.subr.mxu0 0.0
    %1897 = vmatpush1.msra.mxu0 0.0
    %1898 = vmatprep.subr.mxu0 0.0
    %1899 = vmatpush1.msra.mxu0 0.0
    %1900 = vmatprep.subr.mxu0 0.0
    %1901 = vmatpush1.msra.mxu0 0.0
    %1902 = vmatprep.subr.mxu0 0.0
    %1903 = vmatpush1.msra.mxu0 0.0
    %1904 = vmatprep.subr.mxu0 0.0
    %1905 = vmatpush1.msra.mxu0 0.0
    %1906 = vmatprep.subr.mxu0 0.0
    %1907 = vmatpush1.msra.mxu0 0.0
    %1908 = vmatprep.subr.mxu0 0.0
    %1909 = vmatpush1.msra.mxu0 0.0
    %1910 = vmatprep.subr.mxu0 0.0
    %1911 = vmatpush1.msra.mxu0 0.0
    %1912 = vmatprep.subr.mxu0 0.0
    %1913 = vmatpush1.msra.mxu0 0.0
    %1914 = vmatprep.subr.mxu0 0.0
    %1915 = vmatpush1.msra.mxu0 0.0
    %1916 = vmatprep.subr.mxu0 0.0
    %1917 = vmatpush1.msra.mxu0 0.0
    %1918 = vmatprep.subr.mxu0 0.0
    %1919 = vmatpush1.msra.mxu0 0.0
    %1920 = vmatprep.subr.mxu0 0.0
    %1921 = vmatpush1.msra.mxu0 0.0
    %1922 = vmatprep.subr.mxu0 0.0
    %1923 = vmatpush1.msra.mxu0 0.0
    %1924 = vmatprep.subr.mxu0 0.0
    %1925 = vmatpush1.msra.mxu0 0.0
    %1926 = vmatprep.subr.mxu0 0.0
    %1927 = vmatpush1.msra.mxu0 0.0
    %1928 = vmatprep.subr.mxu0 0.0
    %1929 = vmatpush1.msra.mxu0 0.0
    %1930 = vmatprep.subr.mxu0 0.0
    %1931 = vmatpush1.msra.mxu0 0.0
    %1932 = vmatprep.mubr.f32.mxu0 0.0
    %1933 = vmatmul.mubr.f32.gmra.mrb[0].mxu0 %v471
    %v1934 = vpop.f32.mrb[0].mxu0
    %v1935 = vadd.f32 0.0, %v1934
    %v1936 = vpop.f32.mrb[0].mxu0
    %1937 = vdwg.mxu0
    %1938 = vmatprep.subr.mxu0 0.0
    %1939 = vmatpush1.msra.mxu0 %v1701
    %1940 = vmatprep.subr.mxu0 0.0
    %1941 = vmatpush1.msra.mxu0 0.0
    %1942 = vmatprep.subr.mxu0 0.0
    %1943 = vmatpush1.msra.mxu0 0.0
    %1944 = vmatprep.subr.mxu0 0.0
    %1945 = vmatpush1.msra.mxu0 0.0
    %1946 = vmatprep.subr.mxu0 0.0
    %1947 = vmatpush1.msra.mxu0 0.0
    %1948 = vmatprep.subr.mxu0 0.0
    %1949 = vmatpush1.msra.mxu0 0.0
    %1950 = vmatprep.subr.mxu0 0.0
    %1951 = vmatpush1.msra.mxu0 0.0
    %1952 = vmatprep.subr.mxu0 0.0
    %1953 = vmatpush1.msra.mxu0 0.0
    %1954 = vmatprep.subr.mxu0 0.0
    %1955 = vmatpush1.msra.mxu0 0.0
    %1956 = vmatprep.subr.mxu0 0.0
    %1957 = vmatpush1.msra.mxu0 0.0
    %1958 = vmatprep.subr.mxu0 0.0
    %1959 = vmatpush1.msra.mxu0 0.0
    %1960 = vmatprep.subr.mxu0 0.0
    %1961 = vmatpush1.msra.mxu0 0.0
    %1962 = vmatprep.subr.mxu0 0.0
    %1963 = vmatpush1.msra.mxu0 0.0
    %1964 = vmatprep.subr.mxu0 0.0
    %1965 = vmatpush1.msra.mxu0 0.0
    %1966 = vmatprep.subr.mxu0 0.0
    %1967 = vmatpush1.msra.mxu0 0.0
    %1968 = vmatprep.subr.mxu0 0.0
    %1969 = vmatpush1.msra.mxu0 0.0
    %1970 = vmatprep.subr.mxu0 0.0
    %1971 = vmatpush1.msra.mxu0 0.0
    %1972 = vmatprep.subr.mxu0 0.0
    %1973 = vmatpush1.msra.mxu0 0.0
    %1974 = vmatprep.subr.mxu0 0.0
    %1975 = vmatpush1.msra.mxu0 0.0
    %1976 = vmatprep.subr.mxu0 0.0
    %1977 = vmatpush1.msra.mxu0 0.0
    %1978 = vmatprep.subr.mxu0 0.0
    %1979 = vmatpush1.msra.mxu0 0.0
    %1980 = vmatprep.subr.mxu0 0.0
    %1981 = vmatpush1.msra.mxu0 0.0
    %1982 = vmatprep.subr.mxu0 0.0
    %1983 = vmatpush1.msra.mxu0 0.0
    %1984 = vmatprep.subr.mxu0 0.0
    %1985 = vmatpush1.msra.mxu0 0.0
    %1986 = vmatprep.subr.mxu0 0.0
    %1987 = vmatpush1.msra.mxu0 0.0
    %1988 = vmatprep.subr.mxu0 0.0
    %1989 = vmatpush1.msra.mxu0 0.0
    %1990 = vmatprep.subr.mxu0 0.0
    %1991 = vmatpush1.msra.mxu0 0.0
    %1992 = vmatprep.subr.mxu0 0.0
    %1993 = vmatpush1.msra.mxu0 0.0
    %1994 = vmatprep.subr.mxu0 0.0
    %1995 = vmatpush1.msra.mxu0 0.0
    %1996 = vmatprep.subr.mxu0 0.0
    %1997 = vmatpush1.msra.mxu0 0.0
    %1998 = vmatprep.subr.mxu0 0.0
    %1999 = vmatpush1.msra.mxu0 0.0
    %2000 = vmatprep.subr.mxu0 0.0
    %2001 = vmatpush1.msra.mxu0 0.0
    %2002 = vmatprep.mubr.f32.mxu0 0.0
    %2003 = vmatmul.mubr.f32.gmra.mrb[0].mxu0 %v544
    %v2004 = vpop.f32.mrb[0].mxu0
    %v2005 = vadd.f32 0.0, %v2004
    %v2006 = vpop.f32.mrb[0].mxu0
    %2007 = vdwg.mxu0
    %2009 = vset.pattern.permute.xlu0 0
    %2010 = vperm.xlu0 %2009, %v1935
    %v2011 = vpop.permute.xlu0 %2010
    %v2013 = vlaneseq
    %v2014 = vshrl.u32 %v2013, 7
    %v2015 = vsub.s32 0, %v2014
    %v2016 = vrot.slane %v1866, %v2015
    %v2017 = vadd.f32 %v2011, %v2016
    %v2018 = vsub.f32 %v2017, %v466
    %2020 = vset.pattern.permute.xlu0 0
    %2021 = vperm.xlu0 %2020, %v2005
    %v2022 = vpop.permute.xlu0 %2021
    %v2024 = vlaneseq
    %v2025 = vshrl.u32 %v2024, 7
    %v2026 = vsub.s32 0, %v2025
    %v2027 = vrot.slane %v1867, %v2026
    %v2028 = vmul.f32 %v2022, %v2027
    %v2029 = vmul.f32 %v2018, %v2028
    %v2030 = vsub.f32 %v1865, %v2029
    %v2031 = vand.u32 2147483647, %v2030
    %vm2032 = vcmp.lt.f32.partialorder %v2031, 1.0
    %v2033 = vmul.f32 %v2030, 0.5
    %v2034 = vmul.f32 %v2033, %v2030
    %v2035 = vsub.f32 %v2031, 0.5
    %v2036 = vsel %vm2032, %v2034, %v2035
    %v2037 = vsel %vm117, %v2036, 0.0
    %2038 = vadd.xlane.f32.xlu0 %v2037
    %v2039 = vpop.xlane.xlu0 %2038
    %v2040 = vrot.slane %v2039, 4
    %v2041 = vadd.f32 %v2039, %v2040
    %v2042 = vrot.slane %v2041, 2
    %v2043 = vadd.f32 %v2041, %v2042
    %v2044 = vrot.slane %v2043, 1
    %v2045 = vadd.f32 %v2043, %v2044
    %v2046 = vadd.f32 %v1698, %v2045
    %vm2047 = vcmp.eq.s32.totalorder %v37, 5
    %v2048 = vsel %vm2047, 1, 0
    %v2049 = vcvt.s32.f32 %v2048
    %v2050 = vld [vmem:[#allocation2 + $0x5] sm:$0x1]
    %v2051 = vld [vmem:[#allocation3 + $0x5] sm:$0x1]
    %2052 = vmatprep.subr.mxu0 0.0
    %2053 = vmatpush1.msra.mxu0 %v2049
    %2054 = vmatprep.subr.mxu0 0.0
    %2055 = vmatpush1.msra.mxu0 0.0
    %2056 = vmatprep.subr.mxu0 0.0
    %2057 = vmatpush1.msra.mxu0 0.0
    %2058 = vmatprep.subr.mxu0 0.0
    %2059 = vmatpush1.msra.mxu0 0.0
    %2060 = vmatprep.subr.mxu0 0.0
    %2061 = vmatpush1.msra.mxu0 0.0
    %2062 = vmatprep.subr.mxu0 0.0
    %2063 = vmatpush1.msra.mxu0 0.0
    %2064 = vmatprep.subr.mxu0 0.0
    %2065 = vmatpush1.msra.mxu0 0.0
    %2066 = vmatprep.subr.mxu0 0.0
    %2067 = vmatpush1.msra.mxu0 0.0
    %2068 = vmatprep.subr.mxu0 0.0
    %2069 = vmatpush1.msra.mxu0 0.0
    %2070 = vmatprep.subr.mxu0 0.0
    %2071 = vmatpush1.msra.mxu0 0.0
    %2072 = vmatprep.subr.mxu0 0.0
    %2073 = vmatpush1.msra.mxu0 0.0
    %2074 = vmatprep.subr.mxu0 0.0
    %2075 = vmatpush1.msra.mxu0 0.0
    %2076 = vmatprep.subr.mxu0 0.0
    %2077 = vmatpush1.msra.mxu0 0.0
    %2078 = vmatprep.subr.mxu0 0.0
    %2079 = vmatpush1.msra.mxu0 0.0
    %2080 = vmatprep.subr.mxu0 0.0
    %2081 = vmatpush1.msra.mxu0 0.0
    %2082 = vmatprep.subr.mxu0 0.0
    %2083 = vmatpush1.msra.mxu0 0.0
    %2084 = vmatprep.subr.mxu0 0.0
    %2085 = vmatpush1.msra.mxu0 0.0
    %2086 = vmatprep.subr.mxu0 0.0
    %2087 = vmatpush1.msra.mxu0 0.0
    %2088 = vmatprep.subr.mxu0 0.0
    %2089 = vmatpush1.msra.mxu0 0.0
    %2090 = vmatprep.subr.mxu0 0.0
    %2091 = vmatpush1.msra.mxu0 0.0
    %2092 = vmatprep.subr.mxu0 0.0
    %2093 = vmatpush1.msra.mxu0 0.0
    %2094 = vmatprep.subr.mxu0 0.0
    %2095 = vmatpush1.msra.mxu0 0.0
    %2096 = vmatprep.subr.mxu0 0.0
    %2097 = vmatpush1.msra.mxu0 0.0
    %2098 = vmatprep.subr.mxu0 0.0
    %2099 = vmatpush1.msra.mxu0 0.0
    %2100 = vmatprep.subr.mxu0 0.0
    %2101 = vmatpush1.msra.mxu0 0.0
    %2102 = vmatprep.subr.mxu0 0.0
    %2103 = vmatpush1.msra.mxu0 0.0
    %2104 = vmatprep.subr.mxu0 0.0
    %2105 = vmatpush1.msra.mxu0 0.0
    %2106 = vmatprep.subr.mxu0 0.0
    %2107 = vmatpush1.msra.mxu0 0.0
    %2108 = vmatprep.subr.mxu0 0.0
    %2109 = vmatpush1.msra.mxu0 0.0
    %2110 = vmatprep.subr.mxu0 0.0
    %2111 = vmatpush1.msra.mxu0 0.0
    %2112 = vmatprep.subr.mxu0 0.0
    %2113 = vmatpush1.msra.mxu0 0.0
    %2114 = vmatprep.subr.mxu0 0.0
    %2115 = vmatpush1.msra.mxu0 0.0
    %2116 = vmatprep.mubr.f32.mxu0 0.0
    %2117 = vmatmul.mubr.f32.gmra.mrb[0].mxu0 %v299
    %v2118 = vpop.f32.mrb[0].mxu0
    %v2119 = vadd.f32 0.0, %v2118
    %v2120 = vpop.f32.mrb[0].mxu0
    %2121 = vdwg.mxu0
    %2122 = vmatprep.subr.mxu0 0.0
    %2123 = vmatpush1.msra.mxu0 %v2049
    %2124 = vmatprep.subr.mxu0 0.0
    %2125 = vmatpush1.msra.mxu0 0.0
    %2126 = vmatprep.subr.mxu0 0.0
    %2127 = vmatpush1.msra.mxu0 0.0
    %2128 = vmatprep.subr.mxu0 0.0
    %2129 = vmatpush1.msra.mxu0 0.0
    %2130 = vmatprep.subr.mxu0 0.0
    %2131 = vmatpush1.msra.mxu0 0.0
    %2132 = vmatprep.subr.mxu0 0.0
    %2133 = vmatpush1.msra.mxu0 0.0
    %2134 = vmatprep.subr.mxu0 0.0
    %2135 = vmatpush1.msra.mxu0 0.0
    %2136 = vmatprep.subr.mxu0 0.0
    %2137 = vmatpush1.msra.mxu0 0.0
    %2138 = vmatprep.subr.mxu0 0.0
    %2139 = vmatpush1.msra.mxu0 0.0
    %2140 = vmatprep.subr.mxu0 0.0
    %2141 = vmatpush1.msra.mxu0 0.0
    %2142 = vmatprep.subr.mxu0 0.0
    %2143 = vmatpush1.msra.mxu0 0.0
    %2144 = vmatprep.subr.mxu0 0.0
    %2145 = vmatpush1.msra.mxu0 0.0
    %2146 = vmatprep.subr.mxu0 0.0
    %2147 = vmatpush1.msra.mxu0 0.0
    %2148 = vmatprep.subr.mxu0 0.0
    %2149 = vmatpush1.msra.mxu0 0.0
    %2150 = vmatprep.subr.mxu0 0.0
    %2151 = vmatpush1.msra.mxu0 0.0
    %2152 = vmatprep.subr.mxu0 0.0
    %2153 = vmatpush1.msra.mxu0 0.0
    %2154 = vmatprep.subr.mxu0 0.0
    %2155 = vmatpush1.msra.mxu0 0.0
    %2156 = vmatprep.subr.mxu0 0.0
    %2157 = vmatpush1.msra.mxu0 0.0
    %2158 = vmatprep.subr.mxu0 0.0
    %2159 = vmatpush1.msra.mxu0 0.0
    %2160 = vmatprep.subr.mxu0 0.0
    %2161 = vmatpush1.msra.mxu0 0.0
    %2162 = vmatprep.subr.mxu0 0.0
    %2163 = vmatpush1.msra.mxu0 0.0
    %2164 = vmatprep.subr.mxu0 0.0
    %2165 = vmatpush1.msra.mxu0 0.0
    %2166 = vmatprep.subr.mxu0 0.0
    %2167 = vmatpush1.msra.mxu0 0.0
    %2168 = vmatprep.subr.mxu0 0.0
    %2169 = vmatpush1.msra.mxu0 0.0
    %2170 = vmatprep.subr.mxu0 0.0
    %2171 = vmatpush1.msra.mxu0 0.0
    %2172 = vmatprep.subr.mxu0 0.0
    %2173 = vmatpush1.msra.mxu0 0.0
    %2174 = vmatprep.subr.mxu0 0.0
    %2175 = vmatpush1.msra.mxu0 0.0
    %2176 = vmatprep.subr.mxu0 0.0
    %2177 = vmatpush1.msra.mxu0 0.0
    %2178 = vmatprep.subr.mxu0 0.0
    %2179 = vmatpush1.msra.mxu0 0.0
    %2180 = vmatprep.subr.mxu0 0.0
    %2181 = vmatpush1.msra.mxu0 0.0
    %2182 = vmatprep.subr.mxu0 0.0
    %2183 = vmatpush1.msra.mxu0 0.0
    %2184 = vmatprep.subr.mxu0 0.0
    %2185 = vmatpush1.msra.mxu0 0.0
    %2186 = vmatprep.mubr.f32.mxu0 0.0
    %2187 = vmatmul.mubr.f32.gmra.mrb[0].mxu0 %v372
    %v2188 = vpop.f32.mrb[0].mxu0
    %v2189 = vadd.f32 0.0, %v2188
    %v2190 = vpop.f32.mrb[0].mxu0
    %2191 = vdwg.mxu0
    %2193 = vset.pattern.permute.xlu0 0
    %2194 = vperm.xlu0 %2193, %v2119
    %v2195 = vpop.permute.xlu0 %2194
    %v2197 = vlaneseq
    %v2198 = vshrl.u32 %v2197, 7
    %v2199 = vsub.s32 0, %v2198
    %v2200 = vrot.slane %v2050, %v2199
    %v2201 = vadd.f32 %v2195, %v2200
    %v2202 = vsub.f32 %v2201, %v294
    %2204 = vset.pattern.permute.xlu0 0
    %2205 = vperm.xlu0 %2204, %v2189
    %v2206 = vpop.permute.xlu0 %2205
    %v2208 = vlaneseq
    %v2209 = vshrl.u32 %v2208, 7
    %v2210 = vsub.s32 0, %v2209
    %v2211 = vrot.slane %v2051, %v2210
    %v2212 = vmul.f32 %v2206, %v2211
    %v2213 = vmul.f32 %v2202, %v2212
    %v2214 = vld [vmem:[#allocation4 + $0x5] sm:$0x1]
    %v2215 = vld [vmem:[#allocation5 + $0x5] sm:$0x1]
    %2216 = vmatprep.subr.mxu0 0.0
    %2217 = vmatpush1.msra.mxu0 %v2049
    %2218 = vmatprep.subr.mxu0 0.0
    %2219 = vmatpush1.msra.mxu0 0.0
    %2220 = vmatprep.subr.mxu0 0.0
    %2221 = vmatpush1.msra.mxu0 0.0
    %2222 = vmatprep.subr.mxu0 0.0
    %2223 = vmatpush1.msra.mxu0 0.0
    %2224 = vmatprep.subr.mxu0 0.0
    %2225 = vmatpush1.msra.mxu0 0.0
    %2226 = vmatprep.subr.mxu0 0.0
    %2227 = vmatpush1.msra.mxu0 0.0
    %2228 = vmatprep.subr.mxu0 0.0
    %2229 = vmatpush1.msra.mxu0 0.0
    %2230 = vmatprep.subr.mxu0 0.0
    %2231 = vmatpush1.msra.mxu0 0.0
    %2232 = vmatprep.subr.mxu0 0.0
    %2233 = vmatpush1.msra.mxu0 0.0
    %2234 = vmatprep.subr.mxu0 0.0
    %2235 = vmatpush1.msra.mxu0 0.0
    %2236 = vmatprep.subr.mxu0 0.0
    %2237 = vmatpush1.msra.mxu0 0.0
    %2238 = vmatprep.subr.mxu0 0.0
    %2239 = vmatpush1.msra.mxu0 0.0
    %2240 = vmatprep.subr.mxu0 0.0
    %2241 = vmatpush1.msra.mxu0 0.0
    %2242 = vmatprep.subr.mxu0 0.0
    %2243 = vmatpush1.msra.mxu0 0.0
    %2244 = vmatprep.subr.mxu0 0.0
    %2245 = vmatpush1.msra.mxu0 0.0
    %2246 = vmatprep.subr.mxu0 0.0
    %2247 = vmatpush1.msra.mxu0 0.0
    %2248 = vmatprep.subr.mxu0 0.0
    %2249 = vmatpush1.msra.mxu0 0.0
    %2250 = vmatprep.subr.mxu0 0.0
    %2251 = vmatpush1.msra.mxu0 0.0
    %2252 = vmatprep.subr.mxu0 0.0
    %2253 = vmatpush1.msra.mxu0 0.0
    %2254 = vmatprep.subr.mxu0 0.0
    %2255 = vmatpush1.msra.mxu0 0.0
    %2256 = vmatprep.subr.mxu0 0.0
    %2257 = vmatpush1.msra.mxu0 0.0
    %2258 = vmatprep.subr.mxu0 0.0
    %2259 = vmatpush1.msra.mxu0 0.0
    %2260 = vmatprep.subr.mxu0 0.0
    %2261 = vmatpush1.msra.mxu0 0.0
    %2262 = vmatprep.subr.mxu0 0.0
    %2263 = vmatpush1.msra.mxu0 0.0
    %2264 = vmatprep.subr.mxu0 0.0
    %2265 = vmatpush1.msra.mxu0 0.0
    %2266 = vmatprep.subr.mxu0 0.0
    %2267 = vmatpush1.msra.mxu0 0.0
    %2268 = vmatprep.subr.mxu0 0.0
    %2269 = vmatpush1.msra.mxu0 0.0
    %2270 = vmatprep.subr.mxu0 0.0
    %2271 = vmatpush1.msra.mxu0 0.0
    %2272 = vmatprep.subr.mxu0 0.0
    %2273 = vmatpush1.msra.mxu0 0.0
    %2274 = vmatprep.subr.mxu0 0.0
    %2275 = vmatpush1.msra.mxu0 0.0
    %2276 = vmatprep.subr.mxu0 0.0
    %2277 = vmatpush1.msra.mxu0 0.0
    %2278 = vmatprep.subr.mxu0 0.0
    %2279 = vmatpush1.msra.mxu0 0.0
    %2280 = vmatprep.mubr.f32.mxu0 0.0
    %2281 = vmatmul.mubr.f32.gmra.mrb[0].mxu0 %v471
    %v2282 = vpop.f32.mrb[0].mxu0
    %v2283 = vadd.f32 0.0, %v2282
    %v2284 = vpop.f32.mrb[0].mxu0
    %2285 = vdwg.mxu0
    %2286 = vmatprep.subr.mxu0 0.0
    %2287 = vmatpush1.msra.mxu0 %v2049
    %2288 = vmatprep.subr.mxu0 0.0
    %2289 = vmatpush1.msra.mxu0 0.0
    %2290 = vmatprep.subr.mxu0 0.0
    %2291 = vmatpush1.msra.mxu0 0.0
    %2292 = vmatprep.subr.mxu0 0.0
    %2293 = vmatpush1.msra.mxu0 0.0
    %2294 = vmatprep.subr.mxu0 0.0
    %2295 = vmatpush1.msra.mxu0 0.0
    %2296 = vmatprep.subr.mxu0 0.0
    %2297 = vmatpush1.msra.mxu0 0.0
    %2298 = vmatprep.subr.mxu0 0.0
    %2299 = vmatpush1.msra.mxu0 0.0
    %2300 = vmatprep.subr.mxu0 0.0
    %2301 = vmatpush1.msra.mxu0 0.0
    %2302 = vmatprep.subr.mxu0 0.0
    %2303 = vmatpush1.msra.mxu0 0.0
    %2304 = vmatprep.subr.mxu0 0.0
    %2305 = vmatpush1.msra.mxu0 0.0
    %2306 = vmatprep.subr.mxu0 0.0
    %2307 = vmatpush1.msra.mxu0 0.0
    %2308 = vmatprep.subr.mxu0 0.0
    %2309 = vmatpush1.msra.mxu0 0.0
    %2310 = vmatprep.subr.mxu0 0.0
    %2311 = vmatpush1.msra.mxu0 0.0
    %2312 = vmatprep.subr.mxu0 0.0
    %2313 = vmatpush1.msra.mxu0 0.0
    %2314 = vmatprep.subr.mxu0 0.0
    %2315 = vmatpush1.msra.mxu0 0.0
    %2316 = vmatprep.subr.mxu0 0.0
    %2317 = vmatpush1.msra.mxu0 0.0
    %2318 = vmatprep.subr.mxu0 0.0
    %2319 = vmatpush1.msra.mxu0 0.0
    %2320 = vmatprep.subr.mxu0 0.0
    %2321 = vmatpush1.msra.mxu0 0.0
    %2322 = vmatprep.subr.mxu0 0.0
    %2323 = vmatpush1.msra.mxu0 0.0
    %2324 = vmatprep.subr.mxu0 0.0
    %2325 = vmatpush1.msra.mxu0 0.0
    %2326 = vmatprep.subr.mxu0 0.0
    %2327 = vmatpush1.msra.mxu0 0.0
    %2328 = vmatprep.subr.mxu0 0.0
    %2329 = vmatpush1.msra.mxu0 0.0
    %2330 = vmatprep.subr.mxu0 0.0
    %2331 = vmatpush1.msra.mxu0 0.0
    %2332 = vmatprep.subr.mxu0 0.0
    %2333 = vmatpush1.msra.mxu0 0.0
    %2334 = vmatprep.subr.mxu0 0.0
    %2335 = vmatpush1.msra.mxu0 0.0
    %2336 = vmatprep.subr.mxu0 0.0
    %2337 = vmatpush1.msra.mxu0 0.0
    %2338 = vmatprep.subr.mxu0 0.0
    %2339 = vmatpush1.msra.mxu0 0.0
    %2340 = vmatprep.subr.mxu0 0.0
    %2341 = vmatpush1.msra.mxu0 0.0
    %2342 = vmatprep.subr.mxu0 0.0
    %2343 = vmatpush1.msra.mxu0 0.0
    %2344 = vmatprep.subr.mxu0 0.0
    %2345 = vmatpush1.msra.mxu0 0.0
    %2346 = vmatprep.subr.mxu0 0.0
    %2347 = vmatpush1.msra.mxu0 0.0
    %2348 = vmatprep.subr.mxu0 0.0
    %2349 = vmatpush1.msra.mxu0 0.0
    %2350 = vmatprep.mubr.f32.mxu0 0.0
    %2351 = vmatmul.mubr.f32.gmra.mrb[0].mxu0 %v544
    %v2352 = vpop.f32.mrb[0].mxu0
    %v2353 = vadd.f32 0.0, %v2352
    %v2354 = vpop.f32.mrb[0].mxu0
    %2355 = vdwg.mxu0
    %2357 = vset.pattern.permute.xlu0 0
    %2358 = vperm.xlu0 %2357, %v2283
    %v2359 = vpop.permute.xlu0 %2358
    %v2361 = vlaneseq
    %v2362 = vshrl.u32 %v2361, 7
    %v2363 = vsub.s32 0, %v2362
    %v2364 = vrot.slane %v2214, %v2363
    %v2365 = vadd.f32 %v2359, %v2364
    %v2366 = vsub.f32 %v2365, %v466
    %2368 = vset.pattern.permute.xlu0 0
    %2369 = vperm.xlu0 %2368, %v2353
    %v2370 = vpop.permute.xlu0 %2369
    %v2372 = vlaneseq
    %v2373 = vshrl.u32 %v2372, 7
    %v2374 = vsub.s32 0, %v2373
    %v2375 = vrot.slane %v2215, %v2374
    %v2376 = vmul.f32 %v2370, %v2375
    %v2377 = vmul.f32 %v2366, %v2376
    %v2378 = vsub.f32 %v2213, %v2377
    %v2379 = vand.u32 2147483647, %v2378
    %vm2380 = vcmp.lt.f32.partialorder %v2379, 1.0
    %v2381 = vmul.f32 %v2378, 0.5
    %v2382 = vmul.f32 %v2381, %v2378
    %v2383 = vsub.f32 %v2379, 0.5
    %v2384 = vsel %vm2380, %v2382, %v2383
    %v2385 = vsel %vm117, %v2384, 0.0
    %2386 = vadd.xlane.f32.xlu0 %v2385
    %v2387 = vpop.xlane.xlu0 %2386
    %v2388 = vrot.slane %v2387, 4
    %v2389 = vadd.f32 %v2387, %v2388
    %v2390 = vrot.slane %v2389, 2
    %v2391 = vadd.f32 %v2389, %v2390
    %v2392 = vrot.slane %v2391, 1
    %v2393 = vadd.f32 %v2391, %v2392
    %v2394 = vadd.f32 %v2046, %v2393
    %vm2395 = vcmp.eq.s32.totalorder %v37, 6
    %v2396 = vsel %vm2395, 1, 0
    %v2397 = vcvt.s32.f32 %v2396
    %v2398 = vld [vmem:[#allocation2 + $0x6] sm:$0x1]
    %v2399 = vld [vmem:[#allocation3 + $0x6] sm:$0x1]
    %2400 = vmatprep.subr.mxu0 0.0
    %2401 = vmatpush1.msra.mxu0 %v2397
    %2402 = vmatprep.subr.mxu0 0.0
    %2403 = vmatpush1.msra.mxu0 0.0
    %2404 = vmatprep.subr.mxu0 0.0
    %2405 = vmatpush1.msra.mxu0 0.0
    %2406 = vmatprep.subr.mxu0 0.0
    %2407 = vmatpush1.msra.mxu0 0.0
    %2408 = vmatprep.subr.mxu0 0.0
    %2409 = vmatpush1.msra.mxu0 0.0
    %2410 = vmatprep.subr.mxu0 0.0
    %2411 = vmatpush1.msra.mxu0 0.0
    %2412 = vmatprep.subr.mxu0 0.0
    %2413 = vmatpush1.msra.mxu0 0.0
    %2414 = vmatprep.subr.mxu0 0.0
    %2415 = vmatpush1.msra.mxu0 0.0
    %2416 = vmatprep.subr.mxu0 0.0
    %2417 = vmatpush1.msra.mxu0 0.0
    %2418 = vmatprep.subr.mxu0 0.0
    %2419 = vmatpush1.msra.mxu0 0.0
    %2420 = vmatprep.subr.mxu0 0.0
    %2421 = vmatpush1.msra.mxu0 0.0
    %2422 = vmatprep.subr.mxu0 0.0
    %2423 = vmatpush1.msra.mxu0 0.0
    %2424 = vmatprep.subr.mxu0 0.0
    %2425 = vmatpush1.msra.mxu0 0.0
    %2426 = vmatprep.subr.mxu0 0.0
    %2427 = vmatpush1.msra.mxu0 0.0
    %2428 = vmatprep.subr.mxu0 0.0
    %2429 = vmatpush1.msra.mxu0 0.0
    %2430 = vmatprep.subr.mxu0 0.0
    %2431 = vmatpush1.msra.mxu0 0.0
    %2432 = vmatprep.subr.mxu0 0.0
    %2433 = vmatpush1.msra.mxu0 0.0
    %2434 = vmatprep.subr.mxu0 0.0
    %2435 = vmatpush1.msra.mxu0 0.0
    %2436 = vmatprep.subr.mxu0 0.0
    %2437 = vmatpush1.msra.mxu0 0.0
    %2438 = vmatprep.subr.mxu0 0.0
    %2439 = vmatpush1.msra.mxu0 0.0
    %2440 = vmatprep.subr.mxu0 0.0
    %2441 = vmatpush1.msra.mxu0 0.0
    %2442 = vmatprep.subr.mxu0 0.0
    %2443 = vmatpush1.msra.mxu0 0.0
    %2444 = vmatprep.subr.mxu0 0.0
    %2445 = vmatpush1.msra.mxu0 0.0
    %2446 = vmatprep.subr.mxu0 0.0
    %2447 = vmatpush1.msra.mxu0 0.0
    %2448 = vmatprep.subr.mxu0 0.0
    %2449 = vmatpush1.msra.mxu0 0.0
    %2450 = vmatprep.subr.mxu0 0.0
    %2451 = vmatpush1.msra.mxu0 0.0
    %2452 = vmatprep.subr.mxu0 0.0
    %2453 = vmatpush1.msra.mxu0 0.0
    %2454 = vmatprep.subr.mxu0 0.0
    %2455 = vmatpush1.msra.mxu0 0.0
    %2456 = vmatprep.subr.mxu0 0.0
    %2457 = vmatpush1.msra.mxu0 0.0
    %2458 = vmatprep.subr.mxu0 0.0
    %2459 = vmatpush1.msra.mxu0 0.0
    %2460 = vmatprep.subr.mxu0 0.0
    %2461 = vmatpush1.msra.mxu0 0.0
    %2462 = vmatprep.subr.mxu0 0.0
    %2463 = vmatpush1.msra.mxu0 0.0
    %2464 = vmatprep.mubr.f32.mxu0 0.0
    %2465 = vmatmul.mubr.f32.gmra.mrb[0].mxu0 %v299
    %v2466 = vpop.f32.mrb[0].mxu0
    %v2467 = vadd.f32 0.0, %v2466
    %v2468 = vpop.f32.mrb[0].mxu0
    %2469 = vdwg.mxu0
    %2470 = vmatprep.subr.mxu0 0.0
    %2471 = vmatpush1.msra.mxu0 %v2397
    %2472 = vmatprep.subr.mxu0 0.0
    %2473 = vmatpush1.msra.mxu0 0.0
    %2474 = vmatprep.subr.mxu0 0.0
    %2475 = vmatpush1.msra.mxu0 0.0
    %2476 = vmatprep.subr.mxu0 0.0
    %2477 = vmatpush1.msra.mxu0 0.0
    %2478 = vmatprep.subr.mxu0 0.0
    %2479 = vmatpush1.msra.mxu0 0.0
    %2480 = vmatprep.subr.mxu0 0.0
    %2481 = vmatpush1.msra.mxu0 0.0
    %2482 = vmatprep.subr.mxu0 0.0
    %2483 = vmatpush1.msra.mxu0 0.0
    %2484 = vmatprep.subr.mxu0 0.0
    %2485 = vmatpush1.msra.mxu0 0.0
    %2486 = vmatprep.subr.mxu0 0.0
    %2487 = vmatpush1.msra.mxu0 0.0
    %2488 = vmatprep.subr.mxu0 0.0
    %2489 = vmatpush1.msra.mxu0 0.0
    %2490 = vmatprep.subr.mxu0 0.0
    %2491 = vmatpush1.msra.mxu0 0.0
    %2492 = vmatprep.subr.mxu0 0.0
    %2493 = vmatpush1.msra.mxu0 0.0
    %2494 = vmatprep.subr.mxu0 0.0
    %2495 = vmatpush1.msra.mxu0 0.0
    %2496 = vmatprep.subr.mxu0 0.0
    %2497 = vmatpush1.msra.mxu0 0.0
    %2498 = vmatprep.subr.mxu0 0.0
    %2499 = vmatpush1.msra.mxu0 0.0
    %2500 = vmatprep.subr.mxu0 0.0
    %2501 = vmatpush1.msra.mxu0 0.0
    %2502 = vmatprep.subr.mxu0 0.0
    %2503 = vmatpush1.msra.mxu0 0.0
    %2504 = vmatprep.subr.mxu0 0.0
    %2505 = vmatpush1.msra.mxu0 0.0
    %2506 = vmatprep.subr.mxu0 0.0
    %2507 = vmatpush1.msra.mxu0 0.0
    %2508 = vmatprep.subr.mxu0 0.0
    %2509 = vmatpush1.msra.mxu0 0.0
    %2510 = vmatprep.subr.mxu0 0.0
    %2511 = vmatpush1.msra.mxu0 0.0
    %2512 = vmatprep.subr.mxu0 0.0
    %2513 = vmatpush1.msra.mxu0 0.0
    %2514 = vmatprep.subr.mxu0 0.0
    %2515 = vmatpush1.msra.mxu0 0.0
    %2516 = vmatprep.subr.mxu0 0.0
    %2517 = vmatpush1.msra.mxu0 0.0
    %2518 = vmatprep.subr.mxu0 0.0
    %2519 = vmatpush1.msra.mxu0 0.0
    %2520 = vmatprep.subr.mxu0 0.0
    %2521 = vmatpush1.msra.mxu0 0.0
    %2522 = vmatprep.subr.mxu0 0.0
    %2523 = vmatpush1.msra.mxu0 0.0
    %2524 = vmatprep.subr.mxu0 0.0
    %2525 = vmatpush1.msra.mxu0 0.0
    %2526 = vmatprep.subr.mxu0 0.0
    %2527 = vmatpush1.msra.mxu0 0.0
    %2528 = vmatprep.subr.mxu0 0.0
    %2529 = vmatpush1.msra.mxu0 0.0
    %2530 = vmatprep.subr.mxu0 0.0
    %2531 = vmatpush1.msra.mxu0 0.0
    %2532 = vmatprep.subr.mxu0 0.0
    %2533 = vmatpush1.msra.mxu0 0.0
    %2534 = vmatprep.mubr.f32.mxu0 0.0
    %2535 = vmatmul.mubr.f32.gmra.mrb[0].mxu0 %v372
    %v2536 = vpop.f32.mrb[0].mxu0
    %v2537 = vadd.f32 0.0, %v2536
    %v2538 = vpop.f32.mrb[0].mxu0
    %2539 = vdwg.mxu0
    %2541 = vset.pattern.permute.xlu0 0
    %2542 = vperm.xlu0 %2541, %v2467
    %v2543 = vpop.permute.xlu0 %2542
    %v2545 = vlaneseq
    %v2546 = vshrl.u32 %v2545, 7
    %v2547 = vsub.s32 0, %v2546
    %v2548 = vrot.slane %v2398, %v2547
    %v2549 = vadd.f32 %v2543, %v2548
    %v2550 = vsub.f32 %v2549, %v294
    %2552 = vset.pattern.permute.xlu0 0
    %2553 = vperm.xlu0 %2552, %v2537
    %v2554 = vpop.permute.xlu0 %2553
    %v2556 = vlaneseq
    %v2557 = vshrl.u32 %v2556, 7
    %v2558 = vsub.s32 0, %v2557
    %v2559 = vrot.slane %v2399, %v2558
    %v2560 = vmul.f32 %v2554, %v2559
    %v2561 = vmul.f32 %v2550, %v2560
    %v2562 = vld [vmem:[#allocation4 + $0x6] sm:$0x1]
    %v2563 = vld [vmem:[#allocation5 + $0x6] sm:$0x1]
    %2564 = vmatprep.subr.mxu0 0.0
    %2565 = vmatpush1.msra.mxu0 %v2397
    %2566 = vmatprep.subr.mxu0 0.0
    %2567 = vmatpush1.msra.mxu0 0.0
    %2568 = vmatprep.subr.mxu0 0.0
    %2569 = vmatpush1.msra.mxu0 0.0
    %2570 = vmatprep.subr.mxu0 0.0
    %2571 = vmatpush1.msra.mxu0 0.0
    %2572 = vmatprep.subr.mxu0 0.0
    %2573 = vmatpush1.msra.mxu0 0.0
    %2574 = vmatprep.subr.mxu0 0.0
    %2575 = vmatpush1.msra.mxu0 0.0
    %2576 = vmatprep.subr.mxu0 0.0
    %2577 = vmatpush1.msra.mxu0 0.0
    %2578 = vmatprep.subr.mxu0 0.0
    %2579 = vmatpush1.msra.mxu0 0.0
    %2580 = vmatprep.subr.mxu0 0.0
    %2581 = vmatpush1.msra.mxu0 0.0
    %2582 = vmatprep.subr.mxu0 0.0
    %2583 = vmatpush1.msra.mxu0 0.0
    %2584 = vmatprep.subr.mxu0 0.0
    %2585 = vmatpush1.msra.mxu0 0.0
    %2586 = vmatprep.subr.mxu0 0.0
    %2587 = vmatpush1.msra.mxu0 0.0
    %2588 = vmatprep.subr.mxu0 0.0
    %2589 = vmatpush1.msra.mxu0 0.0
    %2590 = vmatprep.subr.mxu0 0.0
    %2591 = vmatpush1.msra.mxu0 0.0
    %2592 = vmatprep.subr.mxu0 0.0
    %2593 = vmatpush1.msra.mxu0 0.0
    %2594 = vmatprep.subr.mxu0 0.0
    %2595 = vmatpush1.msra.mxu0 0.0
    %2596 = vmatprep.subr.mxu0 0.0
    %2597 = vmatpush1.msra.mxu0 0.0
    %2598 = vmatprep.subr.mxu0 0.0
    %2599 = vmatpush1.msra.mxu0 0.0
    %2600 = vmatprep.subr.mxu0 0.0
    %2601 = vmatpush1.msra.mxu0 0.0
    %2602 = vmatprep.subr.mxu0 0.0
    %2603 = vmatpush1.msra.mxu0 0.0
    %2604 = vmatprep.subr.mxu0 0.0
    %2605 = vmatpush1.msra.mxu0 0.0
    %2606 = vmatprep.subr.mxu0 0.0
    %2607 = vmatpush1.msra.mxu0 0.0
    %2608 = vmatprep.subr.mxu0 0.0
    %2609 = vmatpush1.msra.mxu0 0.0
    %2610 = vmatprep.subr.mxu0 0.0
    %2611 = vmatpush1.msra.mxu0 0.0
    %2612 = vmatprep.subr.mxu0 0.0
    %2613 = vmatpush1.msra.mxu0 0.0
    %2614 = vmatprep.subr.mxu0 0.0
    %2615 = vmatpush1.msra.mxu0 0.0
    %2616 = vmatprep.subr.mxu0 0.0
    %2617 = vmatpush1.msra.mxu0 0.0
    %2618 = vmatprep.subr.mxu0 0.0
    %2619 = vmatpush1.msra.mxu0 0.0
    %2620 = vmatprep.subr.mxu0 0.0
    %2621 = vmatpush1.msra.mxu0 0.0
    %2622 = vmatprep.subr.mxu0 0.0
    %2623 = vmatpush1.msra.mxu0 0.0
    %2624 = vmatprep.subr.mxu0 0.0
    %2625 = vmatpush1.msra.mxu0 0.0
    %2626 = vmatprep.subr.mxu0 0.0
    %2627 = vmatpush1.msra.mxu0 0.0
    %2628 = vmatprep.mubr.f32.mxu0 0.0
    %2629 = vmatmul.mubr.f32.gmra.mrb[0].mxu0 %v471
    %v2630 = vpop.f32.mrb[0].mxu0
    %v2631 = vadd.f32 0.0, %v2630
    %v2632 = vpop.f32.mrb[0].mxu0
    %2633 = vdwg.mxu0
    %2634 = vmatprep.subr.mxu0 0.0
    %2635 = vmatpush1.msra.mxu0 %v2397
    %2636 = vmatprep.subr.mxu0 0.0
    %2637 = vmatpush1.msra.mxu0 0.0
    %2638 = vmatprep.subr.mxu0 0.0
    %2639 = vmatpush1.msra.mxu0 0.0
    %2640 = vmatprep.subr.mxu0 0.0
    %2641 = vmatpush1.msra.mxu0 0.0
    %2642 = vmatprep.subr.mxu0 0.0
    %2643 = vmatpush1.msra.mxu0 0.0
    %2644 = vmatprep.subr.mxu0 0.0
    %2645 = vmatpush1.msra.mxu0 0.0
    %2646 = vmatprep.subr.mxu0 0.0
    %2647 = vmatpush1.msra.mxu0 0.0
    %2648 = vmatprep.subr.mxu0 0.0
    %2649 = vmatpush1.msra.mxu0 0.0
    %2650 = vmatprep.subr.mxu0 0.0
    %2651 = vmatpush1.msra.mxu0 0.0
    %2652 = vmatprep.subr.mxu0 0.0
    %2653 = vmatpush1.msra.mxu0 0.0
    %2654 = vmatprep.subr.mxu0 0.0
    %2655 = vmatpush1.msra.mxu0 0.0
    %2656 = vmatprep.subr.mxu0 0.0
    %2657 = vmatpush1.msra.mxu0 0.0
    %2658 = vmatprep.subr.mxu0 0.0
    %2659 = vmatpush1.msra.mxu0 0.0
    %2660 = vmatprep.subr.mxu0 0.0
    %2661 = vmatpush1.msra.mxu0 0.0
    %2662 = vmatprep.subr.mxu0 0.0
    %2663 = vmatpush1.msra.mxu0 0.0
    %2664 = vmatprep.subr.mxu0 0.0
    %2665 = vmatpush1.msra.mxu0 0.0
    %2666 = vmatprep.subr.mxu0 0.0
    %2667 = vmatpush1.msra.mxu0 0.0
    %2668 = vmatprep.subr.mxu0 0.0
    %2669 = vmatpush1.msra.mxu0 0.0
    %2670 = vmatprep.subr.mxu0 0.0
    %2671 = vmatpush1.msra.mxu0 0.0
    %2672 = vmatprep.subr.mxu0 0.0
    %2673 = vmatpush1.msra.mxu0 0.0
    %2674 = vmatprep.subr.mxu0 0.0
    %2675 = vmatpush1.msra.mxu0 0.0
    %2676 = vmatprep.subr.mxu0 0.0
    %2677 = vmatpush1.msra.mxu0 0.0
    %2678 = vmatprep.subr.mxu0 0.0
    %2679 = vmatpush1.msra.mxu0 0.0
    %2680 = vmatprep.subr.mxu0 0.0
    %2681 = vmatpush1.msra.mxu0 0.0
    %2682 = vmatprep.subr.mxu0 0.0
    %2683 = vmatpush1.msra.mxu0 0.0
    %2684 = vmatprep.subr.mxu0 0.0
    %2685 = vmatpush1.msra.mxu0 0.0
    %2686 = vmatprep.subr.mxu0 0.0
    %2687 = vmatpush1.msra.mxu0 0.0
    %2688 = vmatprep.subr.mxu0 0.0
    %2689 = vmatpush1.msra.mxu0 0.0
    %2690 = vmatprep.subr.mxu0 0.0
    %2691 = vmatpush1.msra.mxu0 0.0
    %2692 = vmatprep.subr.mxu0 0.0
    %2693 = vmatpush1.msra.mxu0 0.0
    %2694 = vmatprep.subr.mxu0 0.0
    %2695 = vmatpush1.msra.mxu0 0.0
    %2696 = vmatprep.subr.mxu0 0.0
    %2697 = vmatpush1.msra.mxu0 0.0
    %2698 = vmatprep.mubr.f32.mxu0 0.0
    %2699 = vmatmul.mubr.f32.gmra.mrb[0].mxu0 %v544
    %v2700 = vpop.f32.mrb[0].mxu0
    %v2701 = vadd.f32 0.0, %v2700
    %v2702 = vpop.f32.mrb[0].mxu0
    %2703 = vdwg.mxu0
    %2705 = vset.pattern.permute.xlu0 0
    %2706 = vperm.xlu0 %2705, %v2631
    %v2707 = vpop.permute.xlu0 %2706
    %v2709 = vlaneseq
    %v2710 = vshrl.u32 %v2709, 7
    %v2711 = vsub.s32 0, %v2710
    %v2712 = vrot.slane %v2562, %v2711
    %v2713 = vadd.f32 %v2707, %v2712
    %v2714 = vsub.f32 %v2713, %v466
    %2716 = vset.pattern.permute.xlu0 0
    %2717 = vperm.xlu0 %2716, %v2701
    %v2718 = vpop.permute.xlu0 %2717
    %v2720 = vlaneseq
    %v2721 = vshrl.u32 %v2720, 7
    %v2722 = vsub.s32 0, %v2721
    %v2723 = vrot.slane %v2563, %v2722
    %v2724 = vmul.f32 %v2718, %v2723
    %v2725 = vmul.f32 %v2714, %v2724
    %v2726 = vsub.f32 %v2561, %v2725
    %v2727 = vand.u32 2147483647, %v2726
    %vm2728 = vcmp.lt.f32.partialorder %v2727, 1.0
    %v2729 = vmul.f32 %v2726, 0.5
    %v2730 = vmul.f32 %v2729, %v2726
    %v2731 = vsub.f32 %v2727, 0.5
    %v2732 = vsel %vm2728, %v2730, %v2731
    %v2733 = vsel %vm117, %v2732, 0.0
    %2734 = vadd.xlane.f32.xlu0 %v2733
    %v2735 = vpop.xlane.xlu0 %2734
    %v2736 = vrot.slane %v2735, 4
    %v2737 = vadd.f32 %v2735, %v2736
    %v2738 = vrot.slane %v2737, 2
    %v2739 = vadd.f32 %v2737, %v2738
    %v2740 = vrot.slane %v2739, 1
    %v2741 = vadd.f32 %v2739, %v2740
    %v2742 = vadd.f32 %v2394, %v2741
    %vm2743 = vcmp.eq.s32.totalorder %v37, 7
    %v2744 = vsel %vm2743, 1, 0
    %v2745 = vcvt.s32.f32 %v2744
    %v2746 = vld [vmem:[#allocation2 + $0x7] sm:$0x1]
    %v2747 = vld [vmem:[#allocation3 + $0x7] sm:$0x1]
    %2748 = vmatprep.subr.mxu0 0.0
    %2749 = vmatpush1.msra.mxu0 %v2745
    %2750 = vmatprep.subr.mxu0 0.0
    %2751 = vmatpush1.msra.mxu0 0.0
    %2752 = vmatprep.subr.mxu0 0.0
    %2753 = vmatpush1.msra.mxu0 0.0
    %2754 = vmatprep.subr.mxu0 0.0
    %2755 = vmatpush1.msra.mxu0 0.0
    %2756 = vmatprep.subr.mxu0 0.0
    %2757 = vmatpush1.msra.mxu0 0.0
    %2758 = vmatprep.subr.mxu0 0.0
    %2759 = vmatpush1.msra.mxu0 0.0
    %2760 = vmatprep.subr.mxu0 0.0
    %2761 = vmatpush1.msra.mxu0 0.0
    %2762 = vmatprep.subr.mxu0 0.0
    %2763 = vmatpush1.msra.mxu0 0.0
    %2764 = vmatprep.subr.mxu0 0.0
    %2765 = vmatpush1.msra.mxu0 0.0
    %2766 = vmatprep.subr.mxu0 0.0
    %2767 = vmatpush1.msra.mxu0 0.0
    %2768 = vmatprep.subr.mxu0 0.0
    %2769 = vmatpush1.msra.mxu0 0.0
    %2770 = vmatprep.subr.mxu0 0.0
    %2771 = vmatpush1.msra.mxu0 0.0
    %2772 = vmatprep.subr.mxu0 0.0
    %2773 = vmatpush1.msra.mxu0 0.0
    %2774 = vmatprep.subr.mxu0 0.0
    %2775 = vmatpush1.msra.mxu0 0.0
    %2776 = vmatprep.subr.mxu0 0.0
    %2777 = vmatpush1.msra.mxu0 0.0
    %2778 = vmatprep.subr.mxu0 0.0
    %2779 = vmatpush1.msra.mxu0 0.0
    %2780 = vmatprep.subr.mxu0 0.0
    %2781 = vmatpush1.msra.mxu0 0.0
    %2782 = vmatprep.subr.mxu0 0.0
    %2783 = vmatpush1.msra.mxu0 0.0
    %2784 = vmatprep.subr.mxu0 0.0
    %2785 = vmatpush1.msra.mxu0 0.0
    %2786 = vmatprep.subr.mxu0 0.0
    %2787 = vmatpush1.msra.mxu0 0.0
    %2788 = vmatprep.subr.mxu0 0.0
    %2789 = vmatpush1.msra.mxu0 0.0
    %2790 = vmatprep.subr.mxu0 0.0
    %2791 = vmatpush1.msra.mxu0 0.0
    %2792 = vmatprep.subr.mxu0 0.0
    %2793 = vmatpush1.msra.mxu0 0.0
    %2794 = vmatprep.subr.mxu0 0.0
    %2795 = vmatpush1.msra.mxu0 0.0
    %2796 = vmatprep.subr.mxu0 0.0
    %2797 = vmatpush1.msra.mxu0 0.0
    %2798 = vmatprep.subr.mxu0 0.0
    %2799 = vmatpush1.msra.mxu0 0.0
    %2800 = vmatprep.subr.mxu0 0.0
    %2801 = vmatpush1.msra.mxu0 0.0
    %2802 = vmatprep.subr.mxu0 0.0
    %2803 = vmatpush1.msra.mxu0 0.0
    %2804 = vmatprep.subr.mxu0 0.0
    %2805 = vmatpush1.msra.mxu0 0.0
    %2806 = vmatprep.subr.mxu0 0.0
    %2807 = vmatpush1.msra.mxu0 0.0
    %2808 = vmatprep.subr.mxu0 0.0
    %2809 = vmatpush1.msra.mxu0 0.0
    %2810 = vmatprep.subr.mxu0 0.0
    %2811 = vmatpush1.msra.mxu0 0.0
    %2812 = vmatprep.mubr.f32.mxu0 0.0
    %2813 = vmatmul.mubr.f32.gmra.mrb[0].mxu0 %v299
    %v2814 = vpop.f32.mrb[0].mxu0
    %v2815 = vadd.f32 0.0, %v2814
    %v2816 = vpop.f32.mrb[0].mxu0
    %2817 = vdwg.mxu0
    %2818 = vmatprep.subr.mxu0 0.0
    %2819 = vmatpush1.msra.mxu0 %v2745
    %2820 = vmatprep.subr.mxu0 0.0
    %2821 = vmatpush1.msra.mxu0 0.0
    %2822 = vmatprep.subr.mxu0 0.0
    %2823 = vmatpush1.msra.mxu0 0.0
    %2824 = vmatprep.subr.mxu0 0.0
    %2825 = vmatpush1.msra.mxu0 0.0
    %2826 = vmatprep.subr.mxu0 0.0
    %2827 = vmatpush1.msra.mxu0 0.0
    %2828 = vmatprep.subr.mxu0 0.0
    %2829 = vmatpush1.msra.mxu0 0.0
    %2830 = vmatprep.subr.mxu0 0.0
    %2831 = vmatpush1.msra.mxu0 0.0
    %2832 = vmatprep.subr.mxu0 0.0
    %2833 = vmatpush1.msra.mxu0 0.0
    %2834 = vmatprep.subr.mxu0 0.0
    %2835 = vmatpush1.msra.mxu0 0.0
    %2836 = vmatprep.subr.mxu0 0.0
    %2837 = vmatpush1.msra.mxu0 0.0
    %2838 = vmatprep.subr.mxu0 0.0
    %2839 = vmatpush1.msra.mxu0 0.0
    %2840 = vmatprep.subr.mxu0 0.0
    %2841 = vmatpush1.msra.mxu0 0.0
    %2842 = vmatprep.subr.mxu0 0.0
    %2843 = vmatpush1.msra.mxu0 0.0
    %2844 = vmatprep.subr.mxu0 0.0
    %2845 = vmatpush1.msra.mxu0 0.0
    %2846 = vmatprep.subr.mxu0 0.0
    %2847 = vmatpush1.msra.mxu0 0.0
    %2848 = vmatprep.subr.mxu0 0.0
    %2849 = vmatpush1.msra.mxu0 0.0
    %2850 = vmatprep.subr.mxu0 0.0
    %2851 = vmatpush1.msra.mxu0 0.0
    %2852 = vmatprep.subr.mxu0 0.0
    %2853 = vmatpush1.msra.mxu0 0.0
    %2854 = vmatprep.subr.mxu0 0.0
    %2855 = vmatpush1.msra.mxu0 0.0
    %2856 = vmatprep.subr.mxu0 0.0
    %2857 = vmatpush1.msra.mxu0 0.0
    %2858 = vmatprep.subr.mxu0 0.0
    %2859 = vmatpush1.msra.mxu0 0.0
    %2860 = vmatprep.subr.mxu0 0.0
    %2861 = vmatpush1.msra.mxu0 0.0
    %2862 = vmatprep.subr.mxu0 0.0
    %2863 = vmatpush1.msra.mxu0 0.0
    %2864 = vmatprep.subr.mxu0 0.0
    %2865 = vmatpush1.msra.mxu0 0.0
    %2866 = vmatprep.subr.mxu0 0.0
    %2867 = vmatpush1.msra.mxu0 0.0
    %2868 = vmatprep.subr.mxu0 0.0
    %2869 = vmatpush1.msra.mxu0 0.0
    %2870 = vmatprep.subr.mxu0 0.0
    %2871 = vmatpush1.msra.mxu0 0.0
    %2872 = vmatprep.subr.mxu0 0.0
    %2873 = vmatpush1.msra.mxu0 0.0
    %2874 = vmatprep.subr.mxu0 0.0
    %2875 = vmatpush1.msra.mxu0 0.0
    %2876 = vmatprep.subr.mxu0 0.0
    %2877 = vmatpush1.msra.mxu0 0.0
    %2878 = vmatprep.subr.mxu0 0.0
    %2879 = vmatpush1.msra.mxu0 0.0
    %2880 = vmatprep.subr.mxu0 0.0
    %2881 = vmatpush1.msra.mxu0 0.0
    %2882 = vmatprep.mubr.f32.mxu0 0.0
    %2883 = vmatmul.mubr.f32.gmra.mrb[0].mxu0 %v372
    %v2884 = vpop.f32.mrb[0].mxu0
    %v2885 = vadd.f32 0.0, %v2884
    %v2886 = vpop.f32.mrb[0].mxu0
    %2887 = vdwg.mxu0
    %2889 = vset.pattern.permute.xlu0 0
    %2890 = vperm.xlu0 %2889, %v2815
    %v2891 = vpop.permute.xlu0 %2890
    %v2893 = vlaneseq
    %v2894 = vshrl.u32 %v2893, 7
    %v2895 = vsub.s32 0, %v2894
    %v2896 = vrot.slane %v2746, %v2895
    %v2897 = vadd.f32 %v2891, %v2896
    %v2898 = vsub.f32 %v2897, %v294
    %2900 = vset.pattern.permute.xlu0 0
    %2901 = vperm.xlu0 %2900, %v2885
    %v2902 = vpop.permute.xlu0 %2901
    %v2904 = vlaneseq
    %v2905 = vshrl.u32 %v2904, 7
    %v2906 = vsub.s32 0, %v2905
    %v2907 = vrot.slane %v2747, %v2906
    %v2908 = vmul.f32 %v2902, %v2907
    %v2909 = vmul.f32 %v2898, %v2908
    %v2910 = vld [vmem:[#allocation4 + $0x7] sm:$0x1]
    %v2911 = vld [vmem:[#allocation5 + $0x7] sm:$0x1]
    %2912 = vmatprep.subr.mxu0 0.0
    %2913 = vmatpush1.msra.mxu0 %v2745
    %2914 = vmatprep.subr.mxu0 0.0
    %2915 = vmatpush1.msra.mxu0 0.0
    %2916 = vmatprep.subr.mxu0 0.0
    %2917 = vmatpush1.msra.mxu0 0.0
    %2918 = vmatprep.subr.mxu0 0.0
    %2919 = vmatpush1.msra.mxu0 0.0
    %2920 = vmatprep.subr.mxu0 0.0
    %2921 = vmatpush1.msra.mxu0 0.0
    %2922 = vmatprep.subr.mxu0 0.0
    %2923 = vmatpush1.msra.mxu0 0.0
    %2924 = vmatprep.subr.mxu0 0.0
    %2925 = vmatpush1.msra.mxu0 0.0
    %2926 = vmatprep.subr.mxu0 0.0
    %2927 = vmatpush1.msra.mxu0 0.0
    %2928 = vmatprep.subr.mxu0 0.0
    %2929 = vmatpush1.msra.mxu0 0.0
    %2930 = vmatprep.subr.mxu0 0.0
    %2931 = vmatpush1.msra.mxu0 0.0
    %2932 = vmatprep.subr.mxu0 0.0
    %2933 = vmatpush1.msra.mxu0 0.0
    %2934 = vmatprep.subr.mxu0 0.0
    %2935 = vmatpush1.msra.mxu0 0.0
    %2936 = vmatprep.subr.mxu0 0.0
    %2937 = vmatpush1.msra.mxu0 0.0
    %2938 = vmatprep.subr.mxu0 0.0
    %2939 = vmatpush1.msra.mxu0 0.0
    %2940 = vmatprep.subr.mxu0 0.0
    %2941 = vmatpush1.msra.mxu0 0.0
    %2942 = vmatprep.subr.mxu0 0.0
    %2943 = vmatpush1.msra.mxu0 0.0
    %2944 = vmatprep.subr.mxu0 0.0
    %2945 = vmatpush1.msra.mxu0 0.0
    %2946 = vmatprep.subr.mxu0 0.0
    %2947 = vmatpush1.msra.mxu0 0.0
    %2948 = vmatprep.subr.mxu0 0.0
    %2949 = vmatpush1.msra.mxu0 0.0
    %2950 = vmatprep.subr.mxu0 0.0
    %2951 = vmatpush1.msra.mxu0 0.0
    %2952 = vmatprep.subr.mxu0 0.0
    %2953 = vmatpush1.msra.mxu0 0.0
    %2954 = vmatprep.subr.mxu0 0.0
    %2955 = vmatpush1.msra.mxu0 0.0
    %2956 = vmatprep.subr.mxu0 0.0
    %2957 = vmatpush1.msra.mxu0 0.0
    %2958 = vmatprep.subr.mxu0 0.0
    %2959 = vmatpush1.msra.mxu0 0.0
    %2960 = vmatprep.subr.mxu0 0.0
    %2961 = vmatpush1.msra.mxu0 0.0
    %2962 = vmatprep.subr.mxu0 0.0
    %2963 = vmatpush1.msra.mxu0 0.0
    %2964 = vmatprep.subr.mxu0 0.0
    %2965 = vmatpush1.msra.mxu0 0.0
    %2966 = vmatprep.subr.mxu0 0.0
    %2967 = vmatpush1.msra.mxu0 0.0
    %2968 = vmatprep.subr.mxu0 0.0
    %2969 = vmatpush1.msra.mxu0 0.0
    %2970 = vmatprep.subr.mxu0 0.0
    %2971 = vmatpush1.msra.mxu0 0.0
    %2972 = vmatprep.subr.mxu0 0.0
    %2973 = vmatpush1.msra.mxu0 0.0
    %2974 = vmatprep.subr.mxu0 0.0
    %2975 = vmatpush1.msra.mxu0 0.0
    %2976 = vmatprep.mubr.f32.mxu0 0.0
    %2977 = vmatmul.mubr.f32.gmra.mrb[0].mxu0 %v471
    %v2978 = vpop.f32.mrb[0].mxu0
    %v2979 = vadd.f32 0.0, %v2978
    %v2980 = vpop.f32.mrb[0].mxu0
    %2981 = vdwg.mxu0
    %2982 = vmatprep.subr.mxu0 0.0
    %2983 = vmatpush1.msra.mxu0 %v2745
    %2984 = vmatprep.subr.mxu0 0.0
    %2985 = vmatpush1.msra.mxu0 0.0
    %2986 = vmatprep.subr.mxu0 0.0
    %2987 = vmatpush1.msra.mxu0 0.0
    %2988 = vmatprep.subr.mxu0 0.0
    %2989 = vmatpush1.msra.mxu0 0.0
    %2990 = vmatprep.subr.mxu0 0.0
    %2991 = vmatpush1.msra.mxu0 0.0
    %2992 = vmatprep.subr.mxu0 0.0
    %2993 = vmatpush1.msra.mxu0 0.0
    %2994 = vmatprep.subr.mxu0 0.0
    %2995 = vmatpush1.msra.mxu0 0.0
    %2996 = vmatprep.subr.mxu0 0.0
    %2997 = vmatpush1.msra.mxu0 0.0
    %2998 = vmatprep.subr.mxu0 0.0
    %2999 = vmatpush1.msra.mxu0 0.0
    %3000 = vmatprep.subr.mxu0 0.0
    %3001 = vmatpush1.msra.mxu0 0.0
    %3002 = vmatprep.subr.mxu0 0.0
    %3003 = vmatpush1.msra.mxu0 0.0
    %3004 = vmatprep.subr.mxu0 0.0
    %3005 = vmatpush1.msra.mxu0 0.0
    %3006 = vmatprep.subr.mxu0 0.0
    %3007 = vmatpush1.msra.mxu0 0.0
    %3008 = vmatprep.subr.mxu0 0.0
    %3009 = vmatpush1.msra.mxu0 0.0
    %3010 = vmatprep.subr.mxu0 0.0
    %3011 = vmatpush1.msra.mxu0 0.0
    %3012 = vmatprep.subr.mxu0 0.0
    %3013 = vmatpush1.msra.mxu0 0.0
    %3014 = vmatprep.subr.mxu0 0.0
    %3015 = vmatpush1.msra.mxu0 0.0
    %3016 = vmatprep.subr.mxu0 0.0
    %3017 = vmatpush1.msra.mxu0 0.0
    %3018 = vmatprep.subr.mxu0 0.0
    %3019 = vmatpush1.msra.mxu0 0.0
    %3020 = vmatprep.subr.mxu0 0.0
    %3021 = vmatpush1.msra.mxu0 0.0
    %3022 = vmatprep.subr.mxu0 0.0
    %3023 = vmatpush1.msra.mxu0 0.0
    %3024 = vmatprep.subr.mxu0 0.0
    %3025 = vmatpush1.msra.mxu0 0.0
    %3026 = vmatprep.subr.mxu0 0.0
    %3027 = vmatpush1.msra.mxu0 0.0
    %3028 = vmatprep.subr.mxu0 0.0
    %3029 = vmatpush1.msra.mxu0 0.0
    %3030 = vmatprep.subr.mxu0 0.0
    %3031 = vmatpush1.msra.mxu0 0.0
    %3032 = vmatprep.subr.mxu0 0.0
    %3033 = vmatpush1.msra.mxu0 0.0
    %3034 = vmatprep.subr.mxu0 0.0
    %3035 = vmatpush1.msra.mxu0 0.0
    %3036 = vmatprep.subr.mxu0 0.0
    %3037 = vmatpush1.msra.mxu0 0.0
    %3038 = vmatprep.subr.mxu0 0.0
    %3039 = vmatpush1.msra.mxu0 0.0
    %3040 = vmatprep.subr.mxu0 0.0
    %3041 = vmatpush1.msra.mxu0 0.0
    %3042 = vmatprep.subr.mxu0 0.0
    %3043 = vmatpush1.msra.mxu0 0.0
    %3044 = vmatprep.subr.mxu0 0.0
    %3045 = vmatpush1.msra.mxu0 0.0
    %3046 = vmatprep.mubr.f32.mxu0 0.0
    %3047 = vmatmul.mubr.f32.gmra.mrb[0].mxu0 %v544
    %v3048 = vpop.f32.mrb[0].mxu0
    %v3049 = vadd.f32 0.0, %v3048
    %v3050 = vpop.f32.mrb[0].mxu0
    %3051 = vdwg.mxu0
    %3053 = vset.pattern.permute.xlu0 0
    %3054 = vperm.xlu0 %3053, %v2979
    %v3055 = vpop.permute.xlu0 %3054
    %v3057 = vlaneseq
    %v3058 = vshrl.u32 %v3057, 7
    %v3059 = vsub.s32 0, %v3058
    %v3060 = vrot.slane %v2910, %v3059
    %v3061 = vadd.f32 %v3055, %v3060
    %v3062 = vsub.f32 %v3061, %v466
    %3064 = vset.pattern.permute.xlu0 0
    %3065 = vperm.xlu0 %3064, %v3049
    %v3066 = vpop.permute.xlu0 %3065
    %v3068 = vlaneseq
    %v3069 = vshrl.u32 %v3068, 7
    %v3070 = vsub.s32 0, %v3069
    %v3071 = vrot.slane %v2911, %v3070
    %v3072 = vmul.f32 %v3066, %v3071
    %v3073 = vmul.f32 %v3062, %v3072
    %v3074 = vsub.f32 %v2909, %v3073
    %v3075 = vand.u32 2147483647, %v3074
    %vm3076 = vcmp.lt.f32.partialorder %v3075, 1.0
    %v3077 = vmul.f32 %v3074, 0.5
    %v3078 = vmul.f32 %v3077, %v3074
    %v3079 = vsub.f32 %v3075, 0.5
    %v3080 = vsel %vm3076, %v3078, %v3079
    %v3081 = vsel %vm117, %v3080, 0.0
    %3082 = vadd.xlane.f32.xlu0 %v3081
    %v3083 = vpop.xlane.xlu0 %3082
    %v3084 = vrot.slane %v3083, 4
    %v3085 = vadd.f32 %v3083, %v3084
    %v3086 = vrot.slane %v3085, 2
    %v3087 = vadd.f32 %v3085, %v3086
    %v3088 = vrot.slane %v3087, 1
    %v3089 = vadd.f32 %v3087, %v3088
    %v3090 = vadd.f32 %v2742, %v3089
    %v3091 = vrcp.pop 512.0
    %v3092 = vmul.f32 %v3090, %v3091
    %v3093 = vmul.f32 %v290, 25.0
    %v3094 = vmul.f32 %v3092, 50.0
    %v3095 = vadd.f32 %v3093, %v3094
    %vm3096 = vcmask 0
    %3097 = vst.msk [vmem:[#allocation11] sm:$0x1] %vm3096, %v3095
    // Predicated region
    $region18: #{tpu_custom_call.1} parent=1 // pred_check
      _
    $region19: #{tpu_custom_call.1} parent=1 // pred_check_branch
      %3099 = sbr.rel (0) target = $region21
    $region20: #{tpu_custom_call.1} parent=1 // pred_region
      %s3101 = ssub.s32 16, 16
      %3102 = vsyncadd [#allocation8], %s3101
      %s3104 = sshll.u32 [#allocation11], 4
      %s3105 = int_to_ptr.vmem [resolvable:$true] %s3104
      %3107 = dma.vmem_to_hbm [thread:$0]  %s3105, 16, %s2, [#allocation8]
    $region21: #{tpu_custom_call.1} parent=1 // pred_fallthru
      _
    // Predicated region
    $region22: #{tpu_custom_call.1} parent=1 // pred_check
      _
    $region23: #{tpu_custom_call.1} parent=1 // pred_check_branch
      %3109 = sbr.rel (0) target = $region25
    $region24: #{tpu_custom_call.1} parent=1 // pred_region
      %3110 = dma.done [#allocation8], 16
    $region25: #{tpu_custom_call.1} parent=1 // pred_fallthru
      _
    %3111 = vsyncpa [#allocation7], 1
    %3112 = vsyncpa [#allocation10], 1
    %3113 = vsyncpa [#allocation8], 1

</llo_original>
